<compile_context>
chip_gen: v7x
topology: tpu7x:2x2x1
jax: 0.10.0
libtpu: 0.0.40
codegen_flags: <defaults>
</compile_context>

<pallas_src>
import functools
import math

import jax
import jax.numpy as jnp
from jax import lax
from jax.experimental import pallas as pl
from jax.experimental.pallas import tpu as pltpu

LANE = 128


def _df_kernel(x_ref, tab_ref, o_ref, *, C, sr, df, chunk, prelu_via_max):
    """One grid step.

    x_ref  : (C, tile_rows, 128)          float32  -- pixels in lanes
    tab_ref: (tab_rows, chunk, 128)       compute  -- params pre-broadcast
    o_ref  : (sr^2*df^2, tile_rows, 128)  out dtype
    """
    sr2, df2 = sr * sr, df * df
    w1_off = 0
    b1_off = w1_off + sr2 * C * C
    w2_off = b1_off + sr2 * C
    b2_off = w2_off + df2 * C
    a_off = b2_off + df2

    cdt = tab_ref.dtype
    tile_rows = x_ref.shape[1]
    n_chunks = tile_rows // chunk

    def prelu(v, slope):
        if prelu_via_max:                 # exact for slopes in [0,1]; 2 VPU ops
            return jnp.maximum(v, slope * v)
        return jnp.where(v > 0, v, slope * v)

    def chunk_body(r, carry):
        # Row chunk of `chunk` sublanes: keeps the vreg live set small so the
        # large DMA tile does not translate into register spills.
        r0 = pl.multiple_of(r * chunk, chunk)
        xs = [x_ref[c, pl.ds(r0, chunk), :].astype(cdt) for c in range(C)]
        a0 = tab_ref[a_off + 0]           # PReLU0 slope, (chunk,128) slab
        a1 = tab_ref[a_off + 1]           # PReLU1 slope

        for s in range(sr2):              # pixel-shuffle offset, static unroll
            # conv1: channels feeding shuffle slice s are out-channels c*sr2+s.
            y = []
            for c in range(C):
                o1 = c * sr2 + s
                acc = tab_ref[w1_off + o1 * C] * xs[0]
                for cin in range(1, C):
                    acc = acc + tab_ref[w1_off + o1 * C + cin] * xs[cin]
                acc = acc + tab_ref[b1_off + o1]
                y.append(prelu(acc, a0))

            # conv2 + PReLU1: one (chunk, 128) slab per df^2 output channel.
            z = []
            for d in range(df2):
                accz = tab_ref[w2_off + d * C] * y[0]
                for cin in range(1, C):
                    accz = accz + tab_ref[w2_off + d * C + cin] * y[cin]
                accz = accz + tab_ref[b2_off + d]
                z.append(prelu(accz, a1))

            # softmax over the df^2 channels: max-select in compute dtype
            # (exact), exp/sum in f32, EUP approx reciprocal for the divide.
            m = z[0]
            for d in range(1, df2):
                m = jnp.maximum(m, z[d])
            mf = m.astype(jnp.float32)
            e = [jnp.exp(z[d].astype(jnp.float32) - mf) for d in range(df2)]
            tot = e[0]
            for d in range(1, df2):
                tot = tot + e[d]
            inv = pl.reciprocal(tot, approx=True)
            for d in range(df2):
                o_ref[s * df2 + d, pl.ds(r0, chunk), :] = (
                    e[d] * inv).astype(o_ref.dtype)
        return carry

    lax.fori_loop(0, n_chunks, chunk_body, 0)


def _default_compute_dtype():
    """bf16 MACs on v6e/v7x (2x VPU throughput); f32 elsewhere (v5e: no bf16 VPU)."""
    try:
        kind = jax.devices()[0].device_kind.lower()
    except Exception:
        kind = ""
    if ("v6" in kind) or ("v7" in kind) or ("7x" in kind):
        return jnp.bfloat16
    return jnp.float32


def _prelu_via_max_ok(a0, a1):
    """max(x, a*x) == PReLU(x) only for slopes in [0,1]; require concrete proof."""
    try:
        return bool(0.0 <= float(a0) <= 1.0) and bool(0.0 <= float(a1) <= 1.0)
    except Exception:          # traced / abstract slopes -> keep exact where()
        return False


def _param_table(W1, b1, W2, b2, a0, a1, *, chunk, dtype):
    """Pack every parameter, pre-broadcast to (chunk,128), into one VMEM table."""
    vals = jnp.concatenate([
        W1.astype(jnp.float32).reshape(-1),      # [o1, cin] row-major
        b1.astype(jnp.float32).reshape(-1),
        W2.astype(jnp.float32).reshape(-1),      # [d, cin] row-major
        b2.astype(jnp.float32).reshape(-1),
        jnp.asarray(a0, jnp.float32).reshape(1),
        jnp.asarray(a1, jnp.float32).reshape(1),
    ])
    rows = pl.cdiv(vals.shape[0], 8) * 8
    vals = jnp.pad(vals, (0, rows - vals.shape[0]))
    return jnp.broadcast_to(vals.astype(dtype)[:, None, None],
                            (rows, chunk, LANE))


def dynamic_filters_branch(x, W1, b1, W2, b2, a0, a1, *, df_size, sr_rate,
                           tile_pixels=512 * LANE, compute_dtype=None,
                           out_dtype=jnp.bfloat16, prelu_via_max=None):
    """x: (B, C, HV, WV, H, W) f32 -> (B, 1, HV, WV, H*sr, W*sr, df, df)."""
    B, C, HV, WV, H, W = x.shape
    sr, df = sr_rate, df_size
    sr2, df2 = sr * sr, df * df
    P = HV * WV * H * W

    if compute_dtype is None:
        compute_dtype = _default_compute_dtype()
    if prelu_via_max is None:
        prelu_via_max = _prelu_via_max_ok(a0, a1)

    # Row chunk: 16 sublanes for bf16 (one packed vreg per slab), 8 for f32.
    chunk = 16 if jnp.dtype(compute_dtype) == jnp.dtype(jnp.bfloat16) else 8

    # ---- tile sizing: big tiles to amortise per-step overhead, but keep ----
    # ---- >=4 grid steps when possible so both v7x TensorCores get work. ----
    p_rows = pl.cdiv(P, LANE)
    rows_min = pl.cdiv(p_rows, chunk) * chunk
    tile_rows = max(chunk, min((tile_pixels // LANE) // chunk * chunk, rows_min))
    while tile_rows > chunk and B * pl.cdiv(rows_min, tile_rows) < 4:
        tile_rows = max(chunk, (tile_rows // 2) // chunk * chunk)
    rows_pad = pl.cdiv(rows_min, tile_rows) * tile_rows
    P_pad = rows_pad * LANE

    # ---- glue: free reshape; batch stays a grid axis (no input transpose) ----
    x3 = x.reshape(B, C, P)
    if P_pad != P:
        # zero pad -> padded pixels stay finite through exp/softmax, sliced off.
        x3 = jnp.pad(x3, ((0, 0), (0, 0), (0, P_pad - P)))
    x4 = x3.reshape(B, C, rows_pad, LANE)

    tab = _param_table(W1, b1, W2, b2, a0, a1, chunk=chunk, dtype=compute_dtype)
    tab_rows = tab.shape[0]

    # VMEM budget: double-buffered in/out/table blocks with headroom, kept below
    # every generation's physical VMEM (v7x: 64 MiB/TC) but above v5e's 16 MiB
    # scoped default so the larger tiles still compile there.
    blk_bytes = (C * tile_rows * LANE * 4
                 + sr2 * df2 * tile_rows * LANE * jnp.dtype(out_dtype).itemsize
                 + tab_rows * chunk * LANE * jnp.dtype(compute_dtype).itemsize)
    vmem_limit = int(min(56 * 2**20, max(32 * 2**20, 3 * blk_bytes)))

    kernel = functools.partial(_df_kernel, C=C, sr=sr, df=df, chunk=chunk,
                               prelu_via_max=prelu_via_max)

    out4 = pl.pallas_call(
        kernel,
        out_shape=jax.ShapeDtypeStruct((B, sr2 * df2, rows_pad, LANE), out_dtype),
        grid=(B, rows_pad // tile_rows),
        in_specs=[
            pl.BlockSpec((None, C, tile_rows, LANE), lambda b, l: (b, 0, l, 0)),
            pl.BlockSpec((tab_rows, chunk, LANE), lambda b, l: (0, 0, 0)),
        ],
        out_specs=pl.BlockSpec((None, sr2 * df2, tile_rows, LANE),
                               lambda b, l: (b, 0, l, 0)),
        compiler_params=pltpu.CompilerParams(
            dimension_semantics=("parallel", "parallel"),
            vmem_limit_bytes=vmem_limit),
    )(x4, tab)

    # ---- glue: restore the PyTorch output layout (runs on bf16 = half traffic) ----
    # TODO(synk): fuse this permute into the consuming filter-apply kernel; it
    # re-streams the whole output through HBM and is required only by the
    # module's return layout.
    out = out4.reshape(B, sr2 * df2, rows_pad * LANE)[:, :, :P]
    out = out.reshape(B, sr, sr, df, df, HV, WV, H, W)
    out = jnp.transpose(out, (0, 5, 6, 7, 1, 8, 2, 3, 4))   # (B,HV,WV,H,sr,W,sr,df,df)
    out = out.reshape(B, HV, WV, H * sr, W * sr, df, df)
    return out[:, None]                                      # (B,1,HV,WV,H*sr,W*sr,df,df)


# -------------------- pure-JAX reference (mirrors the torch code) --------------------
def reference(x, W1, b1, W2, b2, a0, a1, *, df_size, sr_rate):
    B, C, HV, WV, H, W = x.shape
    sr, df = sr_rate, df_size
    x1 = x.reshape(B, C, HV * WV, H, W)
    y = jnp.einsum('oc,bcvhw->bovhw', W1, x1) + b1[None, :, None, None, None]
    y = jnp.where(y > 0, y, a0 * y)
    Cout = y.shape[1]
    y = jnp.transpose(y, (0, 2, 1, 3, 4)).reshape(B * HV * WV, Cout, H, W)
    # pixel shuffle
    y = y.reshape(B * HV * WV, C, sr, sr, H, W)
    y = jnp.transpose(y, (0, 1, 4, 2, 5, 3)).reshape(B * HV * WV, C, H * sr, W * sr)
    Hs, Ws = H * sr, W * sr
    y = y.reshape(B, HV * WV, C, Hs, Ws)
    y = jnp.transpose(y, (0, 2, 1, 3, 4))
    z = jnp.einsum('oc,bcvhw->bovhw', W2, y) + b2[None, :, None, None, None]
    z = jnp.where(z > 0, z, a1 * z)
    z = jnp.transpose(z, (0, 2, 3, 4, 1))
    z = z.reshape(B, 1, HV, WV, Hs, Ws, df * df)
    z = jax.nn.softmax(z, axis=6)
    return z.reshape(B, 1, HV, WV, Hs, Ws, df, df)


def kaiming_uniform(key, shape, fan_in, a=0.25):
    gain = math.sqrt(2.0 / (1.0 + a * a))
    bound = gain * math.sqrt(3.0 / fan_in)
    return jax.random.uniform(key, shape, jnp.float32, -bound, bound)


if __name__ == "__main__":
    # Small deterministic config: channel_num=4, df_size=3, sr_rate=2
    B, C, HV, WV, H, W = 2, 4, 2, 2, 16, 16
    df_size, sr_rate = 3, 2
    sr2, df2 = sr_rate * sr_rate, df_size * df_size

    key = jax.random.PRNGKey(0)
    kx, k1, k2 = jax.random.split(key, 3)

    x = jax.random.normal(kx, (B, C, HV, WV, H, W), jnp.float32)

    # Conv3d weights (kernel_size=1) collapsed to (out, in); biases zeroed per init.
    W1 = kaiming_uniform(k1, (sr2 * C, C), fan_in=C)
    b1 = jnp.zeros((sr2 * C,), jnp.float32)
    W2 = kaiming_uniform(k2, (df2, C), fan_in=C)
    b2 = jnp.zeros((df2,), jnp.float32)
    a0 = jnp.float32(0.25)   # PReLU default init
    a1 = jnp.float32(0.25)

    expected_shape = (B, 1, HV, WV, H * sr_rate, W * sr_rate, df_size, df_size)
    ref = reference(x, W1, b1, W2, b2, a0, a1, df_size=df_size, sr_rate=sr_rate)

    # 1) exact-logic validation: f32 compute, f32 output (same tolerance as before;
    #    only the EUP approx reciprocal deviates from the pure-JAX reference).
    out_f32 = dynamic_filters_branch(x, W1, b1, W2, b2, a0, a1,
                                     df_size=df_size, sr_rate=sr_rate,
                                     compute_dtype=jnp.float32,
                                     out_dtype=jnp.float32)
    out_f32 = jax.block_until_ready(out_f32)
    assert out_f32.shape == expected_shape
    assert jnp.allclose(out_f32, ref, atol=2e-3, rtol=2e-3), \
        f"f32 path max abs err {jnp.max(jnp.abs(out_f32 - ref))}"

    # 2) fast path: generation-tuned compute dtype (bf16 on v6e/v7x) + bf16 output.
    fast_cdt = _default_compute_dtype()
    out_fast = dynamic_filters_branch(x, W1, b1, W2, b2, a0, a1,
                                      df_size=df_size, sr_rate=sr_rate)
    out_fast = jax.block_until_ready(out_fast)
    assert out_fast.shape == expected_shape
    of = out_fast.astype(jnp.float32)
    max_err = float(jnp.max(jnp.abs(of - ref)))
    mean_err = float(jnp.mean(jnp.abs(of - ref)))
    tol_max = 8e-2 if jnp.dtype(fast_cdt) == jnp.dtype(jnp.bfloat16) else 8e-3
    assert max_err < tol_max, f"fast path max abs err {max_err}"
    assert mean_err < 5e-3, f"fast path mean abs err {mean_err}"
    # The df x df filters must still be (near-)normalized softmaxes.
    sums = jnp.sum(of, axis=(-1, -2))
    assert float(jnp.max(jnp.abs(sums - 1.0))) < 2e-2

    print("KERNEL_OK")
</pallas_src>

<mosaic_0001>
module attributes {stable_mosaic.version = 11 : i64} {
  func.func @_df_kernel(%arg0: i32, %arg1: i32, %arg2: memref<1x4x8x128xf32, #tpu.memory_space<vmem>>, %arg3: memref<128x8x128xf32, #tpu.memory_space<vmem>>, %arg4: memref<1x36x8x128xf32, #tpu.memory_space<vmem>>) attributes {dimension_semantics = [#tpu.dimension_semantics<parallel>, #tpu.dimension_semantics<parallel>], iteration_bounds = array<i64: 2, 1>, scalar_prefetch = 0 : i64, scratch_operands = 0 : i64, tpu.core_type = #tpu.core_type<tc>, window_params = [{transform_indices = @transform_0, window_bounds = array<i64: 1, 4, 8, 128>}, {pipeline_mode = #tpu.pipeline_mode<synchronous>, transform_indices = @transform_1, window_bounds = array<i64: 128, 8, 128>}, {transform_indices = @transform_2, window_bounds = array<i64: 1, 36, 8, 128>}]} {
    %c0_i32 = arith.constant 0 : i32
    %c8_i32 = arith.constant 8 : i32
    %0 = arith.muli %c0_i32, %c8_i32 : i32
    %1 = tpu.assume_multiple %0, 8 : i32
    %c0 = arith.constant 0 : index
    %c0_0 = arith.constant 0 : index
    %2 = arith.index_cast %1 : i32 to index
    %c0_1 = arith.constant 0 : index
    %3 = vector.load %arg2[%c0, %c0_0, %2, %c0_1] : memref<1x4x8x128xf32, #tpu.memory_space<vmem>>, vector<1x1x8x128xf32>
    %4 = vector.shape_cast %3 : vector<1x1x8x128xf32> to vector<8x128xf32>
    %c0_2 = arith.constant 0 : index
    %c1 = arith.constant 1 : index
    %5 = arith.index_cast %1 : i32 to index
    %c0_3 = arith.constant 0 : index
    %6 = vector.load %arg2[%c0_2, %c1, %5, %c0_3] : memref<1x4x8x128xf32, #tpu.memory_space<vmem>>, vector<1x1x8x128xf32>
    %7 = vector.shape_cast %6 : vector<1x1x8x128xf32> to vector<8x128xf32>
    %c0_4 = arith.constant 0 : index
    %c2 = arith.constant 2 : index
    %8 = arith.index_cast %1 : i32 to index
    %c0_5 = arith.constant 0 : index
    %9 = vector.load %arg2[%c0_4, %c2, %8, %c0_5] : memref<1x4x8x128xf32, #tpu.memory_space<vmem>>, vector<1x1x8x128xf32>
    %10 = vector.shape_cast %9 : vector<1x1x8x128xf32> to vector<8x128xf32>
    %c0_6 = arith.constant 0 : index
    %c3 = arith.constant 3 : index
    %11 = arith.index_cast %1 : i32 to index
    %c0_7 = arith.constant 0 : index
    %12 = vector.load %arg2[%c0_6, %c3, %11, %c0_7] : memref<1x4x8x128xf32, #tpu.memory_space<vmem>>, vector<1x1x8x128xf32>
    %13 = vector.shape_cast %12 : vector<1x1x8x128xf32> to vector<8x128xf32>
    %c125 = arith.constant 125 : index
    %c0_8 = arith.constant 0 : index
    %c0_9 = arith.constant 0 : index
    %14 = vector.load %arg3[%c125, %c0_8, %c0_9] : memref<128x8x128xf32, #tpu.memory_space<vmem>>, vector<1x8x128xf32>
    %15 = vector.shape_cast %14 : vector<1x8x128xf32> to vector<8x128xf32>
    %c126 = arith.constant 126 : index
    %c0_10 = arith.constant 0 : index
    %c0_11 = arith.constant 0 : index
    %16 = vector.load %arg3[%c126, %c0_10, %c0_11] : memref<128x8x128xf32, #tpu.memory_space<vmem>>, vector<1x8x128xf32>
    %17 = vector.shape_cast %16 : vector<1x8x128xf32> to vector<8x128xf32>
    %c0_12 = arith.constant 0 : index
    %c0_13 = arith.constant 0 : index
    %c0_14 = arith.constant 0 : index
    %18 = vector.load %arg3[%c0_12, %c0_13, %c0_14] : memref<128x8x128xf32, #tpu.memory_space<vmem>>, vector<1x8x128xf32>
    %19 = vector.shape_cast %18 : vector<1x8x128xf32> to vector<8x128xf32>
    %20 = arith.mulf %19, %4 : vector<8x128xf32>
    %c1_15 = arith.constant 1 : index
    %c0_16 = arith.constant 0 : index
    %c0_17 = arith.constant 0 : index
    %21 = vector.load %arg3[%c1_15, %c0_16, %c0_17] : memref<128x8x128xf32, #tpu.memory_space<vmem>>, vector<1x8x128xf32>
    %22 = vector.shape_cast %21 : vector<1x8x128xf32> to vector<8x128xf32>
    %23 = arith.mulf %22, %7 : vector<8x128xf32>
    %24 = arith.addf %20, %23 : vector<8x128xf32>
    %c2_18 = arith.constant 2 : index
    %c0_19 = arith.constant 0 : index
    %c0_20 = arith.constant 0 : index
    %25 = vector.load %arg3[%c2_18, %c0_19, %c0_20] : memref<128x8x128xf32, #tpu.memory_space<vmem>>, vector<1x8x128xf32>
    %26 = vector.shape_cast %25 : vector<1x8x128xf32> to vector<8x128xf32>
    %27 = arith.mulf %26, %10 : vector<8x128xf32>
    %28 = arith.addf %24, %27 : vector<8x128xf32>
    %c3_21 = arith.constant 3 : index
    %c0_22 = arith.constant 0 : index
    %c0_23 = arith.constant 0 : index
    %29 = vector.load %arg3[%c3_21, %c0_22, %c0_23] : memref<128x8x128xf32, #tpu.memory_space<vmem>>, vector<1x8x128xf32>
    %30 = vector.shape_cast %29 : vector<1x8x128xf32> to vector<8x128xf32>
    %31 = arith.mulf %30, %13 : vector<8x128xf32>
    %32 = arith.addf %28, %31 : vector<8x128xf32>
    %c64 = arith.constant 64 : index
    %c0_24 = arith.constant 0 : index
    %c0_25 = arith.constant 0 : index
    %33 = vector.load %arg3[%c64, %c0_24, %c0_25] : memref<128x8x128xf32, #tpu.memory_space<vmem>>, vector<1x8x128xf32>
    %34 = vector.shape_cast %33 : vector<1x8x128xf32> to vector<8x128xf32>
    %35 = arith.addf %32, %34 : vector<8x128xf32>
    %36 = arith.mulf %15, %35 : vector<8x128xf32>
    %37 = arith.maximumf %35, %36 : vector<8x128xf32>
    %c16 = arith.constant 16 : index
    %c0_26 = arith.constant 0 : index
    %c0_27 = arith.constant 0 : index
    %38 = vector.load %arg3[%c16, %c0_26, %c0_27] : memref<128x8x128xf32, #tpu.memory_space<vmem>>, vector<1x8x128xf32>
    %39 = vector.shape_cast %38 : vector<1x8x128xf32> to vector<8x128xf32>
    %40 = arith.mulf %39, %4 : vector<8x128xf32>
    %c17 = arith.constant 17 : index
    %c0_28 = arith.constant 0 : index
    %c0_29 = arith.constant 0 : index
    %41 = vector.load %arg3[%c17, %c0_28, %c0_29] : memref<128x8x128xf32, #tpu.memory_space<vmem>>, vector<1x8x128xf32>
    %42 = vector.shape_cast %41 : vector<1x8x128xf32> to vector<8x128xf32>
    %43 = arith.mulf %42, %7 : vector<8x128xf32>
    %44 = arith.addf %40, %43 : vector<8x128xf32>
    %c18 = arith.constant 18 : index
    %c0_30 = arith.constant 0 : index
    %c0_31 = arith.constant 0 : index
    %45 = vector.load %arg3[%c18, %c0_30, %c0_31] : memref<128x8x128xf32, #tpu.memory_space<vmem>>, vector<1x8x128xf32>
    %46 = vector.shape_cast %45 : vector<1x8x128xf32> to vector<8x128xf32>
    %47 = arith.mulf %46, %10 : vector<8x128xf32>
    %48 = arith.addf %44, %47 : vector<8x128xf32>
    %c19 = arith.constant 19 : index
    %c0_32 = arith.constant 0 : index
    %c0_33 = arith.constant 0 : index
    %49 = vector.load %arg3[%c19, %c0_32, %c0_33] : memref<128x8x128xf32, #tpu.memory_space<vmem>>, vector<1x8x128xf32>
    %50 = vector.shape_cast %49 : vector<1x8x128xf32> to vector<8x128xf32>
    %51 = arith.mulf %50, %13 : vector<8x128xf32>
    %52 = arith.addf %48, %51 : vector<8x128xf32>
    %c68 = arith.constant 68 : index
    %c0_34 = arith.constant 0 : index
    %c0_35 = arith.constant 0 : index
    %53 = vector.load %arg3[%c68, %c0_34, %c0_35] : memref<128x8x128xf32, #tpu.memory_space<vmem>>, vector<1x8x128xf32>
    %54 = vector.shape_cast %53 : vector<1x8x128xf32> to vector<8x128xf32>
    %55 = arith.addf %52, %54 : vector<8x128xf32>
    %56 = arith.mulf %15, %55 : vector<8x128xf32>
    %57 = arith.maximumf %55, %56 : vector<8x128xf32>
    %c32 = arith.constant 32 : index
    %c0_36 = arith.constant 0 : index
    %c0_37 = arith.constant 0 : index
    %58 = vector.load %arg3[%c32, %c0_36, %c0_37] : memref<128x8x128xf32, #tpu.memory_space<vmem>>, vector<1x8x128xf32>
    %59 = vector.shape_cast %58 : vector<1x8x128xf32> to vector<8x128xf32>
    %60 = arith.mulf %59, %4 : vector<8x128xf32>
    %c33 = arith.constant 33 : index
    %c0_38 = arith.constant 0 : index
    %c0_39 = arith.constant 0 : index
    %61 = vector.load %arg3[%c33, %c0_38, %c0_39] : memref<128x8x128xf32, #tpu.memory_space<vmem>>, vector<1x8x128xf32>
    %62 = vector.shape_cast %61 : vector<1x8x128xf32> to vector<8x128xf32>
    %63 = arith.mulf %62, %7 : vector<8x128xf32>
    %64 = arith.addf %60, %63 : vector<8x128xf32>
    %c34 = arith.constant 34 : index
    %c0_40 = arith.constant 0 : index
    %c0_41 = arith.constant 0 : index
    %65 = vector.load %arg3[%c34, %c0_40, %c0_41] : memref<128x8x128xf32, #tpu.memory_space<vmem>>, vector<1x8x128xf32>
    %66 = vector.shape_cast %65 : vector<1x8x128xf32> to vector<8x128xf32>
    %67 = arith.mulf %66, %10 : vector<8x128xf32>
    %68 = arith.addf %64, %67 : vector<8x128xf32>
    %c35 = arith.constant 35 : index
    %c0_42 = arith.constant 0 : index
    %c0_43 = arith.constant 0 : index
    %69 = vector.load %arg3[%c35, %c0_42, %c0_43] : memref<128x8x128xf32, #tpu.memory_space<vmem>>, vector<1x8x128xf32>
    %70 = vector.shape_cast %69 : vector<1x8x128xf32> to vector<8x128xf32>
    %71 = arith.mulf %70, %13 : vector<8x128xf32>
    %72 = arith.addf %68, %71 : vector<8x128xf32>
    %c72 = arith.constant 72 : index
    %c0_44 = arith.constant 0 : index
    %c0_45 = arith.constant 0 : index
    %73 = vector.load %arg3[%c72, %c0_44, %c0_45] : memref<128x8x128xf32, #tpu.memory_space<vmem>>, vector<1x8x128xf32>
    %74 = vector.shape_cast %73 : vector<1x8x128xf32> to vector<8x128xf32>
    %75 = arith.addf %72, %74 : vector<8x128xf32>
    %76 = arith.mulf %15, %75 : vector<8x128xf32>
    %77 = arith.maximumf %75, %76 : vector<8x128xf32>
    %c48 = arith.constant 48 : index
    %c0_46 = arith.constant 0 : index
    %c0_47 = arith.constant 0 : index
    %78 = vector.load %arg3[%c48, %c0_46, %c0_47] : memref<128x8x128xf32, #tpu.memory_space<vmem>>, vector<1x8x128xf32>
    %79 = vector.shape_cast %78 : vector<1x8x128xf32> to vector<8x128xf32>
    %80 = arith.mulf %79, %4 : vector<8x128xf32>
    %c49 = arith.constant 49 : index
    %c0_48 = arith.constant 0 : index
    %c0_49 = arith.constant 0 : index
    %81 = vector.load %arg3[%c49, %c0_48, %c0_49] : memref<128x8x128xf32, #tpu.memory_space<vmem>>, vector<1x8x128xf32>
    %82 = vector.shape_cast %81 : vector<1x8x128xf32> to vector<8x128xf32>
    %83 = arith.mulf %82, %7 : vector<8x128xf32>
    %84 = arith.addf %80, %83 : vector<8x128xf32>
    %c50 = arith.constant 50 : index
    %c0_50 = arith.constant 0 : index
    %c0_51 = arith.constant 0 : index
    %85 = vector.load %arg3[%c50, %c0_50, %c0_51] : memref<128x8x128xf32, #tpu.memory_space<vmem>>, vector<1x8x128xf32>
    %86 = vector.shape_cast %85 : vector<1x8x128xf32> to vector<8x128xf32>
    %87 = arith.mulf %86, %10 : vector<8x128xf32>
    %88 = arith.addf %84, %87 : vector<8x128xf32>
    %c51 = arith.constant 51 : index
    %c0_52 = arith.constant 0 : index
    %c0_53 = arith.constant 0 : index
    %89 = vector.load %arg3[%c51, %c0_52, %c0_53] : memref<128x8x128xf32, #tpu.memory_space<vmem>>, vector<1x8x128xf32>
    %90 = vector.shape_cast %89 : vector<1x8x128xf32> to vector<8x128xf32>
    %91 = arith.mulf %90, %13 : vector<8x128xf32>
    %92 = arith.addf %88, %91 : vector<8x128xf32>
    %c76 = arith.constant 76 : index
    %c0_54 = arith.constant 0 : index
    %c0_55 = arith.constant 0 : index
    %93 = vector.load %arg3[%c76, %c0_54, %c0_55] : memref<128x8x128xf32, #tpu.memory_space<vmem>>, vector<1x8x128xf32>
    %94 = vector.shape_cast %93 : vector<1x8x128xf32> to vector<8x128xf32>
    %95 = arith.addf %92, %94 : vector<8x128xf32>
    %96 = arith.mulf %15, %95 : vector<8x128xf32>
    %97 = arith.maximumf %95, %96 : vector<8x128xf32>
    %c80 = arith.constant 80 : index
    %c0_56 = arith.constant 0 : index
    %c0_57 = arith.constant 0 : index
    %98 = vector.load %arg3[%c80, %c0_56, %c0_57] : memref<128x8x128xf32, #tpu.memory_space<vmem>>, vector<1x8x128xf32>
    %99 = vector.shape_cast %98 : vector<1x8x128xf32> to vector<8x128xf32>
    %100 = arith.mulf %99, %37 : vector<8x128xf32>
    %c81 = arith.constant 81 : index
    %c0_58 = arith.constant 0 : index
    %c0_59 = arith.constant 0 : index
    %101 = vector.load %arg3[%c81, %c0_58, %c0_59] : memref<128x8x128xf32, #tpu.memory_space<vmem>>, vector<1x8x128xf32>
    %102 = vector.shape_cast %101 : vector<1x8x128xf32> to vector<8x128xf32>
    %103 = arith.mulf %102, %57 : vector<8x128xf32>
    %104 = arith.addf %100, %103 : vector<8x128xf32>
    %c82 = arith.constant 82 : index
    %c0_60 = arith.constant 0 : index
    %c0_61 = arith.constant 0 : index
    %105 = vector.load %arg3[%c82, %c0_60, %c0_61] : memref<128x8x128xf32, #tpu.memory_space<vmem>>, vector<1x8x128xf32>
    %106 = vector.shape_cast %105 : vector<1x8x128xf32> to vector<8x128xf32>
    %107 = arith.mulf %106, %77 : vector<8x128xf32>
    %108 = arith.addf %104, %107 : vector<8x128xf32>
    %c83 = arith.constant 83 : index
    %c0_62 = arith.constant 0 : index
    %c0_63 = arith.constant 0 : index
    %109 = vector.load %arg3[%c83, %c0_62, %c0_63] : memref<128x8x128xf32, #tpu.memory_space<vmem>>, vector<1x8x128xf32>
    %110 = vector.shape_cast %109 : vector<1x8x128xf32> to vector<8x128xf32>
    %111 = arith.mulf %110, %97 : vector<8x128xf32>
    %112 = arith.addf %108, %111 : vector<8x128xf32>
    %c116 = arith.constant 116 : index
    %c0_64 = arith.constant 0 : index
    %c0_65 = arith.constant 0 : index
    %113 = vector.load %arg3[%c116, %c0_64, %c0_65] : memref<128x8x128xf32, #tpu.memory_space<vmem>>, vector<1x8x128xf32>
    %114 = vector.shape_cast %113 : vector<1x8x128xf32> to vector<8x128xf32>
    %115 = arith.addf %112, %114 : vector<8x128xf32>
    %116 = arith.mulf %17, %115 : vector<8x128xf32>
    %117 = arith.maximumf %115, %116 : vector<8x128xf32>
    %c84 = arith.constant 84 : index
    %c0_66 = arith.constant 0 : index
    %c0_67 = arith.constant 0 : index
    %118 = vector.load %arg3[%c84, %c0_66, %c0_67] : memref<128x8x128xf32, #tpu.memory_space<vmem>>, vector<1x8x128xf32>
    %119 = vector.shape_cast %118 : vector<1x8x128xf32> to vector<8x128xf32>
    %120 = arith.mulf %119, %37 : vector<8x128xf32>
    %c85 = arith.constant 85 : index
    %c0_68 = arith.constant 0 : index
    %c0_69 = arith.constant 0 : index
    %121 = vector.load %arg3[%c85, %c0_68, %c0_69] : memref<128x8x128xf32, #tpu.memory_space<vmem>>, vector<1x8x128xf32>
    %122 = vector.shape_cast %121 : vector<1x8x128xf32> to vector<8x128xf32>
    %123 = arith.mulf %122, %57 : vector<8x128xf32>
    %124 = arith.addf %120, %123 : vector<8x128xf32>
    %c86 = arith.constant 86 : index
    %c0_70 = arith.constant 0 : index
    %c0_71 = arith.constant 0 : index
    %125 = vector.load %arg3[%c86, %c0_70, %c0_71] : memref<128x8x128xf32, #tpu.memory_space<vmem>>, vector<1x8x128xf32>
    %126 = vector.shape_cast %125 : vector<1x8x128xf32> to vector<8x128xf32>
    %127 = arith.mulf %126, %77 : vector<8x128xf32>
    %128 = arith.addf %124, %127 : vector<8x128xf32>
    %c87 = arith.constant 87 : index
    %c0_72 = arith.constant 0 : index
    %c0_73 = arith.constant 0 : index
    %129 = vector.load %arg3[%c87, %c0_72, %c0_73] : memref<128x8x128xf32, #tpu.memory_space<vmem>>, vector<1x8x128xf32>
    %130 = vector.shape_cast %129 : vector<1x8x128xf32> to vector<8x128xf32>
    %131 = arith.mulf %130, %97 : vector<8x128xf32>
    %132 = arith.addf %128, %131 : vector<8x128xf32>
    %c117 = arith.constant 117 : index
    %c0_74 = arith.constant 0 : index
    %c0_75 = arith.constant 0 : index
    %133 = vector.load %arg3[%c117, %c0_74, %c0_75] : memref<128x8x128xf32, #tpu.memory_space<vmem>>, vector<1x8x128xf32>
    %134 = vector.shape_cast %133 : vector<1x8x128xf32> to vector<8x128xf32>
    %135 = arith.addf %132, %134 : vector<8x128xf32>
    %136 = arith.mulf %17, %135 : vector<8x128xf32>
    %137 = arith.maximumf %135, %136 : vector<8x128xf32>
    %c88 = arith.constant 88 : index
    %c0_76 = arith.constant 0 : index
    %c0_77 = arith.constant 0 : index
    %138 = vector.load %arg3[%c88, %c0_76, %c0_77] : memref<128x8x128xf32, #tpu.memory_space<vmem>>, vector<1x8x128xf32>
    %139 = vector.shape_cast %138 : vector<1x8x128xf32> to vector<8x128xf32>
    %140 = arith.mulf %139, %37 : vector<8x128xf32>
    %c89 = arith.constant 89 : index
    %c0_78 = arith.constant 0 : index
    %c0_79 = arith.constant 0 : index
    %141 = vector.load %arg3[%c89, %c0_78, %c0_79] : memref<128x8x128xf32, #tpu.memory_space<vmem>>, vector<1x8x128xf32>
    %142 = vector.shape_cast %141 : vector<1x8x128xf32> to vector<8x128xf32>
    %143 = arith.mulf %142, %57 : vector<8x128xf32>
    %144 = arith.addf %140, %143 : vector<8x128xf32>
    %c90 = arith.constant 90 : index
    %c0_80 = arith.constant 0 : index
    %c0_81 = arith.constant 0 : index
    %145 = vector.load %arg3[%c90, %c0_80, %c0_81] : memref<128x8x128xf32, #tpu.memory_space<vmem>>, vector<1x8x128xf32>
    %146 = vector.shape_cast %145 : vector<1x8x128xf32> to vector<8x128xf32>
    %147 = arith.mulf %146, %77 : vector<8x128xf32>
    %148 = arith.addf %144, %147 : vector<8x128xf32>
    %c91 = arith.constant 91 : index
    %c0_82 = arith.constant 0 : index
    %c0_83 = arith.constant 0 : index
    %149 = vector.load %arg3[%c91, %c0_82, %c0_83] : memref<128x8x128xf32, #tpu.memory_space<vmem>>, vector<1x8x128xf32>
    %150 = vector.shape_cast %149 : vector<1x8x128xf32> to vector<8x128xf32>
    %151 = arith.mulf %150, %97 : vector<8x128xf32>
    %152 = arith.addf %148, %151 : vector<8x128xf32>
    %c118 = arith.constant 118 : index
    %c0_84 = arith.constant 0 : index
    %c0_85 = arith.constant 0 : index
    %153 = vector.load %arg3[%c118, %c0_84, %c0_85] : memref<128x8x128xf32, #tpu.memory_space<vmem>>, vector<1x8x128xf32>
    %154 = vector.shape_cast %153 : vector<1x8x128xf32> to vector<8x128xf32>
    %155 = arith.addf %152, %154 : vector<8x128xf32>
    %156 = arith.mulf %17, %155 : vector<8x128xf32>
    %157 = arith.maximumf %155, %156 : vector<8x128xf32>
    %c92 = arith.constant 92 : index
    %c0_86 = arith.constant 0 : index
    %c0_87 = arith.constant 0 : index
    %158 = vector.load %arg3[%c92, %c0_86, %c0_87] : memref<128x8x128xf32, #tpu.memory_space<vmem>>, vector<1x8x128xf32>
    %159 = vector.shape_cast %158 : vector<1x8x128xf32> to vector<8x128xf32>
    %160 = arith.mulf %159, %37 : vector<8x128xf32>
    %c93 = arith.constant 93 : index
    %c0_88 = arith.constant 0 : index
    %c0_89 = arith.constant 0 : index
    %161 = vector.load %arg3[%c93, %c0_88, %c0_89] : memref<128x8x128xf32, #tpu.memory_space<vmem>>, vector<1x8x128xf32>
    %162 = vector.shape_cast %161 : vector<1x8x128xf32> to vector<8x128xf32>
    %163 = arith.mulf %162, %57 : vector<8x128xf32>
    %164 = arith.addf %160, %163 : vector<8x128xf32>
    %c94 = arith.constant 94 : index
    %c0_90 = arith.constant 0 : index
    %c0_91 = arith.constant 0 : index
    %165 = vector.load %arg3[%c94, %c0_90, %c0_91] : memref<128x8x128xf32, #tpu.memory_space<vmem>>, vector<1x8x128xf32>
    %166 = vector.shape_cast %165 : vector<1x8x128xf32> to vector<8x128xf32>
    %167 = arith.mulf %166, %77 : vector<8x128xf32>
    %168 = arith.addf %164, %167 : vector<8x128xf32>
    %c95 = arith.constant 95 : index
    %c0_92 = arith.constant 0 : index
    %c0_93 = arith.constant 0 : index
    %169 = vector.load %arg3[%c95, %c0_92, %c0_93] : memref<128x8x128xf32, #tpu.memory_space<vmem>>, vector<1x8x128xf32>
    %170 = vector.shape_cast %169 : vector<1x8x128xf32> to vector<8x128xf32>
    %171 = arith.mulf %170, %97 : vector<8x128xf32>
    %172 = arith.addf %168, %171 : vector<8x128xf32>
    %c119 = arith.constant 119 : index
    %c0_94 = arith.constant 0 : index
    %c0_95 = arith.constant 0 : index
    %173 = vector.load %arg3[%c119, %c0_94, %c0_95] : memref<128x8x128xf32, #tpu.memory_space<vmem>>, vector<1x8x128xf32>
    %174 = vector.shape_cast %173 : vector<1x8x128xf32> to vector<8x128xf32>
    %175 = arith.addf %172, %174 : vector<8x128xf32>
    %176 = arith.mulf %17, %175 : vector<8x128xf32>
    %177 = arith.maximumf %175, %176 : vector<8x128xf32>
    %c96 = arith.constant 96 : index
    %c0_96 = arith.constant 0 : index
    %c0_97 = arith.constant 0 : index
    %178 = vector.load %arg3[%c96, %c0_96, %c0_97] : memref<128x8x128xf32, #tpu.memory_space<vmem>>, vector<1x8x128xf32>
    %179 = vector.shape_cast %178 : vector<1x8x128xf32> to vector<8x128xf32>
    %180 = arith.mulf %179, %37 : vector<8x128xf32>
    %c97 = arith.constant 97 : index
    %c0_98 = arith.constant 0 : index
    %c0_99 = arith.constant 0 : index
    %181 = vector.load %arg3[%c97, %c0_98, %c0_99] : memref<128x8x128xf32, #tpu.memory_space<vmem>>, vector<1x8x128xf32>
    %182 = vector.shape_cast %181 : vector<1x8x128xf32> to vector<8x128xf32>
    %183 = arith.mulf %182, %57 : vector<8x128xf32>
    %184 = arith.addf %180, %183 : vector<8x128xf32>
    %c98 = arith.constant 98 : index
    %c0_100 = arith.constant 0 : index
    %c0_101 = arith.constant 0 : index
    %185 = vector.load %arg3[%c98, %c0_100, %c0_101] : memref<128x8x128xf32, #tpu.memory_space<vmem>>, vector<1x8x128xf32>
    %186 = vector.shape_cast %185 : vector<1x8x128xf32> to vector<8x128xf32>
    %187 = arith.mulf %186, %77 : vector<8x128xf32>
    %188 = arith.addf %184, %187 : vector<8x128xf32>
    %c99 = arith.constant 99 : index
    %c0_102 = arith.constant 0 : index
    %c0_103 = arith.constant 0 : index
    %189 = vector.load %arg3[%c99, %c0_102, %c0_103] : memref<128x8x128xf32, #tpu.memory_space<vmem>>, vector<1x8x128xf32>
    %190 = vector.shape_cast %189 : vector<1x8x128xf32> to vector<8x128xf32>
    %191 = arith.mulf %190, %97 : vector<8x128xf32>
    %192 = arith.addf %188, %191 : vector<8x128xf32>
    %c120 = arith.constant 120 : index
    %c0_104 = arith.constant 0 : index
    %c0_105 = arith.constant 0 : index
    %193 = vector.load %arg3[%c120, %c0_104, %c0_105] : memref<128x8x128xf32, #tpu.memory_space<vmem>>, vector<1x8x128xf32>
    %194 = vector.shape_cast %193 : vector<1x8x128xf32> to vector<8x128xf32>
    %195 = arith.addf %192, %194 : vector<8x128xf32>
    %196 = arith.mulf %17, %195 : vector<8x128xf32>
    %197 = arith.maximumf %195, %196 : vector<8x128xf32>
    %c100 = arith.constant 100 : index
    %c0_106 = arith.constant 0 : index
    %c0_107 = arith.constant 0 : index
    %198 = vector.load %arg3[%c100, %c0_106, %c0_107] : memref<128x8x128xf32, #tpu.memory_space<vmem>>, vector<1x8x128xf32>
    %199 = vector.shape_cast %198 : vector<1x8x128xf32> to vector<8x128xf32>
    %200 = arith.mulf %199, %37 : vector<8x128xf32>
    %c101 = arith.constant 101 : index
    %c0_108 = arith.constant 0 : index
    %c0_109 = arith.constant 0 : index
    %201 = vector.load %arg3[%c101, %c0_108, %c0_109] : memref<128x8x128xf32, #tpu.memory_space<vmem>>, vector<1x8x128xf32>
    %202 = vector.shape_cast %201 : vector<1x8x128xf32> to vector<8x128xf32>
    %203 = arith.mulf %202, %57 : vector<8x128xf32>
    %204 = arith.addf %200, %203 : vector<8x128xf32>
    %c102 = arith.constant 102 : index
    %c0_110 = arith.constant 0 : index
    %c0_111 = arith.constant 0 : index
    %205 = vector.load %arg3[%c102, %c0_110, %c0_111] : memref<128x8x128xf32, #tpu.memory_space<vmem>>, vector<1x8x128xf32>
    %206 = vector.shape_cast %205 : vector<1x8x128xf32> to vector<8x128xf32>
    %207 = arith.mulf %206, %77 : vector<8x128xf32>
    %208 = arith.addf %204, %207 : vector<8x128xf32>
    %c103 = arith.constant 103 : index
    %c0_112 = arith.constant 0 : index
    %c0_113 = arith.constant 0 : index
    %209 = vector.load %arg3[%c103, %c0_112, %c0_113] : memref<128x8x128xf32, #tpu.memory_space<vmem>>, vector<1x8x128xf32>
    %210 = vector.shape_cast %209 : vector<1x8x128xf32> to vector<8x128xf32>
    %211 = arith.mulf %210, %97 : vector<8x128xf32>
    %212 = arith.addf %208, %211 : vector<8x128xf32>
    %c121 = arith.constant 121 : index
    %c0_114 = arith.constant 0 : index
    %c0_115 = arith.constant 0 : index
    %213 = vector.load %arg3[%c121, %c0_114, %c0_115] : memref<128x8x128xf32, #tpu.memory_space<vmem>>, vector<1x8x128xf32>
    %214 = vector.shape_cast %213 : vector<1x8x128xf32> to vector<8x128xf32>
    %215 = arith.addf %212, %214 : vector<8x128xf32>
    %216 = arith.mulf %17, %215 : vector<8x128xf32>
    %217 = arith.maximumf %215, %216 : vector<8x128xf32>
    %c104 = arith.constant 104 : index
    %c0_116 = arith.constant 0 : index
    %c0_117 = arith.constant 0 : index
    %218 = vector.load %arg3[%c104, %c0_116, %c0_117] : memref<128x8x128xf32, #tpu.memory_space<vmem>>, vector<1x8x128xf32>
    %219 = vector.shape_cast %218 : vector<1x8x128xf32> to vector<8x128xf32>
    %220 = arith.mulf %219, %37 : vector<8x128xf32>
    %c105 = arith.constant 105 : index
    %c0_118 = arith.constant 0 : index
    %c0_119 = arith.constant 0 : index
    %221 = vector.load %arg3[%c105, %c0_118, %c0_119] : memref<128x8x128xf32, #tpu.memory_space<vmem>>, vector<1x8x128xf32>
    %222 = vector.shape_cast %221 : vector<1x8x128xf32> to vector<8x128xf32>
    %223 = arith.mulf %222, %57 : vector<8x128xf32>
    %224 = arith.addf %220, %223 : vector<8x128xf32>
    %c106 = arith.constant 106 : index
    %c0_120 = arith.constant 0 : index
    %c0_121 = arith.constant 0 : index
    %225 = vector.load %arg3[%c106, %c0_120, %c0_121] : memref<128x8x128xf32, #tpu.memory_space<vmem>>, vector<1x8x128xf32>
    %226 = vector.shape_cast %225 : vector<1x8x128xf32> to vector<8x128xf32>
    %227 = arith.mulf %226, %77 : vector<8x128xf32>
    %228 = arith.addf %224, %227 : vector<8x128xf32>
    %c107 = arith.constant 107 : index
    %c0_122 = arith.constant 0 : index
    %c0_123 = arith.constant 0 : index
    %229 = vector.load %arg3[%c107, %c0_122, %c0_123] : memref<128x8x128xf32, #tpu.memory_space<vmem>>, vector<1x8x128xf32>
    %230 = vector.shape_cast %229 : vector<1x8x128xf32> to vector<8x128xf32>
    %231 = arith.mulf %230, %97 : vector<8x128xf32>
    %232 = arith.addf %228, %231 : vector<8x128xf32>
    %c122 = arith.constant 122 : index
    %c0_124 = arith.constant 0 : index
    %c0_125 = arith.constant 0 : index
    %233 = vector.load %arg3[%c122, %c0_124, %c0_125] : memref<128x8x128xf32, #tpu.memory_space<vmem>>, vector<1x8x128xf32>
    %234 = vector.shape_cast %233 : vector<1x8x128xf32> to vector<8x128xf32>
    %235 = arith.addf %232, %234 : vector<8x128xf32>
    %236 = arith.mulf %17, %235 : vector<8x128xf32>
    %237 = arith.maximumf %235, %236 : vector<8x128xf32>
    %c108 = arith.constant 108 : index
    %c0_126 = arith.constant 0 : index
    %c0_127 = arith.constant 0 : index
    %238 = vector.load %arg3[%c108, %c0_126, %c0_127] : memref<128x8x128xf32, #tpu.memory_space<vmem>>, vector<1x8x128xf32>
    %239 = vector.shape_cast %238 : vector<1x8x128xf32> to vector<8x128xf32>
    %240 = arith.mulf %239, %37 : vector<8x128xf32>
    %c109 = arith.constant 109 : index
    %c0_128 = arith.constant 0 : index
    %c0_129 = arith.constant 0 : index
    %241 = vector.load %arg3[%c109, %c0_128, %c0_129] : memref<128x8x128xf32, #tpu.memory_space<vmem>>, vector<1x8x128xf32>
    %242 = vector.shape_cast %241 : vector<1x8x128xf32> to vector<8x128xf32>
    %243 = arith.mulf %242, %57 : vector<8x128xf32>
    %244 = arith.addf %240, %243 : vector<8x128xf32>
    %c110 = arith.constant 110 : index
    %c0_130 = arith.constant 0 : index
    %c0_131 = arith.constant 0 : index
    %245 = vector.load %arg3[%c110, %c0_130, %c0_131] : memref<128x8x128xf32, #tpu.memory_space<vmem>>, vector<1x8x128xf32>
    %246 = vector.shape_cast %245 : vector<1x8x128xf32> to vector<8x128xf32>
    %247 = arith.mulf %246, %77 : vector<8x128xf32>
    %248 = arith.addf %244, %247 : vector<8x128xf32>
    %c111 = arith.constant 111 : index
    %c0_132 = arith.constant 0 : index
    %c0_133 = arith.constant 0 : index
    %249 = vector.load %arg3[%c111, %c0_132, %c0_133] : memref<128x8x128xf32, #tpu.memory_space<vmem>>, vector<1x8x128xf32>
    %250 = vector.shape_cast %249 : vector<1x8x128xf32> to vector<8x128xf32>
    %251 = arith.mulf %250, %97 : vector<8x128xf32>
    %252 = arith.addf %248, %251 : vector<8x128xf32>
    %c123 = arith.constant 123 : index
    %c0_134 = arith.constant 0 : index
    %c0_135 = arith.constant 0 : index
    %253 = vector.load %arg3[%c123, %c0_134, %c0_135] : memref<128x8x128xf32, #tpu.memory_space<vmem>>, vector<1x8x128xf32>
    %254 = vector.shape_cast %253 : vector<1x8x128xf32> to vector<8x128xf32>
    %255 = arith.addf %252, %254 : vector<8x128xf32>
    %256 = arith.mulf %17, %255 : vector<8x128xf32>
    %257 = arith.maximumf %255, %256 : vector<8x128xf32>
    %c112 = arith.constant 112 : index
    %c0_136 = arith.constant 0 : index
    %c0_137 = arith.constant 0 : index
    %258 = vector.load %arg3[%c112, %c0_136, %c0_137] : memref<128x8x128xf32, #tpu.memory_space<vmem>>, vector<1x8x128xf32>
    %259 = vector.shape_cast %258 : vector<1x8x128xf32> to vector<8x128xf32>
    %260 = arith.mulf %259, %37 : vector<8x128xf32>
    %c113 = arith.constant 113 : index
    %c0_138 = arith.constant 0 : index
    %c0_139 = arith.constant 0 : index
    %261 = vector.load %arg3[%c113, %c0_138, %c0_139] : memref<128x8x128xf32, #tpu.memory_space<vmem>>, vector<1x8x128xf32>
    %262 = vector.shape_cast %261 : vector<1x8x128xf32> to vector<8x128xf32>
    %263 = arith.mulf %262, %57 : vector<8x128xf32>
    %264 = arith.addf %260, %263 : vector<8x128xf32>
    %c114 = arith.constant 114 : index
    %c0_140 = arith.constant 0 : index
    %c0_141 = arith.constant 0 : index
    %265 = vector.load %arg3[%c114, %c0_140, %c0_141] : memref<128x8x128xf32, #tpu.memory_space<vmem>>, vector<1x8x128xf32>
    %266 = vector.shape_cast %265 : vector<1x8x128xf32> to vector<8x128xf32>
    %267 = arith.mulf %266, %77 : vector<8x128xf32>
    %268 = arith.addf %264, %267 : vector<8x128xf32>
    %c115 = arith.constant 115 : index
    %c0_142 = arith.constant 0 : index
    %c0_143 = arith.constant 0 : index
    %269 = vector.load %arg3[%c115, %c0_142, %c0_143] : memref<128x8x128xf32, #tpu.memory_space<vmem>>, vector<1x8x128xf32>
    %270 = vector.shape_cast %269 : vector<1x8x128xf32> to vector<8x128xf32>
    %271 = arith.mulf %270, %97 : vector<8x128xf32>
    %272 = arith.addf %268, %271 : vector<8x128xf32>
    %c124 = arith.constant 124 : index
    %c0_144 = arith.constant 0 : index
    %c0_145 = arith.constant 0 : index
    %273 = vector.load %arg3[%c124, %c0_144, %c0_145] : memref<128x8x128xf32, #tpu.memory_space<vmem>>, vector<1x8x128xf32>
    %274 = vector.shape_cast %273 : vector<1x8x128xf32> to vector<8x128xf32>
    %275 = arith.addf %272, %274 : vector<8x128xf32>
    %276 = arith.mulf %17, %275 : vector<8x128xf32>
    %277 = arith.maximumf %275, %276 : vector<8x128xf32>
    %278 = arith.maximumf %117, %137 : vector<8x128xf32>
    %279 = arith.maximumf %278, %157 : vector<8x128xf32>
    %280 = arith.maximumf %279, %177 : vector<8x128xf32>
    %281 = arith.maximumf %280, %197 : vector<8x128xf32>
    %282 = arith.maximumf %281, %217 : vector<8x128xf32>
    %283 = arith.maximumf %282, %237 : vector<8x128xf32>
    %284 = arith.maximumf %283, %257 : vector<8x128xf32>
    %285 = arith.maximumf %284, %277 : vector<8x128xf32>
    %286 = arith.subf %117, %285 : vector<8x128xf32>
    %287 = math.exp %286 : vector<8x128xf32>
    %288 = arith.subf %137, %285 : vector<8x128xf32>
    %289 = math.exp %288 : vector<8x128xf32>
    %290 = arith.subf %157, %285 : vector<8x128xf32>
    %291 = math.exp %290 : vector<8x128xf32>
    %292 = arith.subf %177, %285 : vector<8x128xf32>
    %293 = math.exp %292 : vector<8x128xf32>
    %294 = arith.subf %197, %285 : vector<8x128xf32>
    %295 = math.exp %294 : vector<8x128xf32>
    %296 = arith.subf %217, %285 : vector<8x128xf32>
    %297 = math.exp %296 : vector<8x128xf32>
    %298 = arith.subf %237, %285 : vector<8x128xf32>
    %299 = math.exp %298 : vector<8x128xf32>
    %300 = arith.subf %257, %285 : vector<8x128xf32>
    %301 = math.exp %300 : vector<8x128xf32>
    %302 = arith.subf %277, %285 : vector<8x128xf32>
    %303 = math.exp %302 : vector<8x128xf32>
    %304 = arith.addf %287, %289 : vector<8x128xf32>
    %305 = arith.addf %304, %291 : vector<8x128xf32>
    %306 = arith.addf %305, %293 : vector<8x128xf32>
    %307 = arith.addf %306, %295 : vector<8x128xf32>
    %308 = arith.addf %307, %297 : vector<8x128xf32>
    %309 = arith.addf %308, %299 : vector<8x128xf32>
    %310 = arith.addf %309, %301 : vector<8x128xf32>
    %311 = arith.addf %310, %303 : vector<8x128xf32>
    %312 = tpu.reciprocal %311 {approx = true} : vector<8x128xf32> -> vector<8x128xf32>
    %313 = arith.mulf %287, %312 : vector<8x128xf32>
    %c0_146 = arith.constant 0 : index
    %c0_147 = arith.constant 0 : index
    %314 = arith.index_cast %1 : i32 to index
    %c0_148 = arith.constant 0 : index
    %315 = vector.load %arg4[%c0_146, %c0_147, %314, %c0_148] : memref<1x36x8x128xf32, #tpu.memory_space<vmem>>, vector<1x1x8x128xf32>
    %316 = vector.shape_cast %315 : vector<1x1x8x128xf32> to vector<8x128xf32>
    %317 = vector.shape_cast %313 : vector<8x128xf32> to vector<1x1x8x128xf32>
    tpu.vector_store %arg4[%c0_146, %c0_147, %314, %c0_148], %317 {strides = array<i32>} : memref<1x36x8x128xf32, #tpu.memory_space<vmem>>, vector<1x1x8x128xf32>,
    %318 = arith.mulf %289, %312 : vector<8x128xf32>
    %c0_149 = arith.constant 0 : index
    %c1_150 = arith.constant 1 : index
    %319 = arith.index_cast %1 : i32 to index
    %c0_151 = arith.constant 0 : index
    %320 = vector.load %arg4[%c0_149, %c1_150, %319, %c0_151] : memref<1x36x8x128xf32, #tpu.memory_space<vmem>>, vector<1x1x8x128xf32>
    %321 = vector.shape_cast %320 : vector<1x1x8x128xf32> to vector<8x128xf32>
    %322 = vector.shape_cast %318 : vector<8x128xf32> to vector<1x1x8x128xf32>
    tpu.vector_store %arg4[%c0_149, %c1_150, %319, %c0_151], %322 {strides = array<i32>} : memref<1x36x8x128xf32, #tpu.memory_space<vmem>>, vector<1x1x8x128xf32>,
    %323 = arith.mulf %291, %312 : vector<8x128xf32>
    %c0_152 = arith.constant 0 : index
    %c2_153 = arith.constant 2 : index
    %324 = arith.index_cast %1 : i32 to index
    %c0_154 = arith.constant 0 : index
    %325 = vector.load %arg4[%c0_152, %c2_153, %324, %c0_154] : memref<1x36x8x128xf32, #tpu.memory_space<vmem>>, vector<1x1x8x128xf32>
    %326 = vector.shape_cast %325 : vector<1x1x8x128xf32> to vector<8x128xf32>
    %327 = vector.shape_cast %323 : vector<8x128xf32> to vector<1x1x8x128xf32>
    tpu.vector_store %arg4[%c0_152, %c2_153, %324, %c0_154], %327 {strides = array<i32>} : memref<1x36x8x128xf32, #tpu.memory_space<vmem>>, vector<1x1x8x128xf32>,
    %328 = arith.mulf %293, %312 : vector<8x128xf32>
    %c0_155 = arith.constant 0 : index
    %c3_156 = arith.constant 3 : index
    %329 = arith.index_cast %1 : i32 to index
    %c0_157 = arith.constant 0 : index
    %330 = vector.load %arg4[%c0_155, %c3_156, %329, %c0_157] : memref<1x36x8x128xf32, #tpu.memory_space<vmem>>, vector<1x1x8x128xf32>
    %331 = vector.shape_cast %330 : vector<1x1x8x128xf32> to vector<8x128xf32>
    %332 = vector.shape_cast %328 : vector<8x128xf32> to vector<1x1x8x128xf32>
    tpu.vector_store %arg4[%c0_155, %c3_156, %329, %c0_157], %332 {strides = array<i32>} : memref<1x36x8x128xf32, #tpu.memory_space<vmem>>, vector<1x1x8x128xf32>,
    %333 = arith.mulf %295, %312 : vector<8x128xf32>
    %c0_158 = arith.constant 0 : index
    %c4 = arith.constant 4 : index
    %334 = arith.index_cast %1 : i32 to index
    %c0_159 = arith.constant 0 : index
    %335 = vector.load %arg4[%c0_158, %c4, %334, %c0_159] : memref<1x36x8x128xf32, #tpu.memory_space<vmem>>, vector<1x1x8x128xf32>
    %336 = vector.shape_cast %335 : vector<1x1x8x128xf32> to vector<8x128xf32>
    %337 = vector.shape_cast %333 : vector<8x128xf32> to vector<1x1x8x128xf32>
    tpu.vector_store %arg4[%c0_158, %c4, %334, %c0_159], %337 {strides = array<i32>} : memref<1x36x8x128xf32, #tpu.memory_space<vmem>>, vector<1x1x8x128xf32>,
    %338 = arith.mulf %297, %312 : vector<8x128xf32>
    %c0_160 = arith.constant 0 : index
    %c5 = arith.constant 5 : index
    %339 = arith.index_cast %1 : i32 to index
    %c0_161 = arith.constant 0 : index
    %340 = vector.load %arg4[%c0_160, %c5, %339, %c0_161] : memref<1x36x8x128xf32, #tpu.memory_space<vmem>>, vector<1x1x8x128xf32>
    %341 = vector.shape_cast %340 : vector<1x1x8x128xf32> to vector<8x128xf32>
    %342 = vector.shape_cast %338 : vector<8x128xf32> to vector<1x1x8x128xf32>
    tpu.vector_store %arg4[%c0_160, %c5, %339, %c0_161], %342 {strides = array<i32>} : memref<1x36x8x128xf32, #tpu.memory_space<vmem>>, vector<1x1x8x128xf32>,
    %343 = arith.mulf %299, %312 : vector<8x128xf32>
    %c0_162 = arith.constant 0 : index
    %c6 = arith.constant 6 : index
    %344 = arith.index_cast %1 : i32 to index
    %c0_163 = arith.constant 0 : index
    %345 = vector.load %arg4[%c0_162, %c6, %344, %c0_163] : memref<1x36x8x128xf32, #tpu.memory_space<vmem>>, vector<1x1x8x128xf32>
    %346 = vector.shape_cast %345 : vector<1x1x8x128xf32> to vector<8x128xf32>
    %347 = vector.shape_cast %343 : vector<8x128xf32> to vector<1x1x8x128xf32>
    tpu.vector_store %arg4[%c0_162, %c6, %344, %c0_163], %347 {strides = array<i32>} : memref<1x36x8x128xf32, #tpu.memory_space<vmem>>, vector<1x1x8x128xf32>,
    %348 = arith.mulf %301, %312 : vector<8x128xf32>
    %c0_164 = arith.constant 0 : index
    %c7 = arith.constant 7 : index
    %349 = arith.index_cast %1 : i32 to index
    %c0_165 = arith.constant 0 : index
    %350 = vector.load %arg4[%c0_164, %c7, %349, %c0_165] : memref<1x36x8x128xf32, #tpu.memory_space<vmem>>, vector<1x1x8x128xf32>
    %351 = vector.shape_cast %350 : vector<1x1x8x128xf32> to vector<8x128xf32>
    %352 = vector.shape_cast %348 : vector<8x128xf32> to vector<1x1x8x128xf32>
    tpu.vector_store %arg4[%c0_164, %c7, %349, %c0_165], %352 {strides = array<i32>} : memref<1x36x8x128xf32, #tpu.memory_space<vmem>>, vector<1x1x8x128xf32>,
    %353 = arith.mulf %303, %312 : vector<8x128xf32>
    %c0_166 = arith.constant 0 : index
    %c8 = arith.constant 8 : index
    %354 = arith.index_cast %1 : i32 to index
    %c0_167 = arith.constant 0 : index
    %355 = vector.load %arg4[%c0_166, %c8, %354, %c0_167] : memref<1x36x8x128xf32, #tpu.memory_space<vmem>>, vector<1x1x8x128xf32>
    %356 = vector.shape_cast %355 : vector<1x1x8x128xf32> to vector<8x128xf32>
    %357 = vector.shape_cast %353 : vector<8x128xf32> to vector<1x1x8x128xf32>
    tpu.vector_store %arg4[%c0_166, %c8, %354, %c0_167], %357 {strides = array<i32>} : memref<1x36x8x128xf32, #tpu.memory_space<vmem>>, vector<1x1x8x128xf32>,
    %c4_168 = arith.constant 4 : index
    %c0_169 = arith.constant 0 : index
    %c0_170 = arith.constant 0 : index
    %358 = vector.load %arg3[%c4_168, %c0_169, %c0_170] : memref<128x8x128xf32, #tpu.memory_space<vmem>>, vector<1x8x128xf32>
    %359 = vector.shape_cast %358 : vector<1x8x128xf32> to vector<8x128xf32>
    %360 = arith.mulf %359, %4 : vector<8x128xf32>
    %c5_171 = arith.constant 5 : index
    %c0_172 = arith.constant 0 : index
    %c0_173 = arith.constant 0 : index
    %361 = vector.load %arg3[%c5_171, %c0_172, %c0_173] : memref<128x8x128xf32, #tpu.memory_space<vmem>>, vector<1x8x128xf32>
    %362 = vector.shape_cast %361 : vector<1x8x128xf32> to vector<8x128xf32>
    %363 = arith.mulf %362, %7 : vector<8x128xf32>
    %364 = arith.addf %360, %363 : vector<8x128xf32>
    %c6_174 = arith.constant 6 : index
    %c0_175 = arith.constant 0 : index
    %c0_176 = arith.constant 0 : index
    %365 = vector.load %arg3[%c6_174, %c0_175, %c0_176] : memref<128x8x128xf32, #tpu.memory_space<vmem>>, vector<1x8x128xf32>
    %366 = vector.shape_cast %365 : vector<1x8x128xf32> to vector<8x128xf32>
    %367 = arith.mulf %366, %10 : vector<8x128xf32>
    %368 = arith.addf %364, %367 : vector<8x128xf32>
    %c7_177 = arith.constant 7 : index
    %c0_178 = arith.constant 0 : index
    %c0_179 = arith.constant 0 : index
    %369 = vector.load %arg3[%c7_177, %c0_178, %c0_179] : memref<128x8x128xf32, #tpu.memory_space<vmem>>, vector<1x8x128xf32>
    %370 = vector.shape_cast %369 : vector<1x8x128xf32> to vector<8x128xf32>
    %371 = arith.mulf %370, %13 : vector<8x128xf32>
    %372 = arith.addf %368, %371 : vector<8x128xf32>
    %c65 = arith.constant 65 : index
    %c0_180 = arith.constant 0 : index
    %c0_181 = arith.constant 0 : index
    %373 = vector.load %arg3[%c65, %c0_180, %c0_181] : memref<128x8x128xf32, #tpu.memory_space<vmem>>, vector<1x8x128xf32>
    %374 = vector.shape_cast %373 : vector<1x8x128xf32> to vector<8x128xf32>
    %375 = arith.addf %372, %374 : vector<8x128xf32>
    %376 = arith.mulf %15, %375 : vector<8x128xf32>
    %377 = arith.maximumf %375, %376 : vector<8x128xf32>
    %c20 = arith.constant 20 : index
    %c0_182 = arith.constant 0 : index
    %c0_183 = arith.constant 0 : index
    %378 = vector.load %arg3[%c20, %c0_182, %c0_183] : memref<128x8x128xf32, #tpu.memory_space<vmem>>, vector<1x8x128xf32>
    %379 = vector.shape_cast %378 : vector<1x8x128xf32> to vector<8x128xf32>
    %380 = arith.mulf %379, %4 : vector<8x128xf32>
    %c21 = arith.constant 21 : index
    %c0_184 = arith.constant 0 : index
    %c0_185 = arith.constant 0 : index
    %381 = vector.load %arg3[%c21, %c0_184, %c0_185] : memref<128x8x128xf32, #tpu.memory_space<vmem>>, vector<1x8x128xf32>
    %382 = vector.shape_cast %381 : vector<1x8x128xf32> to vector<8x128xf32>
    %383 = arith.mulf %382, %7 : vector<8x128xf32>
    %384 = arith.addf %380, %383 : vector<8x128xf32>
    %c22 = arith.constant 22 : index
    %c0_186 = arith.constant 0 : index
    %c0_187 = arith.constant 0 : index
    %385 = vector.load %arg3[%c22, %c0_186, %c0_187] : memref<128x8x128xf32, #tpu.memory_space<vmem>>, vector<1x8x128xf32>
    %386 = vector.shape_cast %385 : vector<1x8x128xf32> to vector<8x128xf32>
    %387 = arith.mulf %386, %10 : vector<8x128xf32>
    %388 = arith.addf %384, %387 : vector<8x128xf32>
    %c23 = arith.constant 23 : index
    %c0_188 = arith.constant 0 : index
    %c0_189 = arith.constant 0 : index
    %389 = vector.load %arg3[%c23, %c0_188, %c0_189] : memref<128x8x128xf32, #tpu.memory_space<vmem>>, vector<1x8x128xf32>
    %390 = vector.shape_cast %389 : vector<1x8x128xf32> to vector<8x128xf32>
    %391 = arith.mulf %390, %13 : vector<8x128xf32>
    %392 = arith.addf %388, %391 : vector<8x128xf32>
    %c69 = arith.constant 69 : index
    %c0_190 = arith.constant 0 : index
    %c0_191 = arith.constant 0 : index
    %393 = vector.load %arg3[%c69, %c0_190, %c0_191] : memref<128x8x128xf32, #tpu.memory_space<vmem>>, vector<1x8x128xf32>
    %394 = vector.shape_cast %393 : vector<1x8x128xf32> to vector<8x128xf32>
    %395 = arith.addf %392, %394 : vector<8x128xf32>
    %396 = arith.mulf %15, %395 : vector<8x128xf32>
    %397 = arith.maximumf %395, %396 : vector<8x128xf32>
    %c36 = arith.constant 36 : index
    %c0_192 = arith.constant 0 : index
    %c0_193 = arith.constant 0 : index
    %398 = vector.load %arg3[%c36, %c0_192, %c0_193] : memref<128x8x128xf32, #tpu.memory_space<vmem>>, vector<1x8x128xf32>
    %399 = vector.shape_cast %398 : vector<1x8x128xf32> to vector<8x128xf32>
    %400 = arith.mulf %399, %4 : vector<8x128xf32>
    %c37 = arith.constant 37 : index
    %c0_194 = arith.constant 0 : index
    %c0_195 = arith.constant 0 : index
    %401 = vector.load %arg3[%c37, %c0_194, %c0_195] : memref<128x8x128xf32, #tpu.memory_space<vmem>>, vector<1x8x128xf32>
    %402 = vector.shape_cast %401 : vector<1x8x128xf32> to vector<8x128xf32>
    %403 = arith.mulf %402, %7 : vector<8x128xf32>
    %404 = arith.addf %400, %403 : vector<8x128xf32>
    %c38 = arith.constant 38 : index
    %c0_196 = arith.constant 0 : index
    %c0_197 = arith.constant 0 : index
    %405 = vector.load %arg3[%c38, %c0_196, %c0_197] : memref<128x8x128xf32, #tpu.memory_space<vmem>>, vector<1x8x128xf32>
    %406 = vector.shape_cast %405 : vector<1x8x128xf32> to vector<8x128xf32>
    %407 = arith.mulf %406, %10 : vector<8x128xf32>
    %408 = arith.addf %404, %407 : vector<8x128xf32>
    %c39 = arith.constant 39 : index
    %c0_198 = arith.constant 0 : index
    %c0_199 = arith.constant 0 : index
    %409 = vector.load %arg3[%c39, %c0_198, %c0_199] : memref<128x8x128xf32, #tpu.memory_space<vmem>>, vector<1x8x128xf32>
    %410 = vector.shape_cast %409 : vector<1x8x128xf32> to vector<8x128xf32>
    %411 = arith.mulf %410, %13 : vector<8x128xf32>
    %412 = arith.addf %408, %411 : vector<8x128xf32>
    %c73 = arith.constant 73 : index
    %c0_200 = arith.constant 0 : index
    %c0_201 = arith.constant 0 : index
    %413 = vector.load %arg3[%c73, %c0_200, %c0_201] : memref<128x8x128xf32, #tpu.memory_space<vmem>>, vector<1x8x128xf32>
    %414 = vector.shape_cast %413 : vector<1x8x128xf32> to vector<8x128xf32>
    %415 = arith.addf %412, %414 : vector<8x128xf32>
    %416 = arith.mulf %15, %415 : vector<8x128xf32>
    %417 = arith.maximumf %415, %416 : vector<8x128xf32>
    %c52 = arith.constant 52 : index
    %c0_202 = arith.constant 0 : index
    %c0_203 = arith.constant 0 : index
    %418 = vector.load %arg3[%c52, %c0_202, %c0_203] : memref<128x8x128xf32, #tpu.memory_space<vmem>>, vector<1x8x128xf32>
    %419 = vector.shape_cast %418 : vector<1x8x128xf32> to vector<8x128xf32>
    %420 = arith.mulf %419, %4 : vector<8x128xf32>
    %c53 = arith.constant 53 : index
    %c0_204 = arith.constant 0 : index
    %c0_205 = arith.constant 0 : index
    %421 = vector.load %arg3[%c53, %c0_204, %c0_205] : memref<128x8x128xf32, #tpu.memory_space<vmem>>, vector<1x8x128xf32>
    %422 = vector.shape_cast %421 : vector<1x8x128xf32> to vector<8x128xf32>
    %423 = arith.mulf %422, %7 : vector<8x128xf32>
    %424 = arith.addf %420, %423 : vector<8x128xf32>
    %c54 = arith.constant 54 : index
    %c0_206 = arith.constant 0 : index
    %c0_207 = arith.constant 0 : index
    %425 = vector.load %arg3[%c54, %c0_206, %c0_207] : memref<128x8x128xf32, #tpu.memory_space<vmem>>, vector<1x8x128xf32>
    %426 = vector.shape_cast %425 : vector<1x8x128xf32> to vector<8x128xf32>
    %427 = arith.mulf %426, %10 : vector<8x128xf32>
    %428 = arith.addf %424, %427 : vector<8x128xf32>
    %c55 = arith.constant 55 : index
    %c0_208 = arith.constant 0 : index
    %c0_209 = arith.constant 0 : index
    %429 = vector.load %arg3[%c55, %c0_208, %c0_209] : memref<128x8x128xf32, #tpu.memory_space<vmem>>, vector<1x8x128xf32>
    %430 = vector.shape_cast %429 : vector<1x8x128xf32> to vector<8x128xf32>
    %431 = arith.mulf %430, %13 : vector<8x128xf32>
    %432 = arith.addf %428, %431 : vector<8x128xf32>
    %c77 = arith.constant 77 : index
    %c0_210 = arith.constant 0 : index
    %c0_211 = arith.constant 0 : index
    %433 = vector.load %arg3[%c77, %c0_210, %c0_211] : memref<128x8x128xf32, #tpu.memory_space<vmem>>, vector<1x8x128xf32>
    %434 = vector.shape_cast %433 : vector<1x8x128xf32> to vector<8x128xf32>
    %435 = arith.addf %432, %434 : vector<8x128xf32>
    %436 = arith.mulf %15, %435 : vector<8x128xf32>
    %437 = arith.maximumf %435, %436 : vector<8x128xf32>
    %c80_212 = arith.constant 80 : index
    %c0_213 = arith.constant 0 : index
    %c0_214 = arith.constant 0 : index
    %438 = vector.load %arg3[%c80_212, %c0_213, %c0_214] : memref<128x8x128xf32, #tpu.memory_space<vmem>>, vector<1x8x128xf32>
    %439 = vector.shape_cast %438 : vector<1x8x128xf32> to vector<8x128xf32>
    %440 = arith.mulf %439, %377 : vector<8x128xf32>
    %c81_215 = arith.constant 81 : index
    %c0_216 = arith.constant 0 : index
    %c0_217 = arith.constant 0 : index
    %441 = vector.load %arg3[%c81_215, %c0_216, %c0_217] : memref<128x8x128xf32, #tpu.memory_space<vmem>>, vector<1x8x128xf32>
    %442 = vector.shape_cast %441 : vector<1x8x128xf32> to vector<8x128xf32>
    %443 = arith.mulf %442, %397 : vector<8x128xf32>
    %444 = arith.addf %440, %443 : vector<8x128xf32>
    %c82_218 = arith.constant 82 : index
    %c0_219 = arith.constant 0 : index
    %c0_220 = arith.constant 0 : index
    %445 = vector.load %arg3[%c82_218, %c0_219, %c0_220] : memref<128x8x128xf32, #tpu.memory_space<vmem>>, vector<1x8x128xf32>
    %446 = vector.shape_cast %445 : vector<1x8x128xf32> to vector<8x128xf32>
    %447 = arith.mulf %446, %417 : vector<8x128xf32>
    %448 = arith.addf %444, %447 : vector<8x128xf32>
    %c83_221 = arith.constant 83 : index
    %c0_222 = arith.constant 0 : index
    %c0_223 = arith.constant 0 : index
    %449 = vector.load %arg3[%c83_221, %c0_222, %c0_223] : memref<128x8x128xf32, #tpu.memory_space<vmem>>, vector<1x8x128xf32>
    %450 = vector.shape_cast %449 : vector<1x8x128xf32> to vector<8x128xf32>
    %451 = arith.mulf %450, %437 : vector<8x128xf32>
    %452 = arith.addf %448, %451 : vector<8x128xf32>
    %c116_224 = arith.constant 116 : index
    %c0_225 = arith.constant 0 : index
    %c0_226 = arith.constant 0 : index
    %453 = vector.load %arg3[%c116_224, %c0_225, %c0_226] : memref<128x8x128xf32, #tpu.memory_space<vmem>>, vector<1x8x128xf32>
    %454 = vector.shape_cast %453 : vector<1x8x128xf32> to vector<8x128xf32>
    %455 = arith.addf %452, %454 : vector<8x128xf32>
    %456 = arith.mulf %17, %455 : vector<8x128xf32>
    %457 = arith.maximumf %455, %456 : vector<8x128xf32>
    %c84_227 = arith.constant 84 : index
    %c0_228 = arith.constant 0 : index
    %c0_229 = arith.constant 0 : index
    %458 = vector.load %arg3[%c84_227, %c0_228, %c0_229] : memref<128x8x128xf32, #tpu.memory_space<vmem>>, vector<1x8x128xf32>
    %459 = vector.shape_cast %458 : vector<1x8x128xf32> to vector<8x128xf32>
    %460 = arith.mulf %459, %377 : vector<8x128xf32>
    %c85_230 = arith.constant 85 : index
    %c0_231 = arith.constant 0 : index
    %c0_232 = arith.constant 0 : index
    %461 = vector.load %arg3[%c85_230, %c0_231, %c0_232] : memref<128x8x128xf32, #tpu.memory_space<vmem>>, vector<1x8x128xf32>
    %462 = vector.shape_cast %461 : vector<1x8x128xf32> to vector<8x128xf32>
    %463 = arith.mulf %462, %397 : vector<8x128xf32>
    %464 = arith.addf %460, %463 : vector<8x128xf32>
    %c86_233 = arith.constant 86 : index
    %c0_234 = arith.constant 0 : index
    %c0_235 = arith.constant 0 : index
    %465 = vector.load %arg3[%c86_233, %c0_234, %c0_235] : memref<128x8x128xf32, #tpu.memory_space<vmem>>, vector<1x8x128xf32>
    %466 = vector.shape_cast %465 : vector<1x8x128xf32> to vector<8x128xf32>
    %467 = arith.mulf %466, %417 : vector<8x128xf32>
    %468 = arith.addf %464, %467 : vector<8x128xf32>
    %c87_236 = arith.constant 87 : index
    %c0_237 = arith.constant 0 : index
    %c0_238 = arith.constant 0 : index
    %469 = vector.load %arg3[%c87_236, %c0_237, %c0_238] : memref<128x8x128xf32, #tpu.memory_space<vmem>>, vector<1x8x128xf32>
    %470 = vector.shape_cast %469 : vector<1x8x128xf32> to vector<8x128xf32>
    %471 = arith.mulf %470, %437 : vector<8x128xf32>
    %472 = arith.addf %468, %471 : vector<8x128xf32>
    %c117_239 = arith.constant 117 : index
    %c0_240 = arith.constant 0 : index
    %c0_241 = arith.constant 0 : index
    %473 = vector.load %arg3[%c117_239, %c0_240, %c0_241] : memref<128x8x128xf32, #tpu.memory_space<vmem>>, vector<1x8x128xf32>
    %474 = vector.shape_cast %473 : vector<1x8x128xf32> to vector<8x128xf32>
    %475 = arith.addf %472, %474 : vector<8x128xf32>
    %476 = arith.mulf %17, %475 : vector<8x128xf32>
    %477 = arith.maximumf %475, %476 : vector<8x128xf32>
    %c88_242 = arith.constant 88 : index
    %c0_243 = arith.constant 0 : index
    %c0_244 = arith.constant 0 : index
    %478 = vector.load %arg3[%c88_242, %c0_243, %c0_244] : memref<128x8x128xf32, #tpu.memory_space<vmem>>, vector<1x8x128xf32>
    %479 = vector.shape_cast %478 : vector<1x8x128xf32> to vector<8x128xf32>
    %480 = arith.mulf %479, %377 : vector<8x128xf32>
    %c89_245 = arith.constant 89 : index
    %c0_246 = arith.constant 0 : index
    %c0_247 = arith.constant 0 : index
    %481 = vector.load %arg3[%c89_245, %c0_246, %c0_247] : memref<128x8x128xf32, #tpu.memory_space<vmem>>, vector<1x8x128xf32>
    %482 = vector.shape_cast %481 : vector<1x8x128xf32> to vector<8x128xf32>
    %483 = arith.mulf %482, %397 : vector<8x128xf32>
    %484 = arith.addf %480, %483 : vector<8x128xf32>
    %c90_248 = arith.constant 90 : index
    %c0_249 = arith.constant 0 : index
    %c0_250 = arith.constant 0 : index
    %485 = vector.load %arg3[%c90_248, %c0_249, %c0_250] : memref<128x8x128xf32, #tpu.memory_space<vmem>>, vector<1x8x128xf32>
    %486 = vector.shape_cast %485 : vector<1x8x128xf32> to vector<8x128xf32>
    %487 = arith.mulf %486, %417 : vector<8x128xf32>
    %488 = arith.addf %484, %487 : vector<8x128xf32>
    %c91_251 = arith.constant 91 : index
    %c0_252 = arith.constant 0 : index
    %c0_253 = arith.constant 0 : index
    %489 = vector.load %arg3[%c91_251, %c0_252, %c0_253] : memref<128x8x128xf32, #tpu.memory_space<vmem>>, vector<1x8x128xf32>
    %490 = vector.shape_cast %489 : vector<1x8x128xf32> to vector<8x128xf32>
    %491 = arith.mulf %490, %437 : vector<8x128xf32>
    %492 = arith.addf %488, %491 : vector<8x128xf32>
    %c118_254 = arith.constant 118 : index
    %c0_255 = arith.constant 0 : index
    %c0_256 = arith.constant 0 : index
    %493 = vector.load %arg3[%c118_254, %c0_255, %c0_256] : memref<128x8x128xf32, #tpu.memory_space<vmem>>, vector<1x8x128xf32>
    %494 = vector.shape_cast %493 : vector<1x8x128xf32> to vector<8x128xf32>
    %495 = arith.addf %492, %494 : vector<8x128xf32>
    %496 = arith.mulf %17, %495 : vector<8x128xf32>
    %497 = arith.maximumf %495, %496 : vector<8x128xf32>
    %c92_257 = arith.constant 92 : index
    %c0_258 = arith.constant 0 : index
    %c0_259 = arith.constant 0 : index
    %498 = vector.load %arg3[%c92_257, %c0_258, %c0_259] : memref<128x8x128xf32, #tpu.memory_space<vmem>>, vector<1x8x128xf32>
    %499 = vector.shape_cast %498 : vector<1x8x128xf32> to vector<8x128xf32>
    %500 = arith.mulf %499, %377 : vector<8x128xf32>
    %c93_260 = arith.constant 93 : index
    %c0_261 = arith.constant 0 : index
    %c0_262 = arith.constant 0 : index
    %501 = vector.load %arg3[%c93_260, %c0_261, %c0_262] : memref<128x8x128xf32, #tpu.memory_space<vmem>>, vector<1x8x128xf32>
    %502 = vector.shape_cast %501 : vector<1x8x128xf32> to vector<8x128xf32>
    %503 = arith.mulf %502, %397 : vector<8x128xf32>
    %504 = arith.addf %500, %503 : vector<8x128xf32>
    %c94_263 = arith.constant 94 : index
    %c0_264 = arith.constant 0 : index
    %c0_265 = arith.constant 0 : index
    %505 = vector.load %arg3[%c94_263, %c0_264, %c0_265] : memref<128x8x128xf32, #tpu.memory_space<vmem>>, vector<1x8x128xf32>
    %506 = vector.shape_cast %505 : vector<1x8x128xf32> to vector<8x128xf32>
    %507 = arith.mulf %506, %417 : vector<8x128xf32>
    %508 = arith.addf %504, %507 : vector<8x128xf32>
    %c95_266 = arith.constant 95 : index
    %c0_267 = arith.constant 0 : index
    %c0_268 = arith.constant 0 : index
    %509 = vector.load %arg3[%c95_266, %c0_267, %c0_268] : memref<128x8x128xf32, #tpu.memory_space<vmem>>, vector<1x8x128xf32>
    %510 = vector.shape_cast %509 : vector<1x8x128xf32> to vector<8x128xf32>
    %511 = arith.mulf %510, %437 : vector<8x128xf32>
    %512 = arith.addf %508, %511 : vector<8x128xf32>
    %c119_269 = arith.constant 119 : index
    %c0_270 = arith.constant 0 : index
    %c0_271 = arith.constant 0 : index
    %513 = vector.load %arg3[%c119_269, %c0_270, %c0_271] : memref<128x8x128xf32, #tpu.memory_space<vmem>>, vector<1x8x128xf32>
    %514 = vector.shape_cast %513 : vector<1x8x128xf32> to vector<8x128xf32>
    %515 = arith.addf %512, %514 : vector<8x128xf32>
    %516 = arith.mulf %17, %515 : vector<8x128xf32>
    %517 = arith.maximumf %515, %516 : vector<8x128xf32>
    %c96_272 = arith.constant 96 : index
    %c0_273 = arith.constant 0 : index
    %c0_274 = arith.constant 0 : index
    %518 = vector.load %arg3[%c96_272, %c0_273, %c0_274] : memref<128x8x128xf32, #tpu.memory_space<vmem>>, vector<1x8x128xf32>
    %519 = vector.shape_cast %518 : vector<1x8x128xf32> to vector<8x128xf32>
    %520 = arith.mulf %519, %377 : vector<8x128xf32>
    %c97_275 = arith.constant 97 : index
    %c0_276 = arith.constant 0 : index
    %c0_277 = arith.constant 0 : index
    %521 = vector.load %arg3[%c97_275, %c0_276, %c0_277] : memref<128x8x128xf32, #tpu.memory_space<vmem>>, vector<1x8x128xf32>
    %522 = vector.shape_cast %521 : vector<1x8x128xf32> to vector<8x128xf32>
    %523 = arith.mulf %522, %397 : vector<8x128xf32>
    %524 = arith.addf %520, %523 : vector<8x128xf32>
    %c98_278 = arith.constant 98 : index
    %c0_279 = arith.constant 0 : index
    %c0_280 = arith.constant 0 : index
    %525 = vector.load %arg3[%c98_278, %c0_279, %c0_280] : memref<128x8x128xf32, #tpu.memory_space<vmem>>, vector<1x8x128xf32>
    %526 = vector.shape_cast %525 : vector<1x8x128xf32> to vector<8x128xf32>
    %527 = arith.mulf %526, %417 : vector<8x128xf32>
    %528 = arith.addf %524, %527 : vector<8x128xf32>
    %c99_281 = arith.constant 99 : index
    %c0_282 = arith.constant 0 : index
    %c0_283 = arith.constant 0 : index
    %529 = vector.load %arg3[%c99_281, %c0_282, %c0_283] : memref<128x8x128xf32, #tpu.memory_space<vmem>>, vector<1x8x128xf32>
    %530 = vector.shape_cast %529 : vector<1x8x128xf32> to vector<8x128xf32>
    %531 = arith.mulf %530, %437 : vector<8x128xf32>
    %532 = arith.addf %528, %531 : vector<8x128xf32>
    %c120_284 = arith.constant 120 : index
    %c0_285 = arith.constant 0 : index
    %c0_286 = arith.constant 0 : index
    %533 = vector.load %arg3[%c120_284, %c0_285, %c0_286] : memref<128x8x128xf32, #tpu.memory_space<vmem>>, vector<1x8x128xf32>
    %534 = vector.shape_cast %533 : vector<1x8x128xf32> to vector<8x128xf32>
    %535 = arith.addf %532, %534 : vector<8x128xf32>
    %536 = arith.mulf %17, %535 : vector<8x128xf32>
    %537 = arith.maximumf %535, %536 : vector<8x128xf32>
    %c100_287 = arith.constant 100 : index
    %c0_288 = arith.constant 0 : index
    %c0_289 = arith.constant 0 : index
    %538 = vector.load %arg3[%c100_287, %c0_288, %c0_289] : memref<128x8x128xf32, #tpu.memory_space<vmem>>, vector<1x8x128xf32>
    %539 = vector.shape_cast %538 : vector<1x8x128xf32> to vector<8x128xf32>
    %540 = arith.mulf %539, %377 : vector<8x128xf32>
    %c101_290 = arith.constant 101 : index
    %c0_291 = arith.constant 0 : index
    %c0_292 = arith.constant 0 : index
    %541 = vector.load %arg3[%c101_290, %c0_291, %c0_292] : memref<128x8x128xf32, #tpu.memory_space<vmem>>, vector<1x8x128xf32>
    %542 = vector.shape_cast %541 : vector<1x8x128xf32> to vector<8x128xf32>
    %543 = arith.mulf %542, %397 : vector<8x128xf32>
    %544 = arith.addf %540, %543 : vector<8x128xf32>
    %c102_293 = arith.constant 102 : index
    %c0_294 = arith.constant 0 : index
    %c0_295 = arith.constant 0 : index
    %545 = vector.load %arg3[%c102_293, %c0_294, %c0_295] : memref<128x8x128xf32, #tpu.memory_space<vmem>>, vector<1x8x128xf32>
    %546 = vector.shape_cast %545 : vector<1x8x128xf32> to vector<8x128xf32>
    %547 = arith.mulf %546, %417 : vector<8x128xf32>
    %548 = arith.addf %544, %547 : vector<8x128xf32>
    %c103_296 = arith.constant 103 : index
    %c0_297 = arith.constant 0 : index
    %c0_298 = arith.constant 0 : index
    %549 = vector.load %arg3[%c103_296, %c0_297, %c0_298] : memref<128x8x128xf32, #tpu.memory_space<vmem>>, vector<1x8x128xf32>
    %550 = vector.shape_cast %549 : vector<1x8x128xf32> to vector<8x128xf32>
    %551 = arith.mulf %550, %437 : vector<8x128xf32>
    %552 = arith.addf %548, %551 : vector<8x128xf32>
    %c121_299 = arith.constant 121 : index
    %c0_300 = arith.constant 0 : index
    %c0_301 = arith.constant 0 : index
    %553 = vector.load %arg3[%c121_299, %c0_300, %c0_301] : memref<128x8x128xf32, #tpu.memory_space<vmem>>, vector<1x8x128xf32>
    %554 = vector.shape_cast %553 : vector<1x8x128xf32> to vector<8x128xf32>
    %555 = arith.addf %552, %554 : vector<8x128xf32>
    %556 = arith.mulf %17, %555 : vector<8x128xf32>
    %557 = arith.maximumf %555, %556 : vector<8x128xf32>
    %c104_302 = arith.constant 104 : index
    %c0_303 = arith.constant 0 : index
    %c0_304 = arith.constant 0 : index
    %558 = vector.load %arg3[%c104_302, %c0_303, %c0_304] : memref<128x8x128xf32, #tpu.memory_space<vmem>>, vector<1x8x128xf32>
    %559 = vector.shape_cast %558 : vector<1x8x128xf32> to vector<8x128xf32>
    %560 = arith.mulf %559, %377 : vector<8x128xf32>
    %c105_305 = arith.constant 105 : index
    %c0_306 = arith.constant 0 : index
    %c0_307 = arith.constant 0 : index
    %561 = vector.load %arg3[%c105_305, %c0_306, %c0_307] : memref<128x8x128xf32, #tpu.memory_space<vmem>>, vector<1x8x128xf32>
    %562 = vector.shape_cast %561 : vector<1x8x128xf32> to vector<8x128xf32>
    %563 = arith.mulf %562, %397 : vector<8x128xf32>
    %564 = arith.addf %560, %563 : vector<8x128xf32>
    %c106_308 = arith.constant 106 : index
    %c0_309 = arith.constant 0 : index
    %c0_310 = arith.constant 0 : index
    %565 = vector.load %arg3[%c106_308, %c0_309, %c0_310] : memref<128x8x128xf32, #tpu.memory_space<vmem>>, vector<1x8x128xf32>
    %566 = vector.shape_cast %565 : vector<1x8x128xf32> to vector<8x128xf32>
    %567 = arith.mulf %566, %417 : vector<8x128xf32>
    %568 = arith.addf %564, %567 : vector<8x128xf32>
    %c107_311 = arith.constant 107 : index
    %c0_312 = arith.constant 0 : index
    %c0_313 = arith.constant 0 : index
    %569 = vector.load %arg3[%c107_311, %c0_312, %c0_313] : memref<128x8x128xf32, #tpu.memory_space<vmem>>, vector<1x8x128xf32>
    %570 = vector.shape_cast %569 : vector<1x8x128xf32> to vector<8x128xf32>
    %571 = arith.mulf %570, %437 : vector<8x128xf32>
    %572 = arith.addf %568, %571 : vector<8x128xf32>
    %c122_314 = arith.constant 122 : index
    %c0_315 = arith.constant 0 : index
    %c0_316 = arith.constant 0 : index
    %573 = vector.load %arg3[%c122_314, %c0_315, %c0_316] : memref<128x8x128xf32, #tpu.memory_space<vmem>>, vector<1x8x128xf32>
    %574 = vector.shape_cast %573 : vector<1x8x128xf32> to vector<8x128xf32>
    %575 = arith.addf %572, %574 : vector<8x128xf32>
    %576 = arith.mulf %17, %575 : vector<8x128xf32>
    %577 = arith.maximumf %575, %576 : vector<8x128xf32>
    %c108_317 = arith.constant 108 : index
    %c0_318 = arith.constant 0 : index
    %c0_319 = arith.constant 0 : index
    %578 = vector.load %arg3[%c108_317, %c0_318, %c0_319] : memref<128x8x128xf32, #tpu.memory_space<vmem>>, vector<1x8x128xf32>
    %579 = vector.shape_cast %578 : vector<1x8x128xf32> to vector<8x128xf32>
    %580 = arith.mulf %579, %377 : vector<8x128xf32>
    %c109_320 = arith.constant 109 : index
    %c0_321 = arith.constant 0 : index
    %c0_322 = arith.constant 0 : index
    %581 = vector.load %arg3[%c109_320, %c0_321, %c0_322] : memref<128x8x128xf32, #tpu.memory_space<vmem>>, vector<1x8x128xf32>
    %582 = vector.shape_cast %581 : vector<1x8x128xf32> to vector<8x128xf32>
    %583 = arith.mulf %582, %397 : vector<8x128xf32>
    %584 = arith.addf %580, %583 : vector<8x128xf32>
    %c110_323 = arith.constant 110 : index
    %c0_324 = arith.constant 0 : index
    %c0_325 = arith.constant 0 : index
    %585 = vector.load %arg3[%c110_323, %c0_324, %c0_325] : memref<128x8x128xf32, #tpu.memory_space<vmem>>, vector<1x8x128xf32>
    %586 = vector.shape_cast %585 : vector<1x8x128xf32> to vector<8x128xf32>
    %587 = arith.mulf %586, %417 : vector<8x128xf32>
    %588 = arith.addf %584, %587 : vector<8x128xf32>
    %c111_326 = arith.constant 111 : index
    %c0_327 = arith.constant 0 : index
    %c0_328 = arith.constant 0 : index
    %589 = vector.load %arg3[%c111_326, %c0_327, %c0_328] : memref<128x8x128xf32, #tpu.memory_space<vmem>>, vector<1x8x128xf32>
    %590 = vector.shape_cast %589 : vector<1x8x128xf32> to vector<8x128xf32>
    %591 = arith.mulf %590, %437 : vector<8x128xf32>
    %592 = arith.addf %588, %591 : vector<8x128xf32>
    %c123_329 = arith.constant 123 : index
    %c0_330 = arith.constant 0 : index
    %c0_331 = arith.constant 0 : index
    %593 = vector.load %arg3[%c123_329, %c0_330, %c0_331] : memref<128x8x128xf32, #tpu.memory_space<vmem>>, vector<1x8x128xf32>
    %594 = vector.shape_cast %593 : vector<1x8x128xf32> to vector<8x128xf32>
    %595 = arith.addf %592, %594 : vector<8x128xf32>
    %596 = arith.mulf %17, %595 : vector<8x128xf32>
    %597 = arith.maximumf %595, %596 : vector<8x128xf32>
    %c112_332 = arith.constant 112 : index
    %c0_333 = arith.constant 0 : index
    %c0_334 = arith.constant 0 : index
    %598 = vector.load %arg3[%c112_332, %c0_333, %c0_334] : memref<128x8x128xf32, #tpu.memory_space<vmem>>, vector<1x8x128xf32>
    %599 = vector.shape_cast %598 : vector<1x8x128xf32> to vector<8x128xf32>
    %600 = arith.mulf %599, %377 : vector<8x128xf32>
    %c113_335 = arith.constant 113 : index
    %c0_336 = arith.constant 0 : index
    %c0_337 = arith.constant 0 : index
    %601 = vector.load %arg3[%c113_335, %c0_336, %c0_337] : memref<128x8x128xf32, #tpu.memory_space<vmem>>, vector<1x8x128xf32>
    %602 = vector.shape_cast %601 : vector<1x8x128xf32> to vector<8x128xf32>
    %603 = arith.mulf %602, %397 : vector<8x128xf32>
    %604 = arith.addf %600, %603 : vector<8x128xf32>
    %c114_338 = arith.constant 114 : index
    %c0_339 = arith.constant 0 : index
    %c0_340 = arith.constant 0 : index
    %605 = vector.load %arg3[%c114_338, %c0_339, %c0_340] : memref<128x8x128xf32, #tpu.memory_space<vmem>>, vector<1x8x128xf32>
    %606 = vector.shape_cast %605 : vector<1x8x128xf32> to vector<8x128xf32>
    %607 = arith.mulf %606, %417 : vector<8x128xf32>
    %608 = arith.addf %604, %607 : vector<8x128xf32>
    %c115_341 = arith.constant 115 : index
    %c0_342 = arith.constant 0 : index
    %c0_343 = arith.constant 0 : index
    %609 = vector.load %arg3[%c115_341, %c0_342, %c0_343] : memref<128x8x128xf32, #tpu.memory_space<vmem>>, vector<1x8x128xf32>
    %610 = vector.shape_cast %609 : vector<1x8x128xf32> to vector<8x128xf32>
    %611 = arith.mulf %610, %437 : vector<8x128xf32>
    %612 = arith.addf %608, %611 : vector<8x128xf32>
    %c124_344 = arith.constant 124 : index
    %c0_345 = arith.constant 0 : index
    %c0_346 = arith.constant 0 : index
    %613 = vector.load %arg3[%c124_344, %c0_345, %c0_346] : memref<128x8x128xf32, #tpu.memory_space<vmem>>, vector<1x8x128xf32>
    %614 = vector.shape_cast %613 : vector<1x8x128xf32> to vector<8x128xf32>
    %615 = arith.addf %612, %614 : vector<8x128xf32>
    %616 = arith.mulf %17, %615 : vector<8x128xf32>
    %617 = arith.maximumf %615, %616 : vector<8x128xf32>
    %618 = arith.maximumf %457, %477 : vector<8x128xf32>
    %619 = arith.maximumf %618, %497 : vector<8x128xf32>
    %620 = arith.maximumf %619, %517 : vector<8x128xf32>
    %621 = arith.maximumf %620, %537 : vector<8x128xf32>
    %622 = arith.maximumf %621, %557 : vector<8x128xf32>
    %623 = arith.maximumf %622, %577 : vector<8x128xf32>
    %624 = arith.maximumf %623, %597 : vector<8x128xf32>
    %625 = arith.maximumf %624, %617 : vector<8x128xf32>
    %626 = arith.subf %457, %625 : vector<8x128xf32>
    %627 = math.exp %626 : vector<8x128xf32>
    %628 = arith.subf %477, %625 : vector<8x128xf32>
    %629 = math.exp %628 : vector<8x128xf32>
    %630 = arith.subf %497, %625 : vector<8x128xf32>
    %631 = math.exp %630 : vector<8x128xf32>
    %632 = arith.subf %517, %625 : vector<8x128xf32>
    %633 = math.exp %632 : vector<8x128xf32>
    %634 = arith.subf %537, %625 : vector<8x128xf32>
    %635 = math.exp %634 : vector<8x128xf32>
    %636 = arith.subf %557, %625 : vector<8x128xf32>
    %637 = math.exp %636 : vector<8x128xf32>
    %638 = arith.subf %577, %625 : vector<8x128xf32>
    %639 = math.exp %638 : vector<8x128xf32>
    %640 = arith.subf %597, %625 : vector<8x128xf32>
    %641 = math.exp %640 : vector<8x128xf32>
    %642 = arith.subf %617, %625 : vector<8x128xf32>
    %643 = math.exp %642 : vector<8x128xf32>
    %644 = arith.addf %627, %629 : vector<8x128xf32>
    %645 = arith.addf %644, %631 : vector<8x128xf32>
    %646 = arith.addf %645, %633 : vector<8x128xf32>
    %647 = arith.addf %646, %635 : vector<8x128xf32>
    %648 = arith.addf %647, %637 : vector<8x128xf32>
    %649 = arith.addf %648, %639 : vector<8x128xf32>
    %650 = arith.addf %649, %641 : vector<8x128xf32>
    %651 = arith.addf %650, %643 : vector<8x128xf32>
    %652 = tpu.reciprocal %651 {approx = true} : vector<8x128xf32> -> vector<8x128xf32>
    %653 = arith.mulf %627, %652 : vector<8x128xf32>
    %c0_347 = arith.constant 0 : index
    %c9 = arith.constant 9 : index
    %654 = arith.index_cast %1 : i32 to index
    %c0_348 = arith.constant 0 : index
    %655 = vector.load %arg4[%c0_347, %c9, %654, %c0_348] : memref<1x36x8x128xf32, #tpu.memory_space<vmem>>, vector<1x1x8x128xf32>
    %656 = vector.shape_cast %655 : vector<1x1x8x128xf32> to vector<8x128xf32>
    %657 = vector.shape_cast %653 : vector<8x128xf32> to vector<1x1x8x128xf32>
    tpu.vector_store %arg4[%c0_347, %c9, %654, %c0_348], %657 {strides = array<i32>} : memref<1x36x8x128xf32, #tpu.memory_space<vmem>>, vector<1x1x8x128xf32>,
    %658 = arith.mulf %629, %652 : vector<8x128xf32>
    %c0_349 = arith.constant 0 : index
    %c10 = arith.constant 10 : index
    %659 = arith.index_cast %1 : i32 to index
    %c0_350 = arith.constant 0 : index
    %660 = vector.load %arg4[%c0_349, %c10, %659, %c0_350] : memref<1x36x8x128xf32, #tpu.memory_space<vmem>>, vector<1x1x8x128xf32>
    %661 = vector.shape_cast %660 : vector<1x1x8x128xf32> to vector<8x128xf32>
    %662 = vector.shape_cast %658 : vector<8x128xf32> to vector<1x1x8x128xf32>
    tpu.vector_store %arg4[%c0_349, %c10, %659, %c0_350], %662 {strides = array<i32>} : memref<1x36x8x128xf32, #tpu.memory_space<vmem>>, vector<1x1x8x128xf32>,
    %663 = arith.mulf %631, %652 : vector<8x128xf32>
    %c0_351 = arith.constant 0 : index
    %c11 = arith.constant 11 : index
    %664 = arith.index_cast %1 : i32 to index
    %c0_352 = arith.constant 0 : index
    %665 = vector.load %arg4[%c0_351, %c11, %664, %c0_352] : memref<1x36x8x128xf32, #tpu.memory_space<vmem>>, vector<1x1x8x128xf32>
    %666 = vector.shape_cast %665 : vector<1x1x8x128xf32> to vector<8x128xf32>
    %667 = vector.shape_cast %663 : vector<8x128xf32> to vector<1x1x8x128xf32>
    tpu.vector_store %arg4[%c0_351, %c11, %664, %c0_352], %667 {strides = array<i32>} : memref<1x36x8x128xf32, #tpu.memory_space<vmem>>, vector<1x1x8x128xf32>,
    %668 = arith.mulf %633, %652 : vector<8x128xf32>
    %c0_353 = arith.constant 0 : index
    %c12 = arith.constant 12 : index
    %669 = arith.index_cast %1 : i32 to index
    %c0_354 = arith.constant 0 : index
    %670 = vector.load %arg4[%c0_353, %c12, %669, %c0_354] : memref<1x36x8x128xf32, #tpu.memory_space<vmem>>, vector<1x1x8x128xf32>
    %671 = vector.shape_cast %670 : vector<1x1x8x128xf32> to vector<8x128xf32>
    %672 = vector.shape_cast %668 : vector<8x128xf32> to vector<1x1x8x128xf32>
    tpu.vector_store %arg4[%c0_353, %c12, %669, %c0_354], %672 {strides = array<i32>} : memref<1x36x8x128xf32, #tpu.memory_space<vmem>>, vector<1x1x8x128xf32>,
    %673 = arith.mulf %635, %652 : vector<8x128xf32>
    %c0_355 = arith.constant 0 : index
    %c13 = arith.constant 13 : index
    %674 = arith.index_cast %1 : i32 to index
    %c0_356 = arith.constant 0 : index
    %675 = vector.load %arg4[%c0_355, %c13, %674, %c0_356] : memref<1x36x8x128xf32, #tpu.memory_space<vmem>>, vector<1x1x8x128xf32>
    %676 = vector.shape_cast %675 : vector<1x1x8x128xf32> to vector<8x128xf32>
    %677 = vector.shape_cast %673 : vector<8x128xf32> to vector<1x1x8x128xf32>
    tpu.vector_store %arg4[%c0_355, %c13, %674, %c0_356], %677 {strides = array<i32>} : memref<1x36x8x128xf32, #tpu.memory_space<vmem>>, vector<1x1x8x128xf32>,
    %678 = arith.mulf %637, %652 : vector<8x128xf32>
    %c0_357 = arith.constant 0 : index
    %c14 = arith.constant 14 : index
    %679 = arith.index_cast %1 : i32 to index
    %c0_358 = arith.constant 0 : index
    %680 = vector.load %arg4[%c0_357, %c14, %679, %c0_358] : memref<1x36x8x128xf32, #tpu.memory_space<vmem>>, vector<1x1x8x128xf32>
    %681 = vector.shape_cast %680 : vector<1x1x8x128xf32> to vector<8x128xf32>
    %682 = vector.shape_cast %678 : vector<8x128xf32> to vector<1x1x8x128xf32>
    tpu.vector_store %arg4[%c0_357, %c14, %679, %c0_358], %682 {strides = array<i32>} : memref<1x36x8x128xf32, #tpu.memory_space<vmem>>, vector<1x1x8x128xf32>,
    %683 = arith.mulf %639, %652 : vector<8x128xf32>
    %c0_359 = arith.constant 0 : index
    %c15 = arith.constant 15 : index
    %684 = arith.index_cast %1 : i32 to index
    %c0_360 = arith.constant 0 : index
    %685 = vector.load %arg4[%c0_359, %c15, %684, %c0_360] : memref<1x36x8x128xf32, #tpu.memory_space<vmem>>, vector<1x1x8x128xf32>
    %686 = vector.shape_cast %685 : vector<1x1x8x128xf32> to vector<8x128xf32>
    %687 = vector.shape_cast %683 : vector<8x128xf32> to vector<1x1x8x128xf32>
    tpu.vector_store %arg4[%c0_359, %c15, %684, %c0_360], %687 {strides = array<i32>} : memref<1x36x8x128xf32, #tpu.memory_space<vmem>>, vector<1x1x8x128xf32>,
    %688 = arith.mulf %641, %652 : vector<8x128xf32>
    %c0_361 = arith.constant 0 : index
    %c16_362 = arith.constant 16 : index
    %689 = arith.index_cast %1 : i32 to index
    %c0_363 = arith.constant 0 : index
    %690 = vector.load %arg4[%c0_361, %c16_362, %689, %c0_363] : memref<1x36x8x128xf32, #tpu.memory_space<vmem>>, vector<1x1x8x128xf32>
    %691 = vector.shape_cast %690 : vector<1x1x8x128xf32> to vector<8x128xf32>
    %692 = vector.shape_cast %688 : vector<8x128xf32> to vector<1x1x8x128xf32>
    tpu.vector_store %arg4[%c0_361, %c16_362, %689, %c0_363], %692 {strides = array<i32>} : memref<1x36x8x128xf32, #tpu.memory_space<vmem>>, vector<1x1x8x128xf32>,
    %693 = arith.mulf %643, %652 : vector<8x128xf32>
    %c0_364 = arith.constant 0 : index
    %c17_365 = arith.constant 17 : index
    %694 = arith.index_cast %1 : i32 to index
    %c0_366 = arith.constant 0 : index
    %695 = vector.load %arg4[%c0_364, %c17_365, %694, %c0_366] : memref<1x36x8x128xf32, #tpu.memory_space<vmem>>, vector<1x1x8x128xf32>
    %696 = vector.shape_cast %695 : vector<1x1x8x128xf32> to vector<8x128xf32>
    %697 = vector.shape_cast %693 : vector<8x128xf32> to vector<1x1x8x128xf32>
    tpu.vector_store %arg4[%c0_364, %c17_365, %694, %c0_366], %697 {strides = array<i32>} : memref<1x36x8x128xf32, #tpu.memory_space<vmem>>, vector<1x1x8x128xf32>,
    %c8_367 = arith.constant 8 : index
    %c0_368 = arith.constant 0 : index
    %c0_369 = arith.constant 0 : index
    %698 = vector.load %arg3[%c8_367, %c0_368, %c0_369] : memref<128x8x128xf32, #tpu.memory_space<vmem>>, vector<1x8x128xf32>
    %699 = vector.shape_cast %698 : vector<1x8x128xf32> to vector<8x128xf32>
    %700 = arith.mulf %699, %4 : vector<8x128xf32>
    %c9_370 = arith.constant 9 : index
    %c0_371 = arith.constant 0 : index
    %c0_372 = arith.constant 0 : index
    %701 = vector.load %arg3[%c9_370, %c0_371, %c0_372] : memref<128x8x128xf32, #tpu.memory_space<vmem>>, vector<1x8x128xf32>
    %702 = vector.shape_cast %701 : vector<1x8x128xf32> to vector<8x128xf32>
    %703 = arith.mulf %702, %7 : vector<8x128xf32>
    %704 = arith.addf %700, %703 : vector<8x128xf32>
    %c10_373 = arith.constant 10 : index
    %c0_374 = arith.constant 0 : index
    %c0_375 = arith.constant 0 : index
    %705 = vector.load %arg3[%c10_373, %c0_374, %c0_375] : memref<128x8x128xf32, #tpu.memory_space<vmem>>, vector<1x8x128xf32>
    %706 = vector.shape_cast %705 : vector<1x8x128xf32> to vector<8x128xf32>
    %707 = arith.mulf %706, %10 : vector<8x128xf32>
    %708 = arith.addf %704, %707 : vector<8x128xf32>
    %c11_376 = arith.constant 11 : index
    %c0_377 = arith.constant 0 : index
    %c0_378 = arith.constant 0 : index
    %709 = vector.load %arg3[%c11_376, %c0_377, %c0_378] : memref<128x8x128xf32, #tpu.memory_space<vmem>>, vector<1x8x128xf32>
    %710 = vector.shape_cast %709 : vector<1x8x128xf32> to vector<8x128xf32>
    %711 = arith.mulf %710, %13 : vector<8x128xf32>
    %712 = arith.addf %708, %711 : vector<8x128xf32>
    %c66 = arith.constant 66 : index
    %c0_379 = arith.constant 0 : index
    %c0_380 = arith.constant 0 : index
    %713 = vector.load %arg3[%c66, %c0_379, %c0_380] : memref<128x8x128xf32, #tpu.memory_space<vmem>>, vector<1x8x128xf32>
    %714 = vector.shape_cast %713 : vector<1x8x128xf32> to vector<8x128xf32>
    %715 = arith.addf %712, %714 : vector<8x128xf32>
    %716 = arith.mulf %15, %715 : vector<8x128xf32>
    %717 = arith.maximumf %715, %716 : vector<8x128xf32>
    %c24 = arith.constant 24 : index
    %c0_381 = arith.constant 0 : index
    %c0_382 = arith.constant 0 : index
    %718 = vector.load %arg3[%c24, %c0_381, %c0_382] : memref<128x8x128xf32, #tpu.memory_space<vmem>>, vector<1x8x128xf32>
    %719 = vector.shape_cast %718 : vector<1x8x128xf32> to vector<8x128xf32>
    %720 = arith.mulf %719, %4 : vector<8x128xf32>
    %c25 = arith.constant 25 : index
    %c0_383 = arith.constant 0 : index
    %c0_384 = arith.constant 0 : index
    %721 = vector.load %arg3[%c25, %c0_383, %c0_384] : memref<128x8x128xf32, #tpu.memory_space<vmem>>, vector<1x8x128xf32>
    %722 = vector.shape_cast %721 : vector<1x8x128xf32> to vector<8x128xf32>
    %723 = arith.mulf %722, %7 : vector<8x128xf32>
    %724 = arith.addf %720, %723 : vector<8x128xf32>
    %c26 = arith.constant 26 : index
    %c0_385 = arith.constant 0 : index
    %c0_386 = arith.constant 0 : index
    %725 = vector.load %arg3[%c26, %c0_385, %c0_386] : memref<128x8x128xf32, #tpu.memory_space<vmem>>, vector<1x8x128xf32>
    %726 = vector.shape_cast %725 : vector<1x8x128xf32> to vector<8x128xf32>
    %727 = arith.mulf %726, %10 : vector<8x128xf32>
    %728 = arith.addf %724, %727 : vector<8x128xf32>
    %c27 = arith.constant 27 : index
    %c0_387 = arith.constant 0 : index
    %c0_388 = arith.constant 0 : index
    %729 = vector.load %arg3[%c27, %c0_387, %c0_388] : memref<128x8x128xf32, #tpu.memory_space<vmem>>, vector<1x8x128xf32>
    %730 = vector.shape_cast %729 : vector<1x8x128xf32> to vector<8x128xf32>
    %731 = arith.mulf %730, %13 : vector<8x128xf32>
    %732 = arith.addf %728, %731 : vector<8x128xf32>
    %c70 = arith.constant 70 : index
    %c0_389 = arith.constant 0 : index
    %c0_390 = arith.constant 0 : index
    %733 = vector.load %arg3[%c70, %c0_389, %c0_390] : memref<128x8x128xf32, #tpu.memory_space<vmem>>, vector<1x8x128xf32>
    %734 = vector.shape_cast %733 : vector<1x8x128xf32> to vector<8x128xf32>
    %735 = arith.addf %732, %734 : vector<8x128xf32>
    %736 = arith.mulf %15, %735 : vector<8x128xf32>
    %737 = arith.maximumf %735, %736 : vector<8x128xf32>
    %c40 = arith.constant 40 : index
    %c0_391 = arith.constant 0 : index
    %c0_392 = arith.constant 0 : index
    %738 = vector.load %arg3[%c40, %c0_391, %c0_392] : memref<128x8x128xf32, #tpu.memory_space<vmem>>, vector<1x8x128xf32>
    %739 = vector.shape_cast %738 : vector<1x8x128xf32> to vector<8x128xf32>
    %740 = arith.mulf %739, %4 : vector<8x128xf32>
    %c41 = arith.constant 41 : index
    %c0_393 = arith.constant 0 : index
    %c0_394 = arith.constant 0 : index
    %741 = vector.load %arg3[%c41, %c0_393, %c0_394] : memref<128x8x128xf32, #tpu.memory_space<vmem>>, vector<1x8x128xf32>
    %742 = vector.shape_cast %741 : vector<1x8x128xf32> to vector<8x128xf32>
    %743 = arith.mulf %742, %7 : vector<8x128xf32>
    %744 = arith.addf %740, %743 : vector<8x128xf32>
    %c42 = arith.constant 42 : index
    %c0_395 = arith.constant 0 : index
    %c0_396 = arith.constant 0 : index
    %745 = vector.load %arg3[%c42, %c0_395, %c0_396] : memref<128x8x128xf32, #tpu.memory_space<vmem>>, vector<1x8x128xf32>
    %746 = vector.shape_cast %745 : vector<1x8x128xf32> to vector<8x128xf32>
    %747 = arith.mulf %746, %10 : vector<8x128xf32>
    %748 = arith.addf %744, %747 : vector<8x128xf32>
    %c43 = arith.constant 43 : index
    %c0_397 = arith.constant 0 : index
    %c0_398 = arith.constant 0 : index
    %749 = vector.load %arg3[%c43, %c0_397, %c0_398] : memref<128x8x128xf32, #tpu.memory_space<vmem>>, vector<1x8x128xf32>
    %750 = vector.shape_cast %749 : vector<1x8x128xf32> to vector<8x128xf32>
    %751 = arith.mulf %750, %13 : vector<8x128xf32>
    %752 = arith.addf %748, %751 : vector<8x128xf32>
    %c74 = arith.constant 74 : index
    %c0_399 = arith.constant 0 : index
    %c0_400 = arith.constant 0 : index
    %753 = vector.load %arg3[%c74, %c0_399, %c0_400] : memref<128x8x128xf32, #tpu.memory_space<vmem>>, vector<1x8x128xf32>
    %754 = vector.shape_cast %753 : vector<1x8x128xf32> to vector<8x128xf32>
    %755 = arith.addf %752, %754 : vector<8x128xf32>
    %756 = arith.mulf %15, %755 : vector<8x128xf32>
    %757 = arith.maximumf %755, %756 : vector<8x128xf32>
    %c56 = arith.constant 56 : index
    %c0_401 = arith.constant 0 : index
    %c0_402 = arith.constant 0 : index
    %758 = vector.load %arg3[%c56, %c0_401, %c0_402] : memref<128x8x128xf32, #tpu.memory_space<vmem>>, vector<1x8x128xf32>
    %759 = vector.shape_cast %758 : vector<1x8x128xf32> to vector<8x128xf32>
    %760 = arith.mulf %759, %4 : vector<8x128xf32>
    %c57 = arith.constant 57 : index
    %c0_403 = arith.constant 0 : index
    %c0_404 = arith.constant 0 : index
    %761 = vector.load %arg3[%c57, %c0_403, %c0_404] : memref<128x8x128xf32, #tpu.memory_space<vmem>>, vector<1x8x128xf32>
    %762 = vector.shape_cast %761 : vector<1x8x128xf32> to vector<8x128xf32>
    %763 = arith.mulf %762, %7 : vector<8x128xf32>
    %764 = arith.addf %760, %763 : vector<8x128xf32>
    %c58 = arith.constant 58 : index
    %c0_405 = arith.constant 0 : index
    %c0_406 = arith.constant 0 : index
    %765 = vector.load %arg3[%c58, %c0_405, %c0_406] : memref<128x8x128xf32, #tpu.memory_space<vmem>>, vector<1x8x128xf32>
    %766 = vector.shape_cast %765 : vector<1x8x128xf32> to vector<8x128xf32>
    %767 = arith.mulf %766, %10 : vector<8x128xf32>
    %768 = arith.addf %764, %767 : vector<8x128xf32>
    %c59 = arith.constant 59 : index
    %c0_407 = arith.constant 0 : index
    %c0_408 = arith.constant 0 : index
    %769 = vector.load %arg3[%c59, %c0_407, %c0_408] : memref<128x8x128xf32, #tpu.memory_space<vmem>>, vector<1x8x128xf32>
    %770 = vector.shape_cast %769 : vector<1x8x128xf32> to vector<8x128xf32>
    %771 = arith.mulf %770, %13 : vector<8x128xf32>
    %772 = arith.addf %768, %771 : vector<8x128xf32>
    %c78 = arith.constant 78 : index
    %c0_409 = arith.constant 0 : index
    %c0_410 = arith.constant 0 : index
    %773 = vector.load %arg3[%c78, %c0_409, %c0_410] : memref<128x8x128xf32, #tpu.memory_space<vmem>>, vector<1x8x128xf32>
    %774 = vector.shape_cast %773 : vector<1x8x128xf32> to vector<8x128xf32>
    %775 = arith.addf %772, %774 : vector<8x128xf32>
    %776 = arith.mulf %15, %775 : vector<8x128xf32>
    %777 = arith.maximumf %775, %776 : vector<8x128xf32>
    %c80_411 = arith.constant 80 : index
    %c0_412 = arith.constant 0 : index
    %c0_413 = arith.constant 0 : index
    %778 = vector.load %arg3[%c80_411, %c0_412, %c0_413] : memref<128x8x128xf32, #tpu.memory_space<vmem>>, vector<1x8x128xf32>
    %779 = vector.shape_cast %778 : vector<1x8x128xf32> to vector<8x128xf32>
    %780 = arith.mulf %779, %717 : vector<8x128xf32>
    %c81_414 = arith.constant 81 : index
    %c0_415 = arith.constant 0 : index
    %c0_416 = arith.constant 0 : index
    %781 = vector.load %arg3[%c81_414, %c0_415, %c0_416] : memref<128x8x128xf32, #tpu.memory_space<vmem>>, vector<1x8x128xf32>
    %782 = vector.shape_cast %781 : vector<1x8x128xf32> to vector<8x128xf32>
    %783 = arith.mulf %782, %737 : vector<8x128xf32>
    %784 = arith.addf %780, %783 : vector<8x128xf32>
    %c82_417 = arith.constant 82 : index
    %c0_418 = arith.constant 0 : index
    %c0_419 = arith.constant 0 : index
    %785 = vector.load %arg3[%c82_417, %c0_418, %c0_419] : memref<128x8x128xf32, #tpu.memory_space<vmem>>, vector<1x8x128xf32>
    %786 = vector.shape_cast %785 : vector<1x8x128xf32> to vector<8x128xf32>
    %787 = arith.mulf %786, %757 : vector<8x128xf32>
    %788 = arith.addf %784, %787 : vector<8x128xf32>
    %c83_420 = arith.constant 83 : index
    %c0_421 = arith.constant 0 : index
    %c0_422 = arith.constant 0 : index
    %789 = vector.load %arg3[%c83_420, %c0_421, %c0_422] : memref<128x8x128xf32, #tpu.memory_space<vmem>>, vector<1x8x128xf32>
    %790 = vector.shape_cast %789 : vector<1x8x128xf32> to vector<8x128xf32>
    %791 = arith.mulf %790, %777 : vector<8x128xf32>
    %792 = arith.addf %788, %791 : vector<8x128xf32>
    %c116_423 = arith.constant 116 : index
    %c0_424 = arith.constant 0 : index
    %c0_425 = arith.constant 0 : index
    %793 = vector.load %arg3[%c116_423, %c0_424, %c0_425] : memref<128x8x128xf32, #tpu.memory_space<vmem>>, vector<1x8x128xf32>
    %794 = vector.shape_cast %793 : vector<1x8x128xf32> to vector<8x128xf32>
    %795 = arith.addf %792, %794 : vector<8x128xf32>
    %796 = arith.mulf %17, %795 : vector<8x128xf32>
    %797 = arith.maximumf %795, %796 : vector<8x128xf32>
    %c84_426 = arith.constant 84 : index
    %c0_427 = arith.constant 0 : index
    %c0_428 = arith.constant 0 : index
    %798 = vector.load %arg3[%c84_426, %c0_427, %c0_428] : memref<128x8x128xf32, #tpu.memory_space<vmem>>, vector<1x8x128xf32>
    %799 = vector.shape_cast %798 : vector<1x8x128xf32> to vector<8x128xf32>
    %800 = arith.mulf %799, %717 : vector<8x128xf32>
    %c85_429 = arith.constant 85 : index
    %c0_430 = arith.constant 0 : index
    %c0_431 = arith.constant 0 : index
    %801 = vector.load %arg3[%c85_429, %c0_430, %c0_431] : memref<128x8x128xf32, #tpu.memory_space<vmem>>, vector<1x8x128xf32>
    %802 = vector.shape_cast %801 : vector<1x8x128xf32> to vector<8x128xf32>
    %803 = arith.mulf %802, %737 : vector<8x128xf32>
    %804 = arith.addf %800, %803 : vector<8x128xf32>
    %c86_432 = arith.constant 86 : index
    %c0_433 = arith.constant 0 : index
    %c0_434 = arith.constant 0 : index
    %805 = vector.load %arg3[%c86_432, %c0_433, %c0_434] : memref<128x8x128xf32, #tpu.memory_space<vmem>>, vector<1x8x128xf32>
    %806 = vector.shape_cast %805 : vector<1x8x128xf32> to vector<8x128xf32>
    %807 = arith.mulf %806, %757 : vector<8x128xf32>
    %808 = arith.addf %804, %807 : vector<8x128xf32>
    %c87_435 = arith.constant 87 : index
    %c0_436 = arith.constant 0 : index
    %c0_437 = arith.constant 0 : index
    %809 = vector.load %arg3[%c87_435, %c0_436, %c0_437] : memref<128x8x128xf32, #tpu.memory_space<vmem>>, vector<1x8x128xf32>
    %810 = vector.shape_cast %809 : vector<1x8x128xf32> to vector<8x128xf32>
    %811 = arith.mulf %810, %777 : vector<8x128xf32>
    %812 = arith.addf %808, %811 : vector<8x128xf32>
    %c117_438 = arith.constant 117 : index
    %c0_439 = arith.constant 0 : index
    %c0_440 = arith.constant 0 : index
    %813 = vector.load %arg3[%c117_438, %c0_439, %c0_440] : memref<128x8x128xf32, #tpu.memory_space<vmem>>, vector<1x8x128xf32>
    %814 = vector.shape_cast %813 : vector<1x8x128xf32> to vector<8x128xf32>
    %815 = arith.addf %812, %814 : vector<8x128xf32>
    %816 = arith.mulf %17, %815 : vector<8x128xf32>
    %817 = arith.maximumf %815, %816 : vector<8x128xf32>
    %c88_441 = arith.constant 88 : index
    %c0_442 = arith.constant 0 : index
    %c0_443 = arith.constant 0 : index
    %818 = vector.load %arg3[%c88_441, %c0_442, %c0_443] : memref<128x8x128xf32, #tpu.memory_space<vmem>>, vector<1x8x128xf32>
    %819 = vector.shape_cast %818 : vector<1x8x128xf32> to vector<8x128xf32>
    %820 = arith.mulf %819, %717 : vector<8x128xf32>
    %c89_444 = arith.constant 89 : index
    %c0_445 = arith.constant 0 : index
    %c0_446 = arith.constant 0 : index
    %821 = vector.load %arg3[%c89_444, %c0_445, %c0_446] : memref<128x8x128xf32, #tpu.memory_space<vmem>>, vector<1x8x128xf32>
    %822 = vector.shape_cast %821 : vector<1x8x128xf32> to vector<8x128xf32>
    %823 = arith.mulf %822, %737 : vector<8x128xf32>
    %824 = arith.addf %820, %823 : vector<8x128xf32>
    %c90_447 = arith.constant 90 : index
    %c0_448 = arith.constant 0 : index
    %c0_449 = arith.constant 0 : index
    %825 = vector.load %arg3[%c90_447, %c0_448, %c0_449] : memref<128x8x128xf32, #tpu.memory_space<vmem>>, vector<1x8x128xf32>
    %826 = vector.shape_cast %825 : vector<1x8x128xf32> to vector<8x128xf32>
    %827 = arith.mulf %826, %757 : vector<8x128xf32>
    %828 = arith.addf %824, %827 : vector<8x128xf32>
    %c91_450 = arith.constant 91 : index
    %c0_451 = arith.constant 0 : index
    %c0_452 = arith.constant 0 : index
    %829 = vector.load %arg3[%c91_450, %c0_451, %c0_452] : memref<128x8x128xf32, #tpu.memory_space<vmem>>, vector<1x8x128xf32>
    %830 = vector.shape_cast %829 : vector<1x8x128xf32> to vector<8x128xf32>
    %831 = arith.mulf %830, %777 : vector<8x128xf32>
    %832 = arith.addf %828, %831 : vector<8x128xf32>
    %c118_453 = arith.constant 118 : index
    %c0_454 = arith.constant 0 : index
    %c0_455 = arith.constant 0 : index
    %833 = vector.load %arg3[%c118_453, %c0_454, %c0_455] : memref<128x8x128xf32, #tpu.memory_space<vmem>>, vector<1x8x128xf32>
    %834 = vector.shape_cast %833 : vector<1x8x128xf32> to vector<8x128xf32>
    %835 = arith.addf %832, %834 : vector<8x128xf32>
    %836 = arith.mulf %17, %835 : vector<8x128xf32>
    %837 = arith.maximumf %835, %836 : vector<8x128xf32>
    %c92_456 = arith.constant 92 : index
    %c0_457 = arith.constant 0 : index
    %c0_458 = arith.constant 0 : index
    %838 = vector.load %arg3[%c92_456, %c0_457, %c0_458] : memref<128x8x128xf32, #tpu.memory_space<vmem>>, vector<1x8x128xf32>
    %839 = vector.shape_cast %838 : vector<1x8x128xf32> to vector<8x128xf32>
    %840 = arith.mulf %839, %717 : vector<8x128xf32>
    %c93_459 = arith.constant 93 : index
    %c0_460 = arith.constant 0 : index
    %c0_461 = arith.constant 0 : index
    %841 = vector.load %arg3[%c93_459, %c0_460, %c0_461] : memref<128x8x128xf32, #tpu.memory_space<vmem>>, vector<1x8x128xf32>
    %842 = vector.shape_cast %841 : vector<1x8x128xf32> to vector<8x128xf32>
    %843 = arith.mulf %842, %737 : vector<8x128xf32>
    %844 = arith.addf %840, %843 : vector<8x128xf32>
    %c94_462 = arith.constant 94 : index
    %c0_463 = arith.constant 0 : index
    %c0_464 = arith.constant 0 : index
    %845 = vector.load %arg3[%c94_462, %c0_463, %c0_464] : memref<128x8x128xf32, #tpu.memory_space<vmem>>, vector<1x8x128xf32>
    %846 = vector.shape_cast %845 : vector<1x8x128xf32> to vector<8x128xf32>
    %847 = arith.mulf %846, %757 : vector<8x128xf32>
    %848 = arith.addf %844, %847 : vector<8x128xf32>
    %c95_465 = arith.constant 95 : index
    %c0_466 = arith.constant 0 : index
    %c0_467 = arith.constant 0 : index
    %849 = vector.load %arg3[%c95_465, %c0_466, %c0_467] : memref<128x8x128xf32, #tpu.memory_space<vmem>>, vector<1x8x128xf32>
    %850 = vector.shape_cast %849 : vector<1x8x128xf32> to vector<8x128xf32>
    %851 = arith.mulf %850, %777 : vector<8x128xf32>
    %852 = arith.addf %848, %851 : vector<8x128xf32>
    %c119_468 = arith.constant 119 : index
    %c0_469 = arith.constant 0 : index
    %c0_470 = arith.constant 0 : index
    %853 = vector.load %arg3[%c119_468, %c0_469, %c0_470] : memref<128x8x128xf32, #tpu.memory_space<vmem>>, vector<1x8x128xf32>
    %854 = vector.shape_cast %853 : vector<1x8x128xf32> to vector<8x128xf32>
    %855 = arith.addf %852, %854 : vector<8x128xf32>
    %856 = arith.mulf %17, %855 : vector<8x128xf32>
    %857 = arith.maximumf %855, %856 : vector<8x128xf32>
    %c96_471 = arith.constant 96 : index
    %c0_472 = arith.constant 0 : index
    %c0_473 = arith.constant 0 : index
    %858 = vector.load %arg3[%c96_471, %c0_472, %c0_473] : memref<128x8x128xf32, #tpu.memory_space<vmem>>, vector<1x8x128xf32>
    %859 = vector.shape_cast %858 : vector<1x8x128xf32> to vector<8x128xf32>
    %860 = arith.mulf %859, %717 : vector<8x128xf32>
    %c97_474 = arith.constant 97 : index
    %c0_475 = arith.constant 0 : index
    %c0_476 = arith.constant 0 : index
    %861 = vector.load %arg3[%c97_474, %c0_475, %c0_476] : memref<128x8x128xf32, #tpu.memory_space<vmem>>, vector<1x8x128xf32>
    %862 = vector.shape_cast %861 : vector<1x8x128xf32> to vector<8x128xf32>
    %863 = arith.mulf %862, %737 : vector<8x128xf32>
    %864 = arith.addf %860, %863 : vector<8x128xf32>
    %c98_477 = arith.constant 98 : index
    %c0_478 = arith.constant 0 : index
    %c0_479 = arith.constant 0 : index
    %865 = vector.load %arg3[%c98_477, %c0_478, %c0_479] : memref<128x8x128xf32, #tpu.memory_space<vmem>>, vector<1x8x128xf32>
    %866 = vector.shape_cast %865 : vector<1x8x128xf32> to vector<8x128xf32>
    %867 = arith.mulf %866, %757 : vector<8x128xf32>
    %868 = arith.addf %864, %867 : vector<8x128xf32>
    %c99_480 = arith.constant 99 : index
    %c0_481 = arith.constant 0 : index
    %c0_482 = arith.constant 0 : index
    %869 = vector.load %arg3[%c99_480, %c0_481, %c0_482] : memref<128x8x128xf32, #tpu.memory_space<vmem>>, vector<1x8x128xf32>
    %870 = vector.shape_cast %869 : vector<1x8x128xf32> to vector<8x128xf32>
    %871 = arith.mulf %870, %777 : vector<8x128xf32>
    %872 = arith.addf %868, %871 : vector<8x128xf32>
    %c120_483 = arith.constant 120 : index
    %c0_484 = arith.constant 0 : index
    %c0_485 = arith.constant 0 : index
    %873 = vector.load %arg3[%c120_483, %c0_484, %c0_485] : memref<128x8x128xf32, #tpu.memory_space<vmem>>, vector<1x8x128xf32>
    %874 = vector.shape_cast %873 : vector<1x8x128xf32> to vector<8x128xf32>
    %875 = arith.addf %872, %874 : vector<8x128xf32>
    %876 = arith.mulf %17, %875 : vector<8x128xf32>
    %877 = arith.maximumf %875, %876 : vector<8x128xf32>
    %c100_486 = arith.constant 100 : index
    %c0_487 = arith.constant 0 : index
    %c0_488 = arith.constant 0 : index
    %878 = vector.load %arg3[%c100_486, %c0_487, %c0_488] : memref<128x8x128xf32, #tpu.memory_space<vmem>>, vector<1x8x128xf32>
    %879 = vector.shape_cast %878 : vector<1x8x128xf32> to vector<8x128xf32>
    %880 = arith.mulf %879, %717 : vector<8x128xf32>
    %c101_489 = arith.constant 101 : index
    %c0_490 = arith.constant 0 : index
    %c0_491 = arith.constant 0 : index
    %881 = vector.load %arg3[%c101_489, %c0_490, %c0_491] : memref<128x8x128xf32, #tpu.memory_space<vmem>>, vector<1x8x128xf32>
    %882 = vector.shape_cast %881 : vector<1x8x128xf32> to vector<8x128xf32>
    %883 = arith.mulf %882, %737 : vector<8x128xf32>
    %884 = arith.addf %880, %883 : vector<8x128xf32>
    %c102_492 = arith.constant 102 : index
    %c0_493 = arith.constant 0 : index
    %c0_494 = arith.constant 0 : index
    %885 = vector.load %arg3[%c102_492, %c0_493, %c0_494] : memref<128x8x128xf32, #tpu.memory_space<vmem>>, vector<1x8x128xf32>
    %886 = vector.shape_cast %885 : vector<1x8x128xf32> to vector<8x128xf32>
    %887 = arith.mulf %886, %757 : vector<8x128xf32>
    %888 = arith.addf %884, %887 : vector<8x128xf32>
    %c103_495 = arith.constant 103 : index
    %c0_496 = arith.constant 0 : index
    %c0_497 = arith.constant 0 : index
    %889 = vector.load %arg3[%c103_495, %c0_496, %c0_497] : memref<128x8x128xf32, #tpu.memory_space<vmem>>, vector<1x8x128xf32>
    %890 = vector.shape_cast %889 : vector<1x8x128xf32> to vector<8x128xf32>
    %891 = arith.mulf %890, %777 : vector<8x128xf32>
    %892 = arith.addf %888, %891 : vector<8x128xf32>
    %c121_498 = arith.constant 121 : index
    %c0_499 = arith.constant 0 : index
    %c0_500 = arith.constant 0 : index
    %893 = vector.load %arg3[%c121_498, %c0_499, %c0_500] : memref<128x8x128xf32, #tpu.memory_space<vmem>>, vector<1x8x128xf32>
    %894 = vector.shape_cast %893 : vector<1x8x128xf32> to vector<8x128xf32>
    %895 = arith.addf %892, %894 : vector<8x128xf32>
    %896 = arith.mulf %17, %895 : vector<8x128xf32>
    %897 = arith.maximumf %895, %896 : vector<8x128xf32>
    %c104_501 = arith.constant 104 : index
    %c0_502 = arith.constant 0 : index
    %c0_503 = arith.constant 0 : index
    %898 = vector.load %arg3[%c104_501, %c0_502, %c0_503] : memref<128x8x128xf32, #tpu.memory_space<vmem>>, vector<1x8x128xf32>
    %899 = vector.shape_cast %898 : vector<1x8x128xf32> to vector<8x128xf32>
    %900 = arith.mulf %899, %717 : vector<8x128xf32>
    %c105_504 = arith.constant 105 : index
    %c0_505 = arith.constant 0 : index
    %c0_506 = arith.constant 0 : index
    %901 = vector.load %arg3[%c105_504, %c0_505, %c0_506] : memref<128x8x128xf32, #tpu.memory_space<vmem>>, vector<1x8x128xf32>
    %902 = vector.shape_cast %901 : vector<1x8x128xf32> to vector<8x128xf32>
    %903 = arith.mulf %902, %737 : vector<8x128xf32>
    %904 = arith.addf %900, %903 : vector<8x128xf32>
    %c106_507 = arith.constant 106 : index
    %c0_508 = arith.constant 0 : index
    %c0_509 = arith.constant 0 : index
    %905 = vector.load %arg3[%c106_507, %c0_508, %c0_509] : memref<128x8x128xf32, #tpu.memory_space<vmem>>, vector<1x8x128xf32>
    %906 = vector.shape_cast %905 : vector<1x8x128xf32> to vector<8x128xf32>
    %907 = arith.mulf %906, %757 : vector<8x128xf32>
    %908 = arith.addf %904, %907 : vector<8x128xf32>
    %c107_510 = arith.constant 107 : index
    %c0_511 = arith.constant 0 : index
    %c0_512 = arith.constant 0 : index
    %909 = vector.load %arg3[%c107_510, %c0_511, %c0_512] : memref<128x8x128xf32, #tpu.memory_space<vmem>>, vector<1x8x128xf32>
    %910 = vector.shape_cast %909 : vector<1x8x128xf32> to vector<8x128xf32>
    %911 = arith.mulf %910, %777 : vector<8x128xf32>
    %912 = arith.addf %908, %911 : vector<8x128xf32>
    %c122_513 = arith.constant 122 : index
    %c0_514 = arith.constant 0 : index
    %c0_515 = arith.constant 0 : index
    %913 = vector.load %arg3[%c122_513, %c0_514, %c0_515] : memref<128x8x128xf32, #tpu.memory_space<vmem>>, vector<1x8x128xf32>
    %914 = vector.shape_cast %913 : vector<1x8x128xf32> to vector<8x128xf32>
    %915 = arith.addf %912, %914 : vector<8x128xf32>
    %916 = arith.mulf %17, %915 : vector<8x128xf32>
    %917 = arith.maximumf %915, %916 : vector<8x128xf32>
    %c108_516 = arith.constant 108 : index
    %c0_517 = arith.constant 0 : index
    %c0_518 = arith.constant 0 : index
    %918 = vector.load %arg3[%c108_516, %c0_517, %c0_518] : memref<128x8x128xf32, #tpu.memory_space<vmem>>, vector<1x8x128xf32>
    %919 = vector.shape_cast %918 : vector<1x8x128xf32> to vector<8x128xf32>
    %920 = arith.mulf %919, %717 : vector<8x128xf32>
    %c109_519 = arith.constant 109 : index
    %c0_520 = arith.constant 0 : index
    %c0_521 = arith.constant 0 : index
    %921 = vector.load %arg3[%c109_519, %c0_520, %c0_521] : memref<128x8x128xf32, #tpu.memory_space<vmem>>, vector<1x8x128xf32>
    %922 = vector.shape_cast %921 : vector<1x8x128xf32> to vector<8x128xf32>
    %923 = arith.mulf %922, %737 : vector<8x128xf32>
    %924 = arith.addf %920, %923 : vector<8x128xf32>
    %c110_522 = arith.constant 110 : index
    %c0_523 = arith.constant 0 : index
    %c0_524 = arith.constant 0 : index
    %925 = vector.load %arg3[%c110_522, %c0_523, %c0_524] : memref<128x8x128xf32, #tpu.memory_space<vmem>>, vector<1x8x128xf32>
    %926 = vector.shape_cast %925 : vector<1x8x128xf32> to vector<8x128xf32>
    %927 = arith.mulf %926, %757 : vector<8x128xf32>
    %928 = arith.addf %924, %927 : vector<8x128xf32>
    %c111_525 = arith.constant 111 : index
    %c0_526 = arith.constant 0 : index
    %c0_527 = arith.constant 0 : index
    %929 = vector.load %arg3[%c111_525, %c0_526, %c0_527] : memref<128x8x128xf32, #tpu.memory_space<vmem>>, vector<1x8x128xf32>
    %930 = vector.shape_cast %929 : vector<1x8x128xf32> to vector<8x128xf32>
    %931 = arith.mulf %930, %777 : vector<8x128xf32>
    %932 = arith.addf %928, %931 : vector<8x128xf32>
    %c123_528 = arith.constant 123 : index
    %c0_529 = arith.constant 0 : index
    %c0_530 = arith.constant 0 : index
    %933 = vector.load %arg3[%c123_528, %c0_529, %c0_530] : memref<128x8x128xf32, #tpu.memory_space<vmem>>, vector<1x8x128xf32>
    %934 = vector.shape_cast %933 : vector<1x8x128xf32> to vector<8x128xf32>
    %935 = arith.addf %932, %934 : vector<8x128xf32>
    %936 = arith.mulf %17, %935 : vector<8x128xf32>
    %937 = arith.maximumf %935, %936 : vector<8x128xf32>
    %c112_531 = arith.constant 112 : index
    %c0_532 = arith.constant 0 : index
    %c0_533 = arith.constant 0 : index
    %938 = vector.load %arg3[%c112_531, %c0_532, %c0_533] : memref<128x8x128xf32, #tpu.memory_space<vmem>>, vector<1x8x128xf32>
    %939 = vector.shape_cast %938 : vector<1x8x128xf32> to vector<8x128xf32>
    %940 = arith.mulf %939, %717 : vector<8x128xf32>
    %c113_534 = arith.constant 113 : index
    %c0_535 = arith.constant 0 : index
    %c0_536 = arith.constant 0 : index
    %941 = vector.load %arg3[%c113_534, %c0_535, %c0_536] : memref<128x8x128xf32, #tpu.memory_space<vmem>>, vector<1x8x128xf32>
    %942 = vector.shape_cast %941 : vector<1x8x128xf32> to vector<8x128xf32>
    %943 = arith.mulf %942, %737 : vector<8x128xf32>
    %944 = arith.addf %940, %943 : vector<8x128xf32>
    %c114_537 = arith.constant 114 : index
    %c0_538 = arith.constant 0 : index
    %c0_539 = arith.constant 0 : index
    %945 = vector.load %arg3[%c114_537, %c0_538, %c0_539] : memref<128x8x128xf32, #tpu.memory_space<vmem>>, vector<1x8x128xf32>
    %946 = vector.shape_cast %945 : vector<1x8x128xf32> to vector<8x128xf32>
    %947 = arith.mulf %946, %757 : vector<8x128xf32>
    %948 = arith.addf %944, %947 : vector<8x128xf32>
    %c115_540 = arith.constant 115 : index
    %c0_541 = arith.constant 0 : index
    %c0_542 = arith.constant 0 : index
    %949 = vector.load %arg3[%c115_540, %c0_541, %c0_542] : memref<128x8x128xf32, #tpu.memory_space<vmem>>, vector<1x8x128xf32>
    %950 = vector.shape_cast %949 : vector<1x8x128xf32> to vector<8x128xf32>
    %951 = arith.mulf %950, %777 : vector<8x128xf32>
    %952 = arith.addf %948, %951 : vector<8x128xf32>
    %c124_543 = arith.constant 124 : index
    %c0_544 = arith.constant 0 : index
    %c0_545 = arith.constant 0 : index
    %953 = vector.load %arg3[%c124_543, %c0_544, %c0_545] : memref<128x8x128xf32, #tpu.memory_space<vmem>>, vector<1x8x128xf32>
    %954 = vector.shape_cast %953 : vector<1x8x128xf32> to vector<8x128xf32>
    %955 = arith.addf %952, %954 : vector<8x128xf32>
    %956 = arith.mulf %17, %955 : vector<8x128xf32>
    %957 = arith.maximumf %955, %956 : vector<8x128xf32>
    %958 = arith.maximumf %797, %817 : vector<8x128xf32>
    %959 = arith.maximumf %958, %837 : vector<8x128xf32>
    %960 = arith.maximumf %959, %857 : vector<8x128xf32>
    %961 = arith.maximumf %960, %877 : vector<8x128xf32>
    %962 = arith.maximumf %961, %897 : vector<8x128xf32>
    %963 = arith.maximumf %962, %917 : vector<8x128xf32>
    %964 = arith.maximumf %963, %937 : vector<8x128xf32>
    %965 = arith.maximumf %964, %957 : vector<8x128xf32>
    %966 = arith.subf %797, %965 : vector<8x128xf32>
    %967 = math.exp %966 : vector<8x128xf32>
    %968 = arith.subf %817, %965 : vector<8x128xf32>
    %969 = math.exp %968 : vector<8x128xf32>
    %970 = arith.subf %837, %965 : vector<8x128xf32>
    %971 = math.exp %970 : vector<8x128xf32>
    %972 = arith.subf %857, %965 : vector<8x128xf32>
    %973 = math.exp %972 : vector<8x128xf32>
    %974 = arith.subf %877, %965 : vector<8x128xf32>
    %975 = math.exp %974 : vector<8x128xf32>
    %976 = arith.subf %897, %965 : vector<8x128xf32>
    %977 = math.exp %976 : vector<8x128xf32>
    %978 = arith.subf %917, %965 : vector<8x128xf32>
    %979 = math.exp %978 : vector<8x128xf32>
    %980 = arith.subf %937, %965 : vector<8x128xf32>
    %981 = math.exp %980 : vector<8x128xf32>
    %982 = arith.subf %957, %965 : vector<8x128xf32>
    %983 = math.exp %982 : vector<8x128xf32>
    %984 = arith.addf %967, %969 : vector<8x128xf32>
    %985 = arith.addf %984, %971 : vector<8x128xf32>
    %986 = arith.addf %985, %973 : vector<8x128xf32>
    %987 = arith.addf %986, %975 : vector<8x128xf32>
    %988 = arith.addf %987, %977 : vector<8x128xf32>
    %989 = arith.addf %988, %979 : vector<8x128xf32>
    %990 = arith.addf %989, %981 : vector<8x128xf32>
    %991 = arith.addf %990, %983 : vector<8x128xf32>
    %992 = tpu.reciprocal %991 {approx = true} : vector<8x128xf32> -> vector<8x128xf32>
    %993 = arith.mulf %967, %992 : vector<8x128xf32>
    %c0_546 = arith.constant 0 : index
    %c18_547 = arith.constant 18 : index
    %994 = arith.index_cast %1 : i32 to index
    %c0_548 = arith.constant 0 : index
    %995 = vector.load %arg4[%c0_546, %c18_547, %994, %c0_548] : memref<1x36x8x128xf32, #tpu.memory_space<vmem>>, vector<1x1x8x128xf32>
    %996 = vector.shape_cast %995 : vector<1x1x8x128xf32> to vector<8x128xf32>
    %997 = vector.shape_cast %993 : vector<8x128xf32> to vector<1x1x8x128xf32>
    tpu.vector_store %arg4[%c0_546, %c18_547, %994, %c0_548], %997 {strides = array<i32>} : memref<1x36x8x128xf32, #tpu.memory_space<vmem>>, vector<1x1x8x128xf32>,
    %998 = arith.mulf %969, %992 : vector<8x128xf32>
    %c0_549 = arith.constant 0 : index
    %c19_550 = arith.constant 19 : index
    %999 = arith.index_cast %1 : i32 to index
    %c0_551 = arith.constant 0 : index
    %1000 = vector.load %arg4[%c0_549, %c19_550, %999, %c0_551] : memref<1x36x8x128xf32, #tpu.memory_space<vmem>>, vector<1x1x8x128xf32>
    %1001 = vector.shape_cast %1000 : vector<1x1x8x128xf32> to vector<8x128xf32>
    %1002 = vector.shape_cast %998 : vector<8x128xf32> to vector<1x1x8x128xf32>
    tpu.vector_store %arg4[%c0_549, %c19_550, %999, %c0_551], %1002 {strides = array<i32>} : memref<1x36x8x128xf32, #tpu.memory_space<vmem>>, vector<1x1x8x128xf32>,
    %1003 = arith.mulf %971, %992 : vector<8x128xf32>
    %c0_552 = arith.constant 0 : index
    %c20_553 = arith.constant 20 : index
    %1004 = arith.index_cast %1 : i32 to index
    %c0_554 = arith.constant 0 : index
    %1005 = vector.load %arg4[%c0_552, %c20_553, %1004, %c0_554] : memref<1x36x8x128xf32, #tpu.memory_space<vmem>>, vector<1x1x8x128xf32>
    %1006 = vector.shape_cast %1005 : vector<1x1x8x128xf32> to vector<8x128xf32>
    %1007 = vector.shape_cast %1003 : vector<8x128xf32> to vector<1x1x8x128xf32>
    tpu.vector_store %arg4[%c0_552, %c20_553, %1004, %c0_554], %1007 {strides = array<i32>} : memref<1x36x8x128xf32, #tpu.memory_space<vmem>>, vector<1x1x8x128xf32>,
    %1008 = arith.mulf %973, %992 : vector<8x128xf32>
    %c0_555 = arith.constant 0 : index
    %c21_556 = arith.constant 21 : index
    %1009 = arith.index_cast %1 : i32 to index
    %c0_557 = arith.constant 0 : index
    %1010 = vector.load %arg4[%c0_555, %c21_556, %1009, %c0_557] : memref<1x36x8x128xf32, #tpu.memory_space<vmem>>, vector<1x1x8x128xf32>
    %1011 = vector.shape_cast %1010 : vector<1x1x8x128xf32> to vector<8x128xf32>
    %1012 = vector.shape_cast %1008 : vector<8x128xf32> to vector<1x1x8x128xf32>
    tpu.vector_store %arg4[%c0_555, %c21_556, %1009, %c0_557], %1012 {strides = array<i32>} : memref<1x36x8x128xf32, #tpu.memory_space<vmem>>, vector<1x1x8x128xf32>,
    %1013 = arith.mulf %975, %992 : vector<8x128xf32>
    %c0_558 = arith.constant 0 : index
    %c22_559 = arith.constant 22 : index
    %1014 = arith.index_cast %1 : i32 to index
    %c0_560 = arith.constant 0 : index
    %1015 = vector.load %arg4[%c0_558, %c22_559, %1014, %c0_560] : memref<1x36x8x128xf32, #tpu.memory_space<vmem>>, vector<1x1x8x128xf32>
    %1016 = vector.shape_cast %1015 : vector<1x1x8x128xf32> to vector<8x128xf32>
    %1017 = vector.shape_cast %1013 : vector<8x128xf32> to vector<1x1x8x128xf32>
    tpu.vector_store %arg4[%c0_558, %c22_559, %1014, %c0_560], %1017 {strides = array<i32>} : memref<1x36x8x128xf32, #tpu.memory_space<vmem>>, vector<1x1x8x128xf32>,
    %1018 = arith.mulf %977, %992 : vector<8x128xf32>
    %c0_561 = arith.constant 0 : index
    %c23_562 = arith.constant 23 : index
    %1019 = arith.index_cast %1 : i32 to index
    %c0_563 = arith.constant 0 : index
    %1020 = vector.load %arg4[%c0_561, %c23_562, %1019, %c0_563] : memref<1x36x8x128xf32, #tpu.memory_space<vmem>>, vector<1x1x8x128xf32>
    %1021 = vector.shape_cast %1020 : vector<1x1x8x128xf32> to vector<8x128xf32>
    %1022 = vector.shape_cast %1018 : vector<8x128xf32> to vector<1x1x8x128xf32>
    tpu.vector_store %arg4[%c0_561, %c23_562, %1019, %c0_563], %1022 {strides = array<i32>} : memref<1x36x8x128xf32, #tpu.memory_space<vmem>>, vector<1x1x8x128xf32>,
    %1023 = arith.mulf %979, %992 : vector<8x128xf32>
    %c0_564 = arith.constant 0 : index
    %c24_565 = arith.constant 24 : index
    %1024 = arith.index_cast %1 : i32 to index
    %c0_566 = arith.constant 0 : index
    %1025 = vector.load %arg4[%c0_564, %c24_565, %1024, %c0_566] : memref<1x36x8x128xf32, #tpu.memory_space<vmem>>, vector<1x1x8x128xf32>
    %1026 = vector.shape_cast %1025 : vector<1x1x8x128xf32> to vector<8x128xf32>
    %1027 = vector.shape_cast %1023 : vector<8x128xf32> to vector<1x1x8x128xf32>
    tpu.vector_store %arg4[%c0_564, %c24_565, %1024, %c0_566], %1027 {strides = array<i32>} : memref<1x36x8x128xf32, #tpu.memory_space<vmem>>, vector<1x1x8x128xf32>,
    %1028 = arith.mulf %981, %992 : vector<8x128xf32>
    %c0_567 = arith.constant 0 : index
    %c25_568 = arith.constant 25 : index
    %1029 = arith.index_cast %1 : i32 to index
    %c0_569 = arith.constant 0 : index
    %1030 = vector.load %arg4[%c0_567, %c25_568, %1029, %c0_569] : memref<1x36x8x128xf32, #tpu.memory_space<vmem>>, vector<1x1x8x128xf32>
    %1031 = vector.shape_cast %1030 : vector<1x1x8x128xf32> to vector<8x128xf32>
    %1032 = vector.shape_cast %1028 : vector<8x128xf32> to vector<1x1x8x128xf32>
    tpu.vector_store %arg4[%c0_567, %c25_568, %1029, %c0_569], %1032 {strides = array<i32>} : memref<1x36x8x128xf32, #tpu.memory_space<vmem>>, vector<1x1x8x128xf32>,
    %1033 = arith.mulf %983, %992 : vector<8x128xf32>
    %c0_570 = arith.constant 0 : index
    %c26_571 = arith.constant 26 : index
    %1034 = arith.index_cast %1 : i32 to index
    %c0_572 = arith.constant 0 : index
    %1035 = vector.load %arg4[%c0_570, %c26_571, %1034, %c0_572] : memref<1x36x8x128xf32, #tpu.memory_space<vmem>>, vector<1x1x8x128xf32>
    %1036 = vector.shape_cast %1035 : vector<1x1x8x128xf32> to vector<8x128xf32>
    %1037 = vector.shape_cast %1033 : vector<8x128xf32> to vector<1x1x8x128xf32>
    tpu.vector_store %arg4[%c0_570, %c26_571, %1034, %c0_572], %1037 {strides = array<i32>} : memref<1x36x8x128xf32, #tpu.memory_space<vmem>>, vector<1x1x8x128xf32>,
    %c12_573 = arith.constant 12 : index
    %c0_574 = arith.constant 0 : index
    %c0_575 = arith.constant 0 : index
    %1038 = vector.load %arg3[%c12_573, %c0_574, %c0_575] : memref<128x8x128xf32, #tpu.memory_space<vmem>>, vector<1x8x128xf32>
    %1039 = vector.shape_cast %1038 : vector<1x8x128xf32> to vector<8x128xf32>
    %1040 = arith.mulf %1039, %4 : vector<8x128xf32>
    %c13_576 = arith.constant 13 : index
    %c0_577 = arith.constant 0 : index
    %c0_578 = arith.constant 0 : index
    %1041 = vector.load %arg3[%c13_576, %c0_577, %c0_578] : memref<128x8x128xf32, #tpu.memory_space<vmem>>, vector<1x8x128xf32>
    %1042 = vector.shape_cast %1041 : vector<1x8x128xf32> to vector<8x128xf32>
    %1043 = arith.mulf %1042, %7 : vector<8x128xf32>
    %1044 = arith.addf %1040, %1043 : vector<8x128xf32>
    %c14_579 = arith.constant 14 : index
    %c0_580 = arith.constant 0 : index
    %c0_581 = arith.constant 0 : index
    %1045 = vector.load %arg3[%c14_579, %c0_580, %c0_581] : memref<128x8x128xf32, #tpu.memory_space<vmem>>, vector<1x8x128xf32>
    %1046 = vector.shape_cast %1045 : vector<1x8x128xf32> to vector<8x128xf32>
    %1047 = arith.mulf %1046, %10 : vector<8x128xf32>
    %1048 = arith.addf %1044, %1047 : vector<8x128xf32>
    %c15_582 = arith.constant 15 : index
    %c0_583 = arith.constant 0 : index
    %c0_584 = arith.constant 0 : index
    %1049 = vector.load %arg3[%c15_582, %c0_583, %c0_584] : memref<128x8x128xf32, #tpu.memory_space<vmem>>, vector<1x8x128xf32>
    %1050 = vector.shape_cast %1049 : vector<1x8x128xf32> to vector<8x128xf32>
    %1051 = arith.mulf %1050, %13 : vector<8x128xf32>
    %1052 = arith.addf %1048, %1051 : vector<8x128xf32>
    %c67 = arith.constant 67 : index
    %c0_585 = arith.constant 0 : index
    %c0_586 = arith.constant 0 : index
    %1053 = vector.load %arg3[%c67, %c0_585, %c0_586] : memref<128x8x128xf32, #tpu.memory_space<vmem>>, vector<1x8x128xf32>
    %1054 = vector.shape_cast %1053 : vector<1x8x128xf32> to vector<8x128xf32>
    %1055 = arith.addf %1052, %1054 : vector<8x128xf32>
    %1056 = arith.mulf %15, %1055 : vector<8x128xf32>
    %1057 = arith.maximumf %1055, %1056 : vector<8x128xf32>
    %c28 = arith.constant 28 : index
    %c0_587 = arith.constant 0 : index
    %c0_588 = arith.constant 0 : index
    %1058 = vector.load %arg3[%c28, %c0_587, %c0_588] : memref<128x8x128xf32, #tpu.memory_space<vmem>>, vector<1x8x128xf32>
    %1059 = vector.shape_cast %1058 : vector<1x8x128xf32> to vector<8x128xf32>
    %1060 = arith.mulf %1059, %4 : vector<8x128xf32>
    %c29 = arith.constant 29 : index
    %c0_589 = arith.constant 0 : index
    %c0_590 = arith.constant 0 : index
    %1061 = vector.load %arg3[%c29, %c0_589, %c0_590] : memref<128x8x128xf32, #tpu.memory_space<vmem>>, vector<1x8x128xf32>
    %1062 = vector.shape_cast %1061 : vector<1x8x128xf32> to vector<8x128xf32>
    %1063 = arith.mulf %1062, %7 : vector<8x128xf32>
    %1064 = arith.addf %1060, %1063 : vector<8x128xf32>
    %c30 = arith.constant 30 : index
    %c0_591 = arith.constant 0 : index
    %c0_592 = arith.constant 0 : index
    %1065 = vector.load %arg3[%c30, %c0_591, %c0_592] : memref<128x8x128xf32, #tpu.memory_space<vmem>>, vector<1x8x128xf32>
    %1066 = vector.shape_cast %1065 : vector<1x8x128xf32> to vector<8x128xf32>
    %1067 = arith.mulf %1066, %10 : vector<8x128xf32>
    %1068 = arith.addf %1064, %1067 : vector<8x128xf32>
    %c31 = arith.constant 31 : index
    %c0_593 = arith.constant 0 : index
    %c0_594 = arith.constant 0 : index
    %1069 = vector.load %arg3[%c31, %c0_593, %c0_594] : memref<128x8x128xf32, #tpu.memory_space<vmem>>, vector<1x8x128xf32>
    %1070 = vector.shape_cast %1069 : vector<1x8x128xf32> to vector<8x128xf32>
    %1071 = arith.mulf %1070, %13 : vector<8x128xf32>
    %1072 = arith.addf %1068, %1071 : vector<8x128xf32>
    %c71 = arith.constant 71 : index
    %c0_595 = arith.constant 0 : index
    %c0_596 = arith.constant 0 : index
    %1073 = vector.load %arg3[%c71, %c0_595, %c0_596] : memref<128x8x128xf32, #tpu.memory_space<vmem>>, vector<1x8x128xf32>
    %1074 = vector.shape_cast %1073 : vector<1x8x128xf32> to vector<8x128xf32>
    %1075 = arith.addf %1072, %1074 : vector<8x128xf32>
    %1076 = arith.mulf %15, %1075 : vector<8x128xf32>
    %1077 = arith.maximumf %1075, %1076 : vector<8x128xf32>
    %c44 = arith.constant 44 : index
    %c0_597 = arith.constant 0 : index
    %c0_598 = arith.constant 0 : index
    %1078 = vector.load %arg3[%c44, %c0_597, %c0_598] : memref<128x8x128xf32, #tpu.memory_space<vmem>>, vector<1x8x128xf32>
    %1079 = vector.shape_cast %1078 : vector<1x8x128xf32> to vector<8x128xf32>
    %1080 = arith.mulf %1079, %4 : vector<8x128xf32>
    %c45 = arith.constant 45 : index
    %c0_599 = arith.constant 0 : index
    %c0_600 = arith.constant 0 : index
    %1081 = vector.load %arg3[%c45, %c0_599, %c0_600] : memref<128x8x128xf32, #tpu.memory_space<vmem>>, vector<1x8x128xf32>
    %1082 = vector.shape_cast %1081 : vector<1x8x128xf32> to vector<8x128xf32>
    %1083 = arith.mulf %1082, %7 : vector<8x128xf32>
    %1084 = arith.addf %1080, %1083 : vector<8x128xf32>
    %c46 = arith.constant 46 : index
    %c0_601 = arith.constant 0 : index
    %c0_602 = arith.constant 0 : index
    %1085 = vector.load %arg3[%c46, %c0_601, %c0_602] : memref<128x8x128xf32, #tpu.memory_space<vmem>>, vector<1x8x128xf32>
    %1086 = vector.shape_cast %1085 : vector<1x8x128xf32> to vector<8x128xf32>
    %1087 = arith.mulf %1086, %10 : vector<8x128xf32>
    %1088 = arith.addf %1084, %1087 : vector<8x128xf32>
    %c47 = arith.constant 47 : index
    %c0_603 = arith.constant 0 : index
    %c0_604 = arith.constant 0 : index
    %1089 = vector.load %arg3[%c47, %c0_603, %c0_604] : memref<128x8x128xf32, #tpu.memory_space<vmem>>, vector<1x8x128xf32>
    %1090 = vector.shape_cast %1089 : vector<1x8x128xf32> to vector<8x128xf32>
    %1091 = arith.mulf %1090, %13 : vector<8x128xf32>
    %1092 = arith.addf %1088, %1091 : vector<8x128xf32>
    %c75 = arith.constant 75 : index
    %c0_605 = arith.constant 0 : index
    %c0_606 = arith.constant 0 : index
    %1093 = vector.load %arg3[%c75, %c0_605, %c0_606] : memref<128x8x128xf32, #tpu.memory_space<vmem>>, vector<1x8x128xf32>
    %1094 = vector.shape_cast %1093 : vector<1x8x128xf32> to vector<8x128xf32>
    %1095 = arith.addf %1092, %1094 : vector<8x128xf32>
    %1096 = arith.mulf %15, %1095 : vector<8x128xf32>
    %1097 = arith.maximumf %1095, %1096 : vector<8x128xf32>
    %c60 = arith.constant 60 : index
    %c0_607 = arith.constant 0 : index
    %c0_608 = arith.constant 0 : index
    %1098 = vector.load %arg3[%c60, %c0_607, %c0_608] : memref<128x8x128xf32, #tpu.memory_space<vmem>>, vector<1x8x128xf32>
    %1099 = vector.shape_cast %1098 : vector<1x8x128xf32> to vector<8x128xf32>
    %1100 = arith.mulf %1099, %4 : vector<8x128xf32>
    %c61 = arith.constant 61 : index
    %c0_609 = arith.constant 0 : index
    %c0_610 = arith.constant 0 : index
    %1101 = vector.load %arg3[%c61, %c0_609, %c0_610] : memref<128x8x128xf32, #tpu.memory_space<vmem>>, vector<1x8x128xf32>
    %1102 = vector.shape_cast %1101 : vector<1x8x128xf32> to vector<8x128xf32>
    %1103 = arith.mulf %1102, %7 : vector<8x128xf32>
    %1104 = arith.addf %1100, %1103 : vector<8x128xf32>
    %c62 = arith.constant 62 : index
    %c0_611 = arith.constant 0 : index
    %c0_612 = arith.constant 0 : index
    %1105 = vector.load %arg3[%c62, %c0_611, %c0_612] : memref<128x8x128xf32, #tpu.memory_space<vmem>>, vector<1x8x128xf32>
    %1106 = vector.shape_cast %1105 : vector<1x8x128xf32> to vector<8x128xf32>
    %1107 = arith.mulf %1106, %10 : vector<8x128xf32>
    %1108 = arith.addf %1104, %1107 : vector<8x128xf32>
    %c63 = arith.constant 63 : index
    %c0_613 = arith.constant 0 : index
    %c0_614 = arith.constant 0 : index
    %1109 = vector.load %arg3[%c63, %c0_613, %c0_614] : memref<128x8x128xf32, #tpu.memory_space<vmem>>, vector<1x8x128xf32>
    %1110 = vector.shape_cast %1109 : vector<1x8x128xf32> to vector<8x128xf32>
    %1111 = arith.mulf %1110, %13 : vector<8x128xf32>
    %1112 = arith.addf %1108, %1111 : vector<8x128xf32>
    %c79 = arith.constant 79 : index
    %c0_615 = arith.constant 0 : index
    %c0_616 = arith.constant 0 : index
    %1113 = vector.load %arg3[%c79, %c0_615, %c0_616] : memref<128x8x128xf32, #tpu.memory_space<vmem>>, vector<1x8x128xf32>
    %1114 = vector.shape_cast %1113 : vector<1x8x128xf32> to vector<8x128xf32>
    %1115 = arith.addf %1112, %1114 : vector<8x128xf32>
    %1116 = arith.mulf %15, %1115 : vector<8x128xf32>
    %1117 = arith.maximumf %1115, %1116 : vector<8x128xf32>
    %c80_617 = arith.constant 80 : index
    %c0_618 = arith.constant 0 : index
    %c0_619 = arith.constant 0 : index
    %1118 = vector.load %arg3[%c80_617, %c0_618, %c0_619] : memref<128x8x128xf32, #tpu.memory_space<vmem>>, vector<1x8x128xf32>
    %1119 = vector.shape_cast %1118 : vector<1x8x128xf32> to vector<8x128xf32>
    %1120 = arith.mulf %1119, %1057 : vector<8x128xf32>
    %c81_620 = arith.constant 81 : index
    %c0_621 = arith.constant 0 : index
    %c0_622 = arith.constant 0 : index
    %1121 = vector.load %arg3[%c81_620, %c0_621, %c0_622] : memref<128x8x128xf32, #tpu.memory_space<vmem>>, vector<1x8x128xf32>
    %1122 = vector.shape_cast %1121 : vector<1x8x128xf32> to vector<8x128xf32>
    %1123 = arith.mulf %1122, %1077 : vector<8x128xf32>
    %1124 = arith.addf %1120, %1123 : vector<8x128xf32>
    %c82_623 = arith.constant 82 : index
    %c0_624 = arith.constant 0 : index
    %c0_625 = arith.constant 0 : index
    %1125 = vector.load %arg3[%c82_623, %c0_624, %c0_625] : memref<128x8x128xf32, #tpu.memory_space<vmem>>, vector<1x8x128xf32>
    %1126 = vector.shape_cast %1125 : vector<1x8x128xf32> to vector<8x128xf32>
    %1127 = arith.mulf %1126, %1097 : vector<8x128xf32>
    %1128 = arith.addf %1124, %1127 : vector<8x128xf32>
    %c83_626 = arith.constant 83 : index
    %c0_627 = arith.constant 0 : index
    %c0_628 = arith.constant 0 : index
    %1129 = vector.load %arg3[%c83_626, %c0_627, %c0_628] : memref<128x8x128xf32, #tpu.memory_space<vmem>>, vector<1x8x128xf32>
    %1130 = vector.shape_cast %1129 : vector<1x8x128xf32> to vector<8x128xf32>
    %1131 = arith.mulf %1130, %1117 : vector<8x128xf32>
    %1132 = arith.addf %1128, %1131 : vector<8x128xf32>
    %c116_629 = arith.constant 116 : index
    %c0_630 = arith.constant 0 : index
    %c0_631 = arith.constant 0 : index
    %1133 = vector.load %arg3[%c116_629, %c0_630, %c0_631] : memref<128x8x128xf32, #tpu.memory_space<vmem>>, vector<1x8x128xf32>
    %1134 = vector.shape_cast %1133 : vector<1x8x128xf32> to vector<8x128xf32>
    %1135 = arith.addf %1132, %1134 : vector<8x128xf32>
    %1136 = arith.mulf %17, %1135 : vector<8x128xf32>
    %1137 = arith.maximumf %1135, %1136 : vector<8x128xf32>
    %c84_632 = arith.constant 84 : index
    %c0_633 = arith.constant 0 : index
    %c0_634 = arith.constant 0 : index
    %1138 = vector.load %arg3[%c84_632, %c0_633, %c0_634] : memref<128x8x128xf32, #tpu.memory_space<vmem>>, vector<1x8x128xf32>
    %1139 = vector.shape_cast %1138 : vector<1x8x128xf32> to vector<8x128xf32>
    %1140 = arith.mulf %1139, %1057 : vector<8x128xf32>
    %c85_635 = arith.constant 85 : index
    %c0_636 = arith.constant 0 : index
    %c0_637 = arith.constant 0 : index
    %1141 = vector.load %arg3[%c85_635, %c0_636, %c0_637] : memref<128x8x128xf32, #tpu.memory_space<vmem>>, vector<1x8x128xf32>
    %1142 = vector.shape_cast %1141 : vector<1x8x128xf32> to vector<8x128xf32>
    %1143 = arith.mulf %1142, %1077 : vector<8x128xf32>
    %1144 = arith.addf %1140, %1143 : vector<8x128xf32>
    %c86_638 = arith.constant 86 : index
    %c0_639 = arith.constant 0 : index
    %c0_640 = arith.constant 0 : index
    %1145 = vector.load %arg3[%c86_638, %c0_639, %c0_640] : memref<128x8x128xf32, #tpu.memory_space<vmem>>, vector<1x8x128xf32>
    %1146 = vector.shape_cast %1145 : vector<1x8x128xf32> to vector<8x128xf32>
    %1147 = arith.mulf %1146, %1097 : vector<8x128xf32>
    %1148 = arith.addf %1144, %1147 : vector<8x128xf32>
    %c87_641 = arith.constant 87 : index
    %c0_642 = arith.constant 0 : index
    %c0_643 = arith.constant 0 : index
    %1149 = vector.load %arg3[%c87_641, %c0_642, %c0_643] : memref<128x8x128xf32, #tpu.memory_space<vmem>>, vector<1x8x128xf32>
    %1150 = vector.shape_cast %1149 : vector<1x8x128xf32> to vector<8x128xf32>
    %1151 = arith.mulf %1150, %1117 : vector<8x128xf32>
    %1152 = arith.addf %1148, %1151 : vector<8x128xf32>
    %c117_644 = arith.constant 117 : index
    %c0_645 = arith.constant 0 : index
    %c0_646 = arith.constant 0 : index
    %1153 = vector.load %arg3[%c117_644, %c0_645, %c0_646] : memref<128x8x128xf32, #tpu.memory_space<vmem>>, vector<1x8x128xf32>
    %1154 = vector.shape_cast %1153 : vector<1x8x128xf32> to vector<8x128xf32>
    %1155 = arith.addf %1152, %1154 : vector<8x128xf32>
    %1156 = arith.mulf %17, %1155 : vector<8x128xf32>
    %1157 = arith.maximumf %1155, %1156 : vector<8x128xf32>
    %c88_647 = arith.constant 88 : index
    %c0_648 = arith.constant 0 : index
    %c0_649 = arith.constant 0 : index
    %1158 = vector.load %arg3[%c88_647, %c0_648, %c0_649] : memref<128x8x128xf32, #tpu.memory_space<vmem>>, vector<1x8x128xf32>
    %1159 = vector.shape_cast %1158 : vector<1x8x128xf32> to vector<8x128xf32>
    %1160 = arith.mulf %1159, %1057 : vector<8x128xf32>
    %c89_650 = arith.constant 89 : index
    %c0_651 = arith.constant 0 : index
    %c0_652 = arith.constant 0 : index
    %1161 = vector.load %arg3[%c89_650, %c0_651, %c0_652] : memref<128x8x128xf32, #tpu.memory_space<vmem>>, vector<1x8x128xf32>
    %1162 = vector.shape_cast %1161 : vector<1x8x128xf32> to vector<8x128xf32>
    %1163 = arith.mulf %1162, %1077 : vector<8x128xf32>
    %1164 = arith.addf %1160, %1163 : vector<8x128xf32>
    %c90_653 = arith.constant 90 : index
    %c0_654 = arith.constant 0 : index
    %c0_655 = arith.constant 0 : index
    %1165 = vector.load %arg3[%c90_653, %c0_654, %c0_655] : memref<128x8x128xf32, #tpu.memory_space<vmem>>, vector<1x8x128xf32>
    %1166 = vector.shape_cast %1165 : vector<1x8x128xf32> to vector<8x128xf32>
    %1167 = arith.mulf %1166, %1097 : vector<8x128xf32>
    %1168 = arith.addf %1164, %1167 : vector<8x128xf32>
    %c91_656 = arith.constant 91 : index
    %c0_657 = arith.constant 0 : index
    %c0_658 = arith.constant 0 : index
    %1169 = vector.load %arg3[%c91_656, %c0_657, %c0_658] : memref<128x8x128xf32, #tpu.memory_space<vmem>>, vector<1x8x128xf32>
    %1170 = vector.shape_cast %1169 : vector<1x8x128xf32> to vector<8x128xf32>
    %1171 = arith.mulf %1170, %1117 : vector<8x128xf32>
    %1172 = arith.addf %1168, %1171 : vector<8x128xf32>
    %c118_659 = arith.constant 118 : index
    %c0_660 = arith.constant 0 : index
    %c0_661 = arith.constant 0 : index
    %1173 = vector.load %arg3[%c118_659, %c0_660, %c0_661] : memref<128x8x128xf32, #tpu.memory_space<vmem>>, vector<1x8x128xf32>
    %1174 = vector.shape_cast %1173 : vector<1x8x128xf32> to vector<8x128xf32>
    %1175 = arith.addf %1172, %1174 : vector<8x128xf32>
    %1176 = arith.mulf %17, %1175 : vector<8x128xf32>
    %1177 = arith.maximumf %1175, %1176 : vector<8x128xf32>
    %c92_662 = arith.constant 92 : index
    %c0_663 = arith.constant 0 : index
    %c0_664 = arith.constant 0 : index
    %1178 = vector.load %arg3[%c92_662, %c0_663, %c0_664] : memref<128x8x128xf32, #tpu.memory_space<vmem>>, vector<1x8x128xf32>
    %1179 = vector.shape_cast %1178 : vector<1x8x128xf32> to vector<8x128xf32>
    %1180 = arith.mulf %1179, %1057 : vector<8x128xf32>
    %c93_665 = arith.constant 93 : index
    %c0_666 = arith.constant 0 : index
    %c0_667 = arith.constant 0 : index
    %1181 = vector.load %arg3[%c93_665, %c0_666, %c0_667] : memref<128x8x128xf32, #tpu.memory_space<vmem>>, vector<1x8x128xf32>
    %1182 = vector.shape_cast %1181 : vector<1x8x128xf32> to vector<8x128xf32>
    %1183 = arith.mulf %1182, %1077 : vector<8x128xf32>
    %1184 = arith.addf %1180, %1183 : vector<8x128xf32>
    %c94_668 = arith.constant 94 : index
    %c0_669 = arith.constant 0 : index
    %c0_670 = arith.constant 0 : index
    %1185 = vector.load %arg3[%c94_668, %c0_669, %c0_670] : memref<128x8x128xf32, #tpu.memory_space<vmem>>, vector<1x8x128xf32>
    %1186 = vector.shape_cast %1185 : vector<1x8x128xf32> to vector<8x128xf32>
    %1187 = arith.mulf %1186, %1097 : vector<8x128xf32>
    %1188 = arith.addf %1184, %1187 : vector<8x128xf32>
    %c95_671 = arith.constant 95 : index
    %c0_672 = arith.constant 0 : index
    %c0_673 = arith.constant 0 : index
    %1189 = vector.load %arg3[%c95_671, %c0_672, %c0_673] : memref<128x8x128xf32, #tpu.memory_space<vmem>>, vector<1x8x128xf32>
    %1190 = vector.shape_cast %1189 : vector<1x8x128xf32> to vector<8x128xf32>
    %1191 = arith.mulf %1190, %1117 : vector<8x128xf32>
    %1192 = arith.addf %1188, %1191 : vector<8x128xf32>
    %c119_674 = arith.constant 119 : index
    %c0_675 = arith.constant 0 : index
    %c0_676 = arith.constant 0 : index
    %1193 = vector.load %arg3[%c119_674, %c0_675, %c0_676] : memref<128x8x128xf32, #tpu.memory_space<vmem>>, vector<1x8x128xf32>
    %1194 = vector.shape_cast %1193 : vector<1x8x128xf32> to vector<8x128xf32>
    %1195 = arith.addf %1192, %1194 : vector<8x128xf32>
    %1196 = arith.mulf %17, %1195 : vector<8x128xf32>
    %1197 = arith.maximumf %1195, %1196 : vector<8x128xf32>
    %c96_677 = arith.constant 96 : index
    %c0_678 = arith.constant 0 : index
    %c0_679 = arith.constant 0 : index
    %1198 = vector.load %arg3[%c96_677, %c0_678, %c0_679] : memref<128x8x128xf32, #tpu.memory_space<vmem>>, vector<1x8x128xf32>
    %1199 = vector.shape_cast %1198 : vector<1x8x128xf32> to vector<8x128xf32>
    %1200 = arith.mulf %1199, %1057 : vector<8x128xf32>
    %c97_680 = arith.constant 97 : index
    %c0_681 = arith.constant 0 : index
    %c0_682 = arith.constant 0 : index
    %1201 = vector.load %arg3[%c97_680, %c0_681, %c0_682] : memref<128x8x128xf32, #tpu.memory_space<vmem>>, vector<1x8x128xf32>
    %1202 = vector.shape_cast %1201 : vector<1x8x128xf32> to vector<8x128xf32>
    %1203 = arith.mulf %1202, %1077 : vector<8x128xf32>
    %1204 = arith.addf %1200, %1203 : vector<8x128xf32>
    %c98_683 = arith.constant 98 : index
    %c0_684 = arith.constant 0 : index
    %c0_685 = arith.constant 0 : index
    %1205 = vector.load %arg3[%c98_683, %c0_684, %c0_685] : memref<128x8x128xf32, #tpu.memory_space<vmem>>, vector<1x8x128xf32>
    %1206 = vector.shape_cast %1205 : vector<1x8x128xf32> to vector<8x128xf32>
    %1207 = arith.mulf %1206, %1097 : vector<8x128xf32>
    %1208 = arith.addf %1204, %1207 : vector<8x128xf32>
    %c99_686 = arith.constant 99 : index
    %c0_687 = arith.constant 0 : index
    %c0_688 = arith.constant 0 : index
    %1209 = vector.load %arg3[%c99_686, %c0_687, %c0_688] : memref<128x8x128xf32, #tpu.memory_space<vmem>>, vector<1x8x128xf32>
    %1210 = vector.shape_cast %1209 : vector<1x8x128xf32> to vector<8x128xf32>
    %1211 = arith.mulf %1210, %1117 : vector<8x128xf32>
    %1212 = arith.addf %1208, %1211 : vector<8x128xf32>
    %c120_689 = arith.constant 120 : index
    %c0_690 = arith.constant 0 : index
    %c0_691 = arith.constant 0 : index
    %1213 = vector.load %arg3[%c120_689, %c0_690, %c0_691] : memref<128x8x128xf32, #tpu.memory_space<vmem>>, vector<1x8x128xf32>
    %1214 = vector.shape_cast %1213 : vector<1x8x128xf32> to vector<8x128xf32>
    %1215 = arith.addf %1212, %1214 : vector<8x128xf32>
    %1216 = arith.mulf %17, %1215 : vector<8x128xf32>
    %1217 = arith.maximumf %1215, %1216 : vector<8x128xf32>
    %c100_692 = arith.constant 100 : index
    %c0_693 = arith.constant 0 : index
    %c0_694 = arith.constant 0 : index
    %1218 = vector.load %arg3[%c100_692, %c0_693, %c0_694] : memref<128x8x128xf32, #tpu.memory_space<vmem>>, vector<1x8x128xf32>
    %1219 = vector.shape_cast %1218 : vector<1x8x128xf32> to vector<8x128xf32>
    %1220 = arith.mulf %1219, %1057 : vector<8x128xf32>
    %c101_695 = arith.constant 101 : index
    %c0_696 = arith.constant 0 : index
    %c0_697 = arith.constant 0 : index
    %1221 = vector.load %arg3[%c101_695, %c0_696, %c0_697] : memref<128x8x128xf32, #tpu.memory_space<vmem>>, vector<1x8x128xf32>
    %1222 = vector.shape_cast %1221 : vector<1x8x128xf32> to vector<8x128xf32>
    %1223 = arith.mulf %1222, %1077 : vector<8x128xf32>
    %1224 = arith.addf %1220, %1223 : vector<8x128xf32>
    %c102_698 = arith.constant 102 : index
    %c0_699 = arith.constant 0 : index
    %c0_700 = arith.constant 0 : index
    %1225 = vector.load %arg3[%c102_698, %c0_699, %c0_700] : memref<128x8x128xf32, #tpu.memory_space<vmem>>, vector<1x8x128xf32>
    %1226 = vector.shape_cast %1225 : vector<1x8x128xf32> to vector<8x128xf32>
    %1227 = arith.mulf %1226, %1097 : vector<8x128xf32>
    %1228 = arith.addf %1224, %1227 : vector<8x128xf32>
    %c103_701 = arith.constant 103 : index
    %c0_702 = arith.constant 0 : index
    %c0_703 = arith.constant 0 : index
    %1229 = vector.load %arg3[%c103_701, %c0_702, %c0_703] : memref<128x8x128xf32, #tpu.memory_space<vmem>>, vector<1x8x128xf32>
    %1230 = vector.shape_cast %1229 : vector<1x8x128xf32> to vector<8x128xf32>
    %1231 = arith.mulf %1230, %1117 : vector<8x128xf32>
    %1232 = arith.addf %1228, %1231 : vector<8x128xf32>
    %c121_704 = arith.constant 121 : index
    %c0_705 = arith.constant 0 : index
    %c0_706 = arith.constant 0 : index
    %1233 = vector.load %arg3[%c121_704, %c0_705, %c0_706] : memref<128x8x128xf32, #tpu.memory_space<vmem>>, vector<1x8x128xf32>
    %1234 = vector.shape_cast %1233 : vector<1x8x128xf32> to vector<8x128xf32>
    %1235 = arith.addf %1232, %1234 : vector<8x128xf32>
    %1236 = arith.mulf %17, %1235 : vector<8x128xf32>
    %1237 = arith.maximumf %1235, %1236 : vector<8x128xf32>
    %c104_707 = arith.constant 104 : index
    %c0_708 = arith.constant 0 : index
    %c0_709 = arith.constant 0 : index
    %1238 = vector.load %arg3[%c104_707, %c0_708, %c0_709] : memref<128x8x128xf32, #tpu.memory_space<vmem>>, vector<1x8x128xf32>
    %1239 = vector.shape_cast %1238 : vector<1x8x128xf32> to vector<8x128xf32>
    %1240 = arith.mulf %1239, %1057 : vector<8x128xf32>
    %c105_710 = arith.constant 105 : index
    %c0_711 = arith.constant 0 : index
    %c0_712 = arith.constant 0 : index
    %1241 = vector.load %arg3[%c105_710, %c0_711, %c0_712] : memref<128x8x128xf32, #tpu.memory_space<vmem>>, vector<1x8x128xf32>
    %1242 = vector.shape_cast %1241 : vector<1x8x128xf32> to vector<8x128xf32>
    %1243 = arith.mulf %1242, %1077 : vector<8x128xf32>
    %1244 = arith.addf %1240, %1243 : vector<8x128xf32>
    %c106_713 = arith.constant 106 : index
    %c0_714 = arith.constant 0 : index
    %c0_715 = arith.constant 0 : index
    %1245 = vector.load %arg3[%c106_713, %c0_714, %c0_715] : memref<128x8x128xf32, #tpu.memory_space<vmem>>, vector<1x8x128xf32>
    %1246 = vector.shape_cast %1245 : vector<1x8x128xf32> to vector<8x128xf32>
    %1247 = arith.mulf %1246, %1097 : vector<8x128xf32>
    %1248 = arith.addf %1244, %1247 : vector<8x128xf32>
    %c107_716 = arith.constant 107 : index
    %c0_717 = arith.constant 0 : index
    %c0_718 = arith.constant 0 : index
    %1249 = vector.load %arg3[%c107_716, %c0_717, %c0_718] : memref<128x8x128xf32, #tpu.memory_space<vmem>>, vector<1x8x128xf32>
    %1250 = vector.shape_cast %1249 : vector<1x8x128xf32> to vector<8x128xf32>
    %1251 = arith.mulf %1250, %1117 : vector<8x128xf32>
    %1252 = arith.addf %1248, %1251 : vector<8x128xf32>
    %c122_719 = arith.constant 122 : index
    %c0_720 = arith.constant 0 : index
    %c0_721 = arith.constant 0 : index
    %1253 = vector.load %arg3[%c122_719, %c0_720, %c0_721] : memref<128x8x128xf32, #tpu.memory_space<vmem>>, vector<1x8x128xf32>
    %1254 = vector.shape_cast %1253 : vector<1x8x128xf32> to vector<8x128xf32>
    %1255 = arith.addf %1252, %1254 : vector<8x128xf32>
    %1256 = arith.mulf %17, %1255 : vector<8x128xf32>
    %1257 = arith.maximumf %1255, %1256 : vector<8x128xf32>
    %c108_722 = arith.constant 108 : index
    %c0_723 = arith.constant 0 : index
    %c0_724 = arith.constant 0 : index
    %1258 = vector.load %arg3[%c108_722, %c0_723, %c0_724] : memref<128x8x128xf32, #tpu.memory_space<vmem>>, vector<1x8x128xf32>
    %1259 = vector.shape_cast %1258 : vector<1x8x128xf32> to vector<8x128xf32>
    %1260 = arith.mulf %1259, %1057 : vector<8x128xf32>
    %c109_725 = arith.constant 109 : index
    %c0_726 = arith.constant 0 : index
    %c0_727 = arith.constant 0 : index
    %1261 = vector.load %arg3[%c109_725, %c0_726, %c0_727] : memref<128x8x128xf32, #tpu.memory_space<vmem>>, vector<1x8x128xf32>
    %1262 = vector.shape_cast %1261 : vector<1x8x128xf32> to vector<8x128xf32>
    %1263 = arith.mulf %1262, %1077 : vector<8x128xf32>
    %1264 = arith.addf %1260, %1263 : vector<8x128xf32>
    %c110_728 = arith.constant 110 : index
    %c0_729 = arith.constant 0 : index
    %c0_730 = arith.constant 0 : index
    %1265 = vector.load %arg3[%c110_728, %c0_729, %c0_730] : memref<128x8x128xf32, #tpu.memory_space<vmem>>, vector<1x8x128xf32>
    %1266 = vector.shape_cast %1265 : vector<1x8x128xf32> to vector<8x128xf32>
    %1267 = arith.mulf %1266, %1097 : vector<8x128xf32>
    %1268 = arith.addf %1264, %1267 : vector<8x128xf32>
    %c111_731 = arith.constant 111 : index
    %c0_732 = arith.constant 0 : index
    %c0_733 = arith.constant 0 : index
    %1269 = vector.load %arg3[%c111_731, %c0_732, %c0_733] : memref<128x8x128xf32, #tpu.memory_space<vmem>>, vector<1x8x128xf32>
    %1270 = vector.shape_cast %1269 : vector<1x8x128xf32> to vector<8x128xf32>
    %1271 = arith.mulf %1270, %1117 : vector<8x128xf32>
    %1272 = arith.addf %1268, %1271 : vector<8x128xf32>
    %c123_734 = arith.constant 123 : index
    %c0_735 = arith.constant 0 : index
    %c0_736 = arith.constant 0 : index
    %1273 = vector.load %arg3[%c123_734, %c0_735, %c0_736] : memref<128x8x128xf32, #tpu.memory_space<vmem>>, vector<1x8x128xf32>
    %1274 = vector.shape_cast %1273 : vector<1x8x128xf32> to vector<8x128xf32>
    %1275 = arith.addf %1272, %1274 : vector<8x128xf32>
    %1276 = arith.mulf %17, %1275 : vector<8x128xf32>
    %1277 = arith.maximumf %1275, %1276 : vector<8x128xf32>
    %c112_737 = arith.constant 112 : index
    %c0_738 = arith.constant 0 : index
    %c0_739 = arith.constant 0 : index
    %1278 = vector.load %arg3[%c112_737, %c0_738, %c0_739] : memref<128x8x128xf32, #tpu.memory_space<vmem>>, vector<1x8x128xf32>
    %1279 = vector.shape_cast %1278 : vector<1x8x128xf32> to vector<8x128xf32>
    %1280 = arith.mulf %1279, %1057 : vector<8x128xf32>
    %c113_740 = arith.constant 113 : index
    %c0_741 = arith.constant 0 : index
    %c0_742 = arith.constant 0 : index
    %1281 = vector.load %arg3[%c113_740, %c0_741, %c0_742] : memref<128x8x128xf32, #tpu.memory_space<vmem>>, vector<1x8x128xf32>
    %1282 = vector.shape_cast %1281 : vector<1x8x128xf32> to vector<8x128xf32>
    %1283 = arith.mulf %1282, %1077 : vector<8x128xf32>
    %1284 = arith.addf %1280, %1283 : vector<8x128xf32>
    %c114_743 = arith.constant 114 : index
    %c0_744 = arith.constant 0 : index
    %c0_745 = arith.constant 0 : index
    %1285 = vector.load %arg3[%c114_743, %c0_744, %c0_745] : memref<128x8x128xf32, #tpu.memory_space<vmem>>, vector<1x8x128xf32>
    %1286 = vector.shape_cast %1285 : vector<1x8x128xf32> to vector<8x128xf32>
    %1287 = arith.mulf %1286, %1097 : vector<8x128xf32>
    %1288 = arith.addf %1284, %1287 : vector<8x128xf32>
    %c115_746 = arith.constant 115 : index
    %c0_747 = arith.constant 0 : index
    %c0_748 = arith.constant 0 : index
    %1289 = vector.load %arg3[%c115_746, %c0_747, %c0_748] : memref<128x8x128xf32, #tpu.memory_space<vmem>>, vector<1x8x128xf32>
    %1290 = vector.shape_cast %1289 : vector<1x8x128xf32> to vector<8x128xf32>
    %1291 = arith.mulf %1290, %1117 : vector<8x128xf32>
    %1292 = arith.addf %1288, %1291 : vector<8x128xf32>
    %c124_749 = arith.constant 124 : index
    %c0_750 = arith.constant 0 : index
    %c0_751 = arith.constant 0 : index
    %1293 = vector.load %arg3[%c124_749, %c0_750, %c0_751] : memref<128x8x128xf32, #tpu.memory_space<vmem>>, vector<1x8x128xf32>
    %1294 = vector.shape_cast %1293 : vector<1x8x128xf32> to vector<8x128xf32>
    %1295 = arith.addf %1292, %1294 : vector<8x128xf32>
    %1296 = arith.mulf %17, %1295 : vector<8x128xf32>
    %1297 = arith.maximumf %1295, %1296 : vector<8x128xf32>
    %1298 = arith.maximumf %1137, %1157 : vector<8x128xf32>
    %1299 = arith.maximumf %1298, %1177 : vector<8x128xf32>
    %1300 = arith.maximumf %1299, %1197 : vector<8x128xf32>
    %1301 = arith.maximumf %1300, %1217 : vector<8x128xf32>
    %1302 = arith.maximumf %1301, %1237 : vector<8x128xf32>
    %1303 = arith.maximumf %1302, %1257 : vector<8x128xf32>
    %1304 = arith.maximumf %1303, %1277 : vector<8x128xf32>
    %1305 = arith.maximumf %1304, %1297 : vector<8x128xf32>
    %1306 = arith.subf %1137, %1305 : vector<8x128xf32>
    %1307 = math.exp %1306 : vector<8x128xf32>
    %1308 = arith.subf %1157, %1305 : vector<8x128xf32>
    %1309 = math.exp %1308 : vector<8x128xf32>
    %1310 = arith.subf %1177, %1305 : vector<8x128xf32>
    %1311 = math.exp %1310 : vector<8x128xf32>
    %1312 = arith.subf %1197, %1305 : vector<8x128xf32>
    %1313 = math.exp %1312 : vector<8x128xf32>
    %1314 = arith.subf %1217, %1305 : vector<8x128xf32>
    %1315 = math.exp %1314 : vector<8x128xf32>
    %1316 = arith.subf %1237, %1305 : vector<8x128xf32>
    %1317 = math.exp %1316 : vector<8x128xf32>
    %1318 = arith.subf %1257, %1305 : vector<8x128xf32>
    %1319 = math.exp %1318 : vector<8x128xf32>
    %1320 = arith.subf %1277, %1305 : vector<8x128xf32>
    %1321 = math.exp %1320 : vector<8x128xf32>
    %1322 = arith.subf %1297, %1305 : vector<8x128xf32>
    %1323 = math.exp %1322 : vector<8x128xf32>
    %1324 = arith.addf %1307, %1309 : vector<8x128xf32>
    %1325 = arith.addf %1324, %1311 : vector<8x128xf32>
    %1326 = arith.addf %1325, %1313 : vector<8x128xf32>
    %1327 = arith.addf %1326, %1315 : vector<8x128xf32>
    %1328 = arith.addf %1327, %1317 : vector<8x128xf32>
    %1329 = arith.addf %1328, %1319 : vector<8x128xf32>
    %1330 = arith.addf %1329, %1321 : vector<8x128xf32>
    %1331 = arith.addf %1330, %1323 : vector<8x128xf32>
    %1332 = tpu.reciprocal %1331 {approx = true} : vector<8x128xf32> -> vector<8x128xf32>
    %1333 = arith.mulf %1307, %1332 : vector<8x128xf32>
    %c0_752 = arith.constant 0 : index
    %c27_753 = arith.constant 27 : index
    %1334 = arith.index_cast %1 : i32 to index
    %c0_754 = arith.constant 0 : index
    %1335 = vector.load %arg4[%c0_752, %c27_753, %1334, %c0_754] : memref<1x36x8x128xf32, #tpu.memory_space<vmem>>, vector<1x1x8x128xf32>
    %1336 = vector.shape_cast %1335 : vector<1x1x8x128xf32> to vector<8x128xf32>
    %1337 = vector.shape_cast %1333 : vector<8x128xf32> to vector<1x1x8x128xf32>
    tpu.vector_store %arg4[%c0_752, %c27_753, %1334, %c0_754], %1337 {strides = array<i32>} : memref<1x36x8x128xf32, #tpu.memory_space<vmem>>, vector<1x1x8x128xf32>,
    %1338 = arith.mulf %1309, %1332 : vector<8x128xf32>
    %c0_755 = arith.constant 0 : index
    %c28_756 = arith.constant 28 : index
    %1339 = arith.index_cast %1 : i32 to index
    %c0_757 = arith.constant 0 : index
    %1340 = vector.load %arg4[%c0_755, %c28_756, %1339, %c0_757] : memref<1x36x8x128xf32, #tpu.memory_space<vmem>>, vector<1x1x8x128xf32>
    %1341 = vector.shape_cast %1340 : vector<1x1x8x128xf32> to vector<8x128xf32>
    %1342 = vector.shape_cast %1338 : vector<8x128xf32> to vector<1x1x8x128xf32>
    tpu.vector_store %arg4[%c0_755, %c28_756, %1339, %c0_757], %1342 {strides = array<i32>} : memref<1x36x8x128xf32, #tpu.memory_space<vmem>>, vector<1x1x8x128xf32>,
    %1343 = arith.mulf %1311, %1332 : vector<8x128xf32>
    %c0_758 = arith.constant 0 : index
    %c29_759 = arith.constant 29 : index
    %1344 = arith.index_cast %1 : i32 to index
    %c0_760 = arith.constant 0 : index
    %1345 = vector.load %arg4[%c0_758, %c29_759, %1344, %c0_760] : memref<1x36x8x128xf32, #tpu.memory_space<vmem>>, vector<1x1x8x128xf32>
    %1346 = vector.shape_cast %1345 : vector<1x1x8x128xf32> to vector<8x128xf32>
    %1347 = vector.shape_cast %1343 : vector<8x128xf32> to vector<1x1x8x128xf32>
    tpu.vector_store %arg4[%c0_758, %c29_759, %1344, %c0_760], %1347 {strides = array<i32>} : memref<1x36x8x128xf32, #tpu.memory_space<vmem>>, vector<1x1x8x128xf32>,
    %1348 = arith.mulf %1313, %1332 : vector<8x128xf32>
    %c0_761 = arith.constant 0 : index
    %c30_762 = arith.constant 30 : index
    %1349 = arith.index_cast %1 : i32 to index
    %c0_763 = arith.constant 0 : index
    %1350 = vector.load %arg4[%c0_761, %c30_762, %1349, %c0_763] : memref<1x36x8x128xf32, #tpu.memory_space<vmem>>, vector<1x1x8x128xf32>
    %1351 = vector.shape_cast %1350 : vector<1x1x8x128xf32> to vector<8x128xf32>
    %1352 = vector.shape_cast %1348 : vector<8x128xf32> to vector<1x1x8x128xf32>
    tpu.vector_store %arg4[%c0_761, %c30_762, %1349, %c0_763], %1352 {strides = array<i32>} : memref<1x36x8x128xf32, #tpu.memory_space<vmem>>, vector<1x1x8x128xf32>,
    %1353 = arith.mulf %1315, %1332 : vector<8x128xf32>
    %c0_764 = arith.constant 0 : index
    %c31_765 = arith.constant 31 : index
    %1354 = arith.index_cast %1 : i32 to index
    %c0_766 = arith.constant 0 : index
    %1355 = vector.load %arg4[%c0_764, %c31_765, %1354, %c0_766] : memref<1x36x8x128xf32, #tpu.memory_space<vmem>>, vector<1x1x8x128xf32>
    %1356 = vector.shape_cast %1355 : vector<1x1x8x128xf32> to vector<8x128xf32>
    %1357 = vector.shape_cast %1353 : vector<8x128xf32> to vector<1x1x8x128xf32>
    tpu.vector_store %arg4[%c0_764, %c31_765, %1354, %c0_766], %1357 {strides = array<i32>} : memref<1x36x8x128xf32, #tpu.memory_space<vmem>>, vector<1x1x8x128xf32>,
    %1358 = arith.mulf %1317, %1332 : vector<8x128xf32>
    %c0_767 = arith.constant 0 : index
    %c32_768 = arith.constant 32 : index
    %1359 = arith.index_cast %1 : i32 to index
    %c0_769 = arith.constant 0 : index
    %1360 = vector.load %arg4[%c0_767, %c32_768, %1359, %c0_769] : memref<1x36x8x128xf32, #tpu.memory_space<vmem>>, vector<1x1x8x128xf32>
    %1361 = vector.shape_cast %1360 : vector<1x1x8x128xf32> to vector<8x128xf32>
    %1362 = vector.shape_cast %1358 : vector<8x128xf32> to vector<1x1x8x128xf32>
    tpu.vector_store %arg4[%c0_767, %c32_768, %1359, %c0_769], %1362 {strides = array<i32>} : memref<1x36x8x128xf32, #tpu.memory_space<vmem>>, vector<1x1x8x128xf32>,
    %1363 = arith.mulf %1319, %1332 : vector<8x128xf32>
    %c0_770 = arith.constant 0 : index
    %c33_771 = arith.constant 33 : index
    %1364 = arith.index_cast %1 : i32 to index
    %c0_772 = arith.constant 0 : index
    %1365 = vector.load %arg4[%c0_770, %c33_771, %1364, %c0_772] : memref<1x36x8x128xf32, #tpu.memory_space<vmem>>, vector<1x1x8x128xf32>
    %1366 = vector.shape_cast %1365 : vector<1x1x8x128xf32> to vector<8x128xf32>
    %1367 = vector.shape_cast %1363 : vector<8x128xf32> to vector<1x1x8x128xf32>
    tpu.vector_store %arg4[%c0_770, %c33_771, %1364, %c0_772], %1367 {strides = array<i32>} : memref<1x36x8x128xf32, #tpu.memory_space<vmem>>, vector<1x1x8x128xf32>,
    %1368 = arith.mulf %1321, %1332 : vector<8x128xf32>
    %c0_773 = arith.constant 0 : index
    %c34_774 = arith.constant 34 : index
    %1369 = arith.index_cast %1 : i32 to index
    %c0_775 = arith.constant 0 : index
    %1370 = vector.load %arg4[%c0_773, %c34_774, %1369, %c0_775] : memref<1x36x8x128xf32, #tpu.memory_space<vmem>>, vector<1x1x8x128xf32>
    %1371 = vector.shape_cast %1370 : vector<1x1x8x128xf32> to vector<8x128xf32>
    %1372 = vector.shape_cast %1368 : vector<8x128xf32> to vector<1x1x8x128xf32>
    tpu.vector_store %arg4[%c0_773, %c34_774, %1369, %c0_775], %1372 {strides = array<i32>} : memref<1x36x8x128xf32, #tpu.memory_space<vmem>>, vector<1x1x8x128xf32>,
    %1373 = arith.mulf %1323, %1332 : vector<8x128xf32>
    %c0_776 = arith.constant 0 : index
    %c35_777 = arith.constant 35 : index
    %1374 = arith.index_cast %1 : i32 to index
    %c0_778 = arith.constant 0 : index
    %1375 = vector.load %arg4[%c0_776, %c35_777, %1374, %c0_778] : memref<1x36x8x128xf32, #tpu.memory_space<vmem>>, vector<1x1x8x128xf32>
    %1376 = vector.shape_cast %1375 : vector<1x1x8x128xf32> to vector<8x128xf32>
    %1377 = vector.shape_cast %1373 : vector<8x128xf32> to vector<1x1x8x128xf32>
    tpu.vector_store %arg4[%c0_776, %c35_777, %1374, %c0_778], %1377 {strides = array<i32>} : memref<1x36x8x128xf32, #tpu.memory_space<vmem>>, vector<1x1x8x128xf32>,
    %c1_i32 = arith.constant 1 : i32
    return
  }
  func.func @transform_0(%arg0: i32, %arg1: i32) -> (i32, i32, i32, i32) {
    %c0_i32 = arith.constant 0 : i32
    %c0_i32_0 = arith.constant 0 : i32
    %c0_i32_1 = arith.constant 0 : i32
    return %arg0, %c0_i32, %arg1, %c0_i32_0 : i32, i32, i32, i32
  }
  func.func @transform_1(%arg0: i32, %arg1: i32) -> (i32, i32, i32) {
    %c0_i32 = arith.constant 0 : i32
    %c0_i32_0 = arith.constant 0 : i32
    %c0_i32_1 = arith.constant 0 : i32
    %c0_i32_2 = arith.constant 0 : i32
    return %c0_i32, %c0_i32_0, %c0_i32_1 : i32, i32, i32
  }
  func.func @transform_2(%arg0: i32, %arg1: i32) -> (i32, i32, i32, i32) {
    %c0_i32 = arith.constant 0 : i32
    %c0_i32_0 = arith.constant 0 : i32
    %c0_i32_1 = arith.constant 0 : i32
    return %arg0, %c0_i32, %arg1, %c0_i32_0 : i32, i32, i32, i32
  }
}

</mosaic_0001>

<llo_original>
// kernel: tpu_custom_call.1
$region0: #{tpu_custom_call.1}
  #allocation0 [shape = 'u32[]', space=smem, size = 0x4, offset = 0x4, fixed_abs, tag = 'smem constant byte address 0x4 - core index']
  #allocation1 [shape = 'u32[144,128]{1,0:T(1,128)}', space=vmem, size = 0x12000, scoped, tag = 'internal scratch']
  %s0 = inlined_call_operand.hbm [shape: f32[2,4,8,128], index: 0, kind: input, shape index: {}]
  %s1 = inlined_call_operand.hbm [shape: f32[128,8,128], index: 1, kind: input, shape index: {}]
  %s2 = inlined_call_operand.hbm [shape: f32[2,36,8,128], index: 2, kind: output, shape index: {}]
  %s3 = sld [smem:[#allocation0]]
  $region49: #{tpu_custom_call.1} parent=0
    _
  %s5 = ssub.s32 1, %s3
  %s6 = scalar_select 0, %s5, %s3
  $region1: #{tpu_custom_call.1} parent=0
    #allocation2 [shape = 'u8[32768]{0}', space=vmem, size = 0x8000, scoped, tag = 'input window, operand 0']
    #allocation3 [shape = 's32[2]{0}', space=sflag, size = 0x8, scoped, tag = 'scoped memory for tpu_custom_call.1']
    #allocation4 [shape = 's32[2]{0}', space=sflag, size = 0x8, scoped, tag = 'scoped memory for tpu_custom_call.1']
    #allocation5 [shape = 'u8[524288]{0}', space=vmem, size = 0x80000, scoped, tag = 'input window, operand 1, single buffered']
    #allocation6 [shape = 's32[1]{0}', space=sflag, size = 0x4, scoped, tag = 'scoped memory for tpu_custom_call.1']
    #allocation7 [shape = 'u8[294912]{0}', space=vmem, size = 0x48000, scoped, tag = 'output window, operand 0']
    %7 = vsyncpa [#allocation3], 0
    %s8 = scalar_lea.sflag [#allocation3], 1
    %9 = vsyncpa %s8, 0
    %10 = vsyncpa [#allocation6], 0
    %11 = vsyncpa [#allocation4], 0
    %s12 = scalar_lea.sflag [#allocation4], 1
    %13 = vsyncpa %s12, 0
    loop: start=0, step=1, limit=4
    $region2: #{tpu_custom_call.1} parent=1 // loop_pre_header
      _
    $region3: #{tpu_custom_call.1} parent=1 // loop_header
      %s15 = sphi 0, %s19
      %p16 = scmp.ge.s32.totalorder %s15, 4
      %s22 = sphi 0, %s34
      %s23 = sphi 0, %s30
      %s24 = sphi 0, %s22
      %s25 = sphi 0, %s23
      %s26 = sphi 0, %s24
      %s27 = sphi 0, %s25
      %s39 = sphi 0, %s41
      %s42 = sphi 0, %s39
      %s43 = sphi 0, %s42
      %s59 = sphi 0, %s43
      %s63 = sphi 0, %s63
      %s65 = sphi 0, %s63
      %s66 = sphi 0, %s65
      %s80 = sphi 0, %s66
      %s88 = sphi 0, %s90
      %s91 = sphi 0, %s88
      %s92 = sphi 0, %s91
      %s108 = sphi 0, %s92
    $region4: #{tpu_custom_call.1} parent=1 // loop_header_branch
      %18 = sbr.rel (%p16) target = $region8
    $region5: #{tpu_custom_call.1} parent=1 // loop_body
      %s20 = ssub.s32 %s15, 1
      %s21 = ssub.s32 %s15, 2
      %s28 = sadd.s32 1, %s23
      %p29 = scmp.ge.s32.totalorder %s28, 1
      %s30 = scalar_select %p29, 0, %s28
      %s31 = sadd.s32 1, %s22
      %s32 = scalar_select %p29, %s31, %s22
      %p33 = scmp.ge.s32.totalorder %s32, 2
      %s34 = scalar_select %p33, 0, %s32
      %s35 = ssub.s32 %s22, %s34
      %s36 = ssub.s32 %s23, %s30
      %s37 = sor.u32 %s35, %s36
      %p38 = scmp.eq.s32.totalorder %s37, 0
      %s40 = sadd.s32 %s39, 1
      %s41 = scalar_select %p38, %s39, %s40
      %p44 = pneg %p38
      %p45 = scmp.eq.s32.totalorder %s15, 1
      %p46 = por %p44, %p45
      %p47 = scmp.ne.s32.totalorder %s39, %s42
      %p48 = scmp.eq.s32.totalorder %s15, 0
      %p49 = por %p47, %p48
      %p50 = scmp.ne.s32.totalorder %s39, %s42
      %p51 = scmp.eq.s32.totalorder %s20, 1
      %p52 = por %p50, %p51
      %p53 = scmp.ne.s32.totalorder %s42, %s43
      %p54 = scmp.eq.s32.totalorder %s20, 0
      %p55 = por %p53, %p54
      %p56 = scmp.ne.s32.totalorder %s42, %s43
      %p57 = scmp.eq.s32.totalorder %s21, 1
      %p58 = por %p56, %p57
      %p60 = scmp.ne.s32.totalorder %s43, %s59
      %p61 = scmp.eq.s32.totalorder %s21, 0
      %p62 = por %p60, %p61
      %s64 = sadd.s32 %s63, 1
      %p67 = scmp.eq.s32.totalorder %s15, 1
      %p68 = scmp.ne.s32.totalorder %s63, %s65
      %p69 = scmp.eq.s32.totalorder %s15, 0
      %p70 = por %p68, %p69
      %p71 = scmp.ne.s32.totalorder %s63, %s65
      %p72 = scmp.eq.s32.totalorder %s20, 1
      %p73 = por %p71, %p72
      %p74 = scmp.ne.s32.totalorder %s65, %s66
      %p75 = scmp.eq.s32.totalorder %s20, 0
      %p76 = por %p74, %p75
      %p77 = scmp.ne.s32.totalorder %s65, %s66
      %p78 = scmp.eq.s32.totalorder %s21, 1
      %p79 = por %p77, %p78
      %p81 = scmp.ne.s32.totalorder %s66, %s80
      %p82 = scmp.eq.s32.totalorder %s21, 0
      %p83 = por %p81, %p82
      %s84 = ssub.s32 %s22, %s34
      %s85 = ssub.s32 %s23, %s30
      %s86 = sor.u32 %s84, %s85
      %p87 = scmp.eq.s32.totalorder %s86, 0
      %s89 = sadd.s32 %s88, 1
      %s90 = scalar_select %p87, %s88, %s89
      %p93 = pneg %p87
      %p94 = scmp.eq.s32.totalorder %s15, 1
      %p95 = por %p93, %p94
      %p96 = scmp.ne.s32.totalorder %s88, %s91
      %p97 = scmp.eq.s32.totalorder %s15, 0
      %p98 = por %p96, %p97
      %p99 = scmp.ne.s32.totalorder %s88, %s91
      %p100 = scmp.eq.s32.totalorder %s20, 1
      %p101 = por %p99, %p100
      %p102 = scmp.ne.s32.totalorder %s91, %s92
      %p103 = scmp.eq.s32.totalorder %s20, 0
      %p104 = por %p102, %p103
      %p105 = scmp.ne.s32.totalorder %s91, %s92
      %p106 = scmp.eq.s32.totalorder %s21, 1
      %p107 = por %p105, %p106
      %p109 = scmp.ne.s32.totalorder %s92, %s108
      %p110 = scmp.eq.s32.totalorder %s21, 0
      %p111 = por %p109, %p110
      %p112 = scmp.le.s32.totalorder 1, %s15
      %p113 = scmp.lt.s32.totalorder %s15, 3
      %p114 = pnand %p112, %p113
      %p115 = pneg %p114
      // Predicated region
      $region9: #{tpu_custom_call.1} parent=5 // pred_check
        _
      $region10: #{tpu_custom_call.1} parent=5 // pred_check_branch
        %117 = sbr.rel (%p114) target = $region12
      $region11: #{tpu_custom_call.1} parent=5 // pred_region
        %s118 = ssub.s32 %s15, 1
        // Predicated region
        $region13: #{tpu_custom_call.1} parent=11 // pred_check
          %p119 = pneg %p76
        $region14: #{tpu_custom_call.1} parent=11 // pred_check_branch
          %121 = sbr.rel (%p119) target = $region16
        $region15: #{tpu_custom_call.1} parent=11 // pred_region
          %s123 = ssub.s32 16384, 16384
          %124 = vsyncadd [#allocation6], %s123
          %s125 = sshll.u32 [#allocation5], 4
          %s126 = int_to_ptr.vmem [resolvable:$true] %s125
          %131 = dma.hbm_to_vmem [thread:$0]  %s1, 16384, %s126, [#allocation6], 128, 128, 8
        $region16: #{tpu_custom_call.1} parent=11 // pred_fallthru
          _
      $region12: #{tpu_custom_call.1} parent=5 // pred_fallthru
        _
      %p132 = scmp.lt.s32.totalorder %s15, 2
      // Predicated region
      $region17: #{tpu_custom_call.1} parent=5 // pred_check
        %p133 = pneg %p132
      $region18: #{tpu_custom_call.1} parent=5 // pred_check_branch
        %135 = sbr.rel (%p133) target = $region20
      $region19: #{tpu_custom_call.1} parent=5 // pred_region
        // Predicated region
        $region21: #{tpu_custom_call.1} parent=19 // pred_check
          %p136 = pneg %p49
        $region22: #{tpu_custom_call.1} parent=19 // pred_check_branch
          %138 = sbr.rel (%p136) target = $region24
        $region23: #{tpu_custom_call.1} parent=19 // pred_region
          %s139 = sand.u32 %s39, 1
          %s140 = scalar_lea.sflag [#allocation3], %s139
          %s141 = sand.u32 %s39, 1
          %s142 = smul.addr %s141, 32
          %s143 = scalar_lea.vmem [#allocation2], %s142
          %s145 = ssub.s32 512, 512
          %146 = vsyncadd %s140, %s145
          %s147 = smul.addr %s22, 4
          %s148 = sadd.s32 %s23, %s147
          %s149 = smul.addr %s148, 128
          %s150 = scalar_lea.hbm %s0, %s149
          %s151 = sshll.u32 %s143, 4
          %s152 = int_to_ptr.vmem [resolvable:$true] %s151
          %157 = dma.hbm_to_vmem [thread:$0]  %s150, 512, %s152, %s140, 128, 128, 8
        $region24: #{tpu_custom_call.1} parent=19 // pred_fallthru
          _
      $region20: #{tpu_custom_call.1} parent=5 // pred_fallthru
        _
      %p158 = scmp.le.s32.totalorder 1, %s15
      %p159 = scmp.lt.s32.totalorder %s15, 3
      %p160 = pnand %p158, %p159
      %p161 = pneg %p160
      // Predicated region
      $region25: #{tpu_custom_call.1} parent=5 // pred_check
        _
      $region26: #{tpu_custom_call.1} parent=5 // pred_check_branch
        %163 = sbr.rel (%p160) target = $region28
      $region27: #{tpu_custom_call.1} parent=5 // pred_region
        %s164 = ssub.s32 %s15, 1
        %s165 = sand.u32 %s42, 1
        %s166 = scalar_lea.sflag [#allocation3], %s165
        %s167 = sand.u32 %s42, 1
        %s168 = smul.addr %s167, 32
        %s169 = scalar_lea.vmem [#allocation2], %s168
        // Predicated region
        $region29: #{tpu_custom_call.1} parent=27 // pred_check
          %p170 = pneg %p55
        $region30: #{tpu_custom_call.1} parent=27 // pred_check_branch
          %172 = sbr.rel (%p170) target = $region32
        $region31: #{tpu_custom_call.1} parent=27 // pred_region
          %173 = dma.done %s166, 512
        $region32: #{tpu_custom_call.1} parent=27 // pred_fallthru
          _
        // Predicated region
        $region33: #{tpu_custom_call.1} parent=27 // pred_check
          %p174 = pneg %p76
        $region34: #{tpu_custom_call.1} parent=27 // pred_check_branch
          %176 = sbr.rel (%p174) target = $region36
        $region35: #{tpu_custom_call.1} parent=27 // pred_region
          %177 = dma.done [#allocation6], 16384
        $region36: #{tpu_custom_call.1} parent=27 // pred_fallthru
          _
        %s178 = sand.u32 %s42, 1
        %s179 = scalar_lea.sflag [#allocation3], %s178
        %s180 = sand.u32 %s42, 1
        %s181 = smul.addr %s180, 32
        %s182 = scalar_lea.vmem [#allocation2], %s181
        %p183 = pneg %p55
        %p184 = pneg %p52
        %p185 = pneg %p76
        %p186 = pneg %p73
        %p187 = pneg %p104
        %p188 = pneg %p101
        %s189 = sand.u32 %s91, 1
        %s190 = scalar_lea.sflag [#allocation4], %s189
        %s191 = sand.u32 %s91, 1
        %s192 = smul.addr %s191, 288
        %s193 = scalar_lea.vmem [#allocation7], %s192
        %v194 = vld [vmem:[%s169] sm:$0xff]
        %s195 = sadd.s32 0, 8
        %s196 = scalar_lea.vmem %s169, %s195 [#allocation2]
        %v197 = vld [vmem:[%s196] sm:$0xff]
        %s198 = sadd.s32 0, 16
        %s199 = scalar_lea.vmem %s169, %s198 [#allocation2]
        %v200 = vld [vmem:[%s199] sm:$0xff]
        %s201 = sadd.s32 0, 24
        %s202 = scalar_lea.vmem %s169, %s201 [#allocation2]
        %v203 = vld [vmem:[%s202] sm:$0xff]
        %s204 = scalar_lea.vmem [#allocation5], 1000
        %v205 = vld [vmem:[%s204] sm:$0xff]
        %s206 = scalar_lea.vmem [#allocation5], 1008
        %v207 = vld [vmem:[%s206] sm:$0xff]
        %v208 = vld [vmem:[#allocation5] sm:$0xff]
        %v209 = vmul.f32 %v208, %v194
        %s210 = scalar_lea.vmem [#allocation5], 8
        %v211 = vld [vmem:[%s210] sm:$0xff]
        %v212 = vmul.f32 %v211, %v197
        %v213 = vadd.f32 %v209, %v212
        %s214 = scalar_lea.vmem [#allocation5], 16
        %v215 = vld [vmem:[%s214] sm:$0xff]
        %v216 = vmul.f32 %v215, %v200
        %v217 = vadd.f32 %v213, %v216
        %s218 = scalar_lea.vmem [#allocation5], 24
        %v219 = vld [vmem:[%s218] sm:$0xff]
        %v220 = vmul.f32 %v219, %v203
        %v221 = vadd.f32 %v217, %v220
        %s222 = scalar_lea.vmem [#allocation5], 512
        %v223 = vld [vmem:[%s222] sm:$0xff]
        %v224 = vadd.f32 %v221, %v223
        %v225 = vmul.f32 %v205, %v224
        %v226 = vmax.f32 %v224, %v225
        %s227 = scalar_lea.vmem [#allocation5], 128
        %v228 = vld [vmem:[%s227] sm:$0xff]
        %v229 = vmul.f32 %v228, %v194
        %s230 = scalar_lea.vmem [#allocation5], 136
        %v231 = vld [vmem:[%s230] sm:$0xff]
        %v232 = vmul.f32 %v231, %v197
        %v233 = vadd.f32 %v229, %v232
        %s234 = scalar_lea.vmem [#allocation5], 144
        %v235 = vld [vmem:[%s234] sm:$0xff]
        %v236 = vmul.f32 %v235, %v200
        %v237 = vadd.f32 %v233, %v236
        %s238 = scalar_lea.vmem [#allocation5], 152
        %v239 = vld [vmem:[%s238] sm:$0xff]
        %v240 = vmul.f32 %v239, %v203
        %v241 = vadd.f32 %v237, %v240
        %s242 = scalar_lea.vmem [#allocation5], 544
        %v243 = vld [vmem:[%s242] sm:$0xff]
        %v244 = vadd.f32 %v241, %v243
        %v245 = vmul.f32 %v205, %v244
        %v246 = vmax.f32 %v244, %v245
        %s247 = scalar_lea.vmem [#allocation5], 256
        %v248 = vld [vmem:[%s247] sm:$0xff]
        %v249 = vmul.f32 %v248, %v194
        %s250 = scalar_lea.vmem [#allocation5], 264
        %v251 = vld [vmem:[%s250] sm:$0xff]
        %v252 = vmul.f32 %v251, %v197
        %v253 = vadd.f32 %v249, %v252
        %s254 = scalar_lea.vmem [#allocation5], 272
        %v255 = vld [vmem:[%s254] sm:$0xff]
        %v256 = vmul.f32 %v255, %v200
        %v257 = vadd.f32 %v253, %v256
        %s258 = scalar_lea.vmem [#allocation5], 280
        %v259 = vld [vmem:[%s258] sm:$0xff]
        %v260 = vmul.f32 %v259, %v203
        %v261 = vadd.f32 %v257, %v260
        %s262 = scalar_lea.vmem [#allocation5], 576
        %v263 = vld [vmem:[%s262] sm:$0xff]
        %v264 = vadd.f32 %v261, %v263
        %v265 = vmul.f32 %v205, %v264
        %v266 = vmax.f32 %v264, %v265
        %s267 = scalar_lea.vmem [#allocation5], 384
        %v268 = vld [vmem:[%s267] sm:$0xff]
        %v269 = vmul.f32 %v268, %v194
        %s270 = scalar_lea.vmem [#allocation5], 392
        %v271 = vld [vmem:[%s270] sm:$0xff]
        %v272 = vmul.f32 %v271, %v197
        %v273 = vadd.f32 %v269, %v272
        %s274 = scalar_lea.vmem [#allocation5], 400
        %v275 = vld [vmem:[%s274] sm:$0xff]
        %v276 = vmul.f32 %v275, %v200
        %v277 = vadd.f32 %v273, %v276
        %s278 = scalar_lea.vmem [#allocation5], 408
        %v279 = vld [vmem:[%s278] sm:$0xff]
        %v280 = vmul.f32 %v279, %v203
        %v281 = vadd.f32 %v277, %v280
        %s282 = scalar_lea.vmem [#allocation5], 608
        %v283 = vld [vmem:[%s282] sm:$0xff]
        %v284 = vadd.f32 %v281, %v283
        %v285 = vmul.f32 %v205, %v284
        %v286 = vmax.f32 %v284, %v285
        %s287 = scalar_lea.vmem [#allocation5], 640
        %v288 = vld [vmem:[%s287] sm:$0xff]
        %v289 = vmul.f32 %v288, %v226
        %s290 = scalar_lea.vmem [#allocation5], 648
        %v291 = vld [vmem:[%s290] sm:$0xff]
        %v292 = vmul.f32 %v291, %v246
        %v293 = vadd.f32 %v289, %v292
        %s294 = scalar_lea.vmem [#allocation5], 656
        %v295 = vld [vmem:[%s294] sm:$0xff]
        %v296 = vmul.f32 %v295, %v266
        %v297 = vadd.f32 %v293, %v296
        %s298 = scalar_lea.vmem [#allocation5], 664
        %v299 = vld [vmem:[%s298] sm:$0xff]
        %v300 = vmul.f32 %v299, %v286
        %v301 = vadd.f32 %v297, %v300
        %s302 = scalar_lea.vmem [#allocation5], 928
        %v303 = vld [vmem:[%s302] sm:$0xff]
        %v304 = vadd.f32 %v301, %v303
        %v305 = vmul.f32 %v207, %v304
        %v306 = vmax.f32 %v304, %v305
        %s307 = scalar_lea.vmem [#allocation5], 672
        %v308 = vld [vmem:[%s307] sm:$0xff]
        %v309 = vmul.f32 %v308, %v226
        %s310 = scalar_lea.vmem [#allocation5], 680
        %v311 = vld [vmem:[%s310] sm:$0xff]
        %v312 = vmul.f32 %v311, %v246
        %v313 = vadd.f32 %v309, %v312
        %s314 = scalar_lea.vmem [#allocation5], 688
        %v315 = vld [vmem:[%s314] sm:$0xff]
        %v316 = vmul.f32 %v315, %v266
        %v317 = vadd.f32 %v313, %v316
        %s318 = scalar_lea.vmem [#allocation5], 696
        %v319 = vld [vmem:[%s318] sm:$0xff]
        %v320 = vmul.f32 %v319, %v286
        %v321 = vadd.f32 %v317, %v320
        %s322 = scalar_lea.vmem [#allocation5], 936
        %v323 = vld [vmem:[%s322] sm:$0xff]
        %v324 = vadd.f32 %v321, %v323
        %v325 = vmul.f32 %v207, %v324
        %v326 = vmax.f32 %v324, %v325
        %s327 = scalar_lea.vmem [#allocation5], 704
        %v328 = vld [vmem:[%s327] sm:$0xff]
        %v329 = vmul.f32 %v328, %v226
        %s330 = scalar_lea.vmem [#allocation5], 712
        %v331 = vld [vmem:[%s330] sm:$0xff]
        %v332 = vmul.f32 %v331, %v246
        %v333 = vadd.f32 %v329, %v332
        %s334 = scalar_lea.vmem [#allocation5], 720
        %v335 = vld [vmem:[%s334] sm:$0xff]
        %v336 = vmul.f32 %v335, %v266
        %v337 = vadd.f32 %v333, %v336
        %s338 = scalar_lea.vmem [#allocation5], 728
        %v339 = vld [vmem:[%s338] sm:$0xff]
        %v340 = vmul.f32 %v339, %v286
        %v341 = vadd.f32 %v337, %v340
        %s342 = scalar_lea.vmem [#allocation5], 944
        %v343 = vld [vmem:[%s342] sm:$0xff]
        %v344 = vadd.f32 %v341, %v343
        %v345 = vmul.f32 %v207, %v344
        %v346 = vmax.f32 %v344, %v345
        %s347 = scalar_lea.vmem [#allocation5], 736
        %v348 = vld [vmem:[%s347] sm:$0xff]
        %v349 = vmul.f32 %v348, %v226
        %s350 = scalar_lea.vmem [#allocation5], 744
        %v351 = vld [vmem:[%s350] sm:$0xff]
        %v352 = vmul.f32 %v351, %v246
        %v353 = vadd.f32 %v349, %v352
        %s354 = scalar_lea.vmem [#allocation5], 752
        %v355 = vld [vmem:[%s354] sm:$0xff]
        %v356 = vmul.f32 %v355, %v266
        %v357 = vadd.f32 %v353, %v356
        %s358 = scalar_lea.vmem [#allocation5], 760
        %v359 = vld [vmem:[%s358] sm:$0xff]
        %v360 = vmul.f32 %v359, %v286
        %v361 = vadd.f32 %v357, %v360
        %s362 = scalar_lea.vmem [#allocation5], 952
        %v363 = vld [vmem:[%s362] sm:$0xff]
        %v364 = vadd.f32 %v361, %v363
        %v365 = vmul.f32 %v207, %v364
        %v366 = vmax.f32 %v364, %v365
        %s367 = scalar_lea.vmem [#allocation5], 768
        %v368 = vld [vmem:[%s367] sm:$0xff]
        %v369 = vmul.f32 %v368, %v226
        %s370 = scalar_lea.vmem [#allocation5], 776
        %v371 = vld [vmem:[%s370] sm:$0xff]
        %v372 = vmul.f32 %v371, %v246
        %v373 = vadd.f32 %v369, %v372
        %s374 = scalar_lea.vmem [#allocation5], 784
        %v375 = vld [vmem:[%s374] sm:$0xff]
        %v376 = vmul.f32 %v375, %v266
        %v377 = vadd.f32 %v373, %v376
        %s378 = scalar_lea.vmem [#allocation5], 792
        %v379 = vld [vmem:[%s378] sm:$0xff]
        %v380 = vmul.f32 %v379, %v286
        %v381 = vadd.f32 %v377, %v380
        %s382 = scalar_lea.vmem [#allocation5], 960
        %v383 = vld [vmem:[%s382] sm:$0xff]
        %v384 = vadd.f32 %v381, %v383
        %v385 = vmul.f32 %v207, %v384
        %v386 = vmax.f32 %v384, %v385
        %s387 = scalar_lea.vmem [#allocation5], 800
        %v388 = vld [vmem:[%s387] sm:$0xff]
        %v389 = vmul.f32 %v388, %v226
        %s390 = scalar_lea.vmem [#allocation5], 808
        %v391 = vld [vmem:[%s390] sm:$0xff]
        %v392 = vmul.f32 %v391, %v246
        %v393 = vadd.f32 %v389, %v392
        %s394 = scalar_lea.vmem [#allocation5], 816
        %v395 = vld [vmem:[%s394] sm:$0xff]
        %v396 = vmul.f32 %v395, %v266
        %v397 = vadd.f32 %v393, %v396
        %s398 = scalar_lea.vmem [#allocation5], 824
        %v399 = vld [vmem:[%s398] sm:$0xff]
        %v400 = vmul.f32 %v399, %v286
        %v401 = vadd.f32 %v397, %v400
        %s402 = scalar_lea.vmem [#allocation5], 968
        %v403 = vld [vmem:[%s402] sm:$0xff]
        %v404 = vadd.f32 %v401, %v403
        %v405 = vmul.f32 %v207, %v404
        %v406 = vmax.f32 %v404, %v405
        %s407 = scalar_lea.vmem [#allocation5], 832
        %v408 = vld [vmem:[%s407] sm:$0xff]
        %v409 = vmul.f32 %v408, %v226
        %s410 = scalar_lea.vmem [#allocation5], 840
        %v411 = vld [vmem:[%s410] sm:$0xff]
        %v412 = vmul.f32 %v411, %v246
        %v413 = vadd.f32 %v409, %v412
        %s414 = scalar_lea.vmem [#allocation5], 848
        %v415 = vld [vmem:[%s414] sm:$0xff]
        %v416 = vmul.f32 %v415, %v266
        %v417 = vadd.f32 %v413, %v416
        %s418 = scalar_lea.vmem [#allocation5], 856
        %v419 = vld [vmem:[%s418] sm:$0xff]
        %v420 = vmul.f32 %v419, %v286
        %v421 = vadd.f32 %v417, %v420
        %s422 = scalar_lea.vmem [#allocation5], 976
        %v423 = vld [vmem:[%s422] sm:$0xff]
        %v424 = vadd.f32 %v421, %v423
        %v425 = vmul.f32 %v207, %v424
        %v426 = vmax.f32 %v424, %v425
        %s427 = scalar_lea.vmem [#allocation5], 864
        %v428 = vld [vmem:[%s427] sm:$0xff]
        %v429 = vmul.f32 %v428, %v226
        %s430 = scalar_lea.vmem [#allocation5], 872
        %v431 = vld [vmem:[%s430] sm:$0xff]
        %v432 = vmul.f32 %v431, %v246
        %v433 = vadd.f32 %v429, %v432
        %s434 = scalar_lea.vmem [#allocation5], 880
        %v435 = vld [vmem:[%s434] sm:$0xff]
        %v436 = vmul.f32 %v435, %v266
        %v437 = vadd.f32 %v433, %v436
        %s438 = scalar_lea.vmem [#allocation5], 888
        %v439 = vld [vmem:[%s438] sm:$0xff]
        %v440 = vmul.f32 %v439, %v286
        %v441 = vadd.f32 %v437, %v440
        %s442 = scalar_lea.vmem [#allocation5], 984
        %v443 = vld [vmem:[%s442] sm:$0xff]
        %v444 = vadd.f32 %v441, %v443
        %v445 = vmul.f32 %v207, %v444
        %v446 = vmax.f32 %v444, %v445
        %s447 = scalar_lea.vmem [#allocation5], 896
        %v448 = vld [vmem:[%s447] sm:$0xff]
        %v449 = vmul.f32 %v448, %v226
        %s450 = scalar_lea.vmem [#allocation5], 904
        %v451 = vld [vmem:[%s450] sm:$0xff]
        %v452 = vmul.f32 %v451, %v246
        %v453 = vadd.f32 %v449, %v452
        %s454 = scalar_lea.vmem [#allocation5], 912
        %v455 = vld [vmem:[%s454] sm:$0xff]
        %v456 = vmul.f32 %v455, %v266
        %v457 = vadd.f32 %v453, %v456
        %s458 = scalar_lea.vmem [#allocation5], 920
        %v459 = vld [vmem:[%s458] sm:$0xff]
        %v460 = vmul.f32 %v459, %v286
        %v461 = vadd.f32 %v457, %v460
        %s462 = scalar_lea.vmem [#allocation5], 992
        %v463 = vld [vmem:[%s462] sm:$0xff]
        %v464 = vadd.f32 %v461, %v463
        %v465 = vmul.f32 %v207, %v464
        %v466 = vmax.f32 %v464, %v465
        %v467 = vmax.f32 %v306, %v326
        %v468 = vmax.f32 %v467, %v346
        %v469 = vmax.f32 %v468, %v366
        %v470 = vmax.f32 %v469, %v386
        %v471 = vmax.f32 %v470, %v406
        %v472 = vmax.f32 %v471, %v426
        %v473 = vmax.f32 %v472, %v446
        %v474 = vmax.f32 %v473, %v466
        %v475 = vsub.f32 %v306, %v474
        %v476 = vmul.f32 %v475, 1.442695
        %v477 = vpow.pop %v476
        %v478 = vsub.f32 %v326, %v474
        %v479 = vmul.f32 %v478, 1.442695
        %v480 = vpow.pop %v479
        %v481 = vsub.f32 %v346, %v474
        %v482 = vmul.f32 %v481, 1.442695
        %v483 = vpow.pop %v482
        %v484 = vsub.f32 %v366, %v474
        %v485 = vmul.f32 %v484, 1.442695
        %v486 = vpow.pop %v485
        %v487 = vsub.f32 %v386, %v474
        %v488 = vmul.f32 %v487, 1.442695
        %v489 = vpow.pop %v488
        %v490 = vsub.f32 %v406, %v474
        %v491 = vmul.f32 %v490, 1.442695
        %v492 = vpow.pop %v491
        %v493 = vsub.f32 %v426, %v474
        %v494 = vmul.f32 %v493, 1.442695
        %v495 = vpow.pop %v494
        %v496 = vsub.f32 %v446, %v474
        %v497 = vmul.f32 %v496, 1.442695
        %v498 = vpow.pop %v497
        %v499 = vsub.f32 %v466, %v474
        %v500 = vmul.f32 %v499, 1.442695
        %v501 = vpow.pop %v500
        %v502 = vadd.f32 %v477, %v480
        %v503 = vadd.f32 %v502, %v483
        %v504 = vadd.f32 %v503, %v486
        %v505 = vadd.f32 %v504, %v489
        %v506 = vadd.f32 %v505, %v492
        %v507 = vadd.f32 %v506, %v495
        %v508 = vadd.f32 %v507, %v498
        %v509 = vadd.f32 %v508, %v501
        %v510 = vrcp.pop %v509
        %v511 = vmul.f32 %v477, %v510
        %512 = vst [vmem:[%s193] sm:$0xff] %v511
        %v513 = vmul.f32 %v480, %v510
        %s514 = scalar_lea.vmem %s193, %s195 [#allocation7]
        %515 = vst [vmem:[%s514] sm:$0xff] %v513
        %v516 = vmul.f32 %v483, %v510
        %s517 = scalar_lea.vmem %s193, %s198 [#allocation7]
        %518 = vst [vmem:[%s517] sm:$0xff] %v516
        %v519 = vmul.f32 %v486, %v510
        %s520 = scalar_lea.vmem %s193, %s201 [#allocation7]
        %521 = vst [vmem:[%s520] sm:$0xff] %v519
        %v522 = vmul.f32 %v489, %v510
        %s523 = sadd.s32 0, 32
        %s524 = scalar_lea.vmem %s193, %s523 [#allocation7]
        %525 = vst [vmem:[%s524] sm:$0xff] %v522
        %v526 = vmul.f32 %v492, %v510
        %s527 = sadd.s32 0, 40
        %s528 = scalar_lea.vmem %s193, %s527 [#allocation7]
        %529 = vst [vmem:[%s528] sm:$0xff] %v526
        %v530 = vmul.f32 %v495, %v510
        %s531 = sadd.s32 0, 48
        %s532 = scalar_lea.vmem %s193, %s531 [#allocation7]
        %533 = vst [vmem:[%s532] sm:$0xff] %v530
        %v534 = vmul.f32 %v498, %v510
        %s535 = sadd.s32 0, 56
        %s536 = scalar_lea.vmem %s193, %s535 [#allocation7]
        %537 = vst [vmem:[%s536] sm:$0xff] %v534
        %v538 = vmul.f32 %v501, %v510
        %s539 = sadd.s32 0, 64
        %s540 = scalar_lea.vmem %s193, %s539 [#allocation7]
        %541 = vst [vmem:[%s540] sm:$0xff] %v538
        %s542 = scalar_lea.vmem [#allocation5], 32
        %v543 = vld [vmem:[%s542] sm:$0xff]
        %v544 = vmul.f32 %v543, %v194
        %s545 = scalar_lea.vmem [#allocation5], 40
        %v546 = vld [vmem:[%s545] sm:$0xff]
        %v547 = vmul.f32 %v546, %v197
        %v548 = vadd.f32 %v544, %v547
        %s549 = scalar_lea.vmem [#allocation5], 48
        %v550 = vld [vmem:[%s549] sm:$0xff]
        %v551 = vmul.f32 %v550, %v200
        %v552 = vadd.f32 %v548, %v551
        %s553 = scalar_lea.vmem [#allocation5], 56
        %v554 = vld [vmem:[%s553] sm:$0xff]
        %v555 = vmul.f32 %v554, %v203
        %v556 = vadd.f32 %v552, %v555
        %s557 = scalar_lea.vmem [#allocation5], 520
        %v558 = vld [vmem:[%s557] sm:$0xff]
        %v559 = vadd.f32 %v556, %v558
        %v560 = vmul.f32 %v205, %v559
        %v561 = vmax.f32 %v559, %v560
        %s562 = scalar_lea.vmem [#allocation5], 160
        %v563 = vld [vmem:[%s562] sm:$0xff]
        %v564 = vmul.f32 %v563, %v194
        %s565 = scalar_lea.vmem [#allocation5], 168
        %v566 = vld [vmem:[%s565] sm:$0xff]
        %v567 = vmul.f32 %v566, %v197
        %v568 = vadd.f32 %v564, %v567
        %s569 = scalar_lea.vmem [#allocation5], 176
        %v570 = vld [vmem:[%s569] sm:$0xff]
        %v571 = vmul.f32 %v570, %v200
        %v572 = vadd.f32 %v568, %v571
        %s573 = scalar_lea.vmem [#allocation5], 184
        %v574 = vld [vmem:[%s573] sm:$0xff]
        %v575 = vmul.f32 %v574, %v203
        %v576 = vadd.f32 %v572, %v575
        %s577 = scalar_lea.vmem [#allocation5], 552
        %v578 = vld [vmem:[%s577] sm:$0xff]
        %v579 = vadd.f32 %v576, %v578
        %v580 = vmul.f32 %v205, %v579
        %v581 = vmax.f32 %v579, %v580
        %s582 = scalar_lea.vmem [#allocation5], 288
        %v583 = vld [vmem:[%s582] sm:$0xff]
        %v584 = vmul.f32 %v583, %v194
        %s585 = scalar_lea.vmem [#allocation5], 296
        %v586 = vld [vmem:[%s585] sm:$0xff]
        %v587 = vmul.f32 %v586, %v197
        %v588 = vadd.f32 %v584, %v587
        %s589 = scalar_lea.vmem [#allocation5], 304
        %v590 = vld [vmem:[%s589] sm:$0xff]
        %v591 = vmul.f32 %v590, %v200
        %v592 = vadd.f32 %v588, %v591
        %s593 = scalar_lea.vmem [#allocation5], 312
        %v594 = vld [vmem:[%s593] sm:$0xff]
        %v595 = vmul.f32 %v594, %v203
        %v596 = vadd.f32 %v592, %v595
        %s597 = scalar_lea.vmem [#allocation5], 584
        %v598 = vld [vmem:[%s597] sm:$0xff]
        %v599 = vadd.f32 %v596, %v598
        %v600 = vmul.f32 %v205, %v599
        %v601 = vmax.f32 %v599, %v600
        %s602 = scalar_lea.vmem [#allocation5], 416
        %v603 = vld [vmem:[%s602] sm:$0xff]
        %v604 = vmul.f32 %v603, %v194
        %s605 = scalar_lea.vmem [#allocation5], 424
        %v606 = vld [vmem:[%s605] sm:$0xff]
        %v607 = vmul.f32 %v606, %v197
        %v608 = vadd.f32 %v604, %v607
        %s609 = scalar_lea.vmem [#allocation5], 432
        %v610 = vld [vmem:[%s609] sm:$0xff]
        %v611 = vmul.f32 %v610, %v200
        %v612 = vadd.f32 %v608, %v611
        %s613 = scalar_lea.vmem [#allocation5], 440
        %v614 = vld [vmem:[%s613] sm:$0xff]
        %v615 = vmul.f32 %v614, %v203
        %v616 = vadd.f32 %v612, %v615
        %s617 = scalar_lea.vmem [#allocation5], 616
        %v618 = vld [vmem:[%s617] sm:$0xff]
        %v619 = vadd.f32 %v616, %v618
        %v620 = vmul.f32 %v205, %v619
        %v621 = vmax.f32 %v619, %v620
        %v622 = vld [vmem:[%s287] sm:$0xff]
        %v623 = vmul.f32 %v622, %v561
        %v624 = vld [vmem:[%s290] sm:$0xff]
        %v625 = vmul.f32 %v624, %v581
        %v626 = vadd.f32 %v623, %v625
        %v627 = vld [vmem:[%s294] sm:$0xff]
        %v628 = vmul.f32 %v627, %v601
        %v629 = vadd.f32 %v626, %v628
        %v630 = vld [vmem:[%s298] sm:$0xff]
        %v631 = vmul.f32 %v630, %v621
        %v632 = vadd.f32 %v629, %v631
        %v633 = vld [vmem:[%s302] sm:$0xff]
        %v634 = vadd.f32 %v632, %v633
        %v635 = vmul.f32 %v207, %v634
        %v636 = vmax.f32 %v634, %v635
        %v637 = vld [vmem:[%s307] sm:$0xff]
        %v638 = vmul.f32 %v637, %v561
        %v639 = vld [vmem:[%s310] sm:$0xff]
        %v640 = vmul.f32 %v639, %v581
        %v641 = vadd.f32 %v638, %v640
        %v642 = vld [vmem:[%s314] sm:$0xff]
        %v643 = vmul.f32 %v642, %v601
        %v644 = vadd.f32 %v641, %v643
        %v645 = vld [vmem:[%s318] sm:$0xff]
        %v646 = vmul.f32 %v645, %v621
        %v647 = vadd.f32 %v644, %v646
        %v648 = vld [vmem:[%s322] sm:$0xff]
        %v649 = vadd.f32 %v647, %v648
        %v650 = vmul.f32 %v207, %v649
        %v651 = vmax.f32 %v649, %v650
        %v652 = vld [vmem:[%s327] sm:$0xff]
        %v653 = vmul.f32 %v652, %v561
        %v654 = vld [vmem:[%s330] sm:$0xff]
        %v655 = vmul.f32 %v654, %v581
        %v656 = vadd.f32 %v653, %v655
        %v657 = vld [vmem:[%s334] sm:$0xff]
        %v658 = vmul.f32 %v657, %v601
        %v659 = vadd.f32 %v656, %v658
        %v660 = vld [vmem:[%s338] sm:$0xff]
        %v661 = vmul.f32 %v660, %v621
        %v662 = vadd.f32 %v659, %v661
        %v663 = vld [vmem:[%s342] sm:$0xff]
        %v664 = vadd.f32 %v662, %v663
        %v665 = vmul.f32 %v207, %v664
        %v666 = vmax.f32 %v664, %v665
        %v667 = vld [vmem:[%s347] sm:$0xff]
        %v668 = vmul.f32 %v667, %v561
        %v669 = vld [vmem:[%s350] sm:$0xff]
        %v670 = vmul.f32 %v669, %v581
        %v671 = vadd.f32 %v668, %v670
        %v672 = vld [vmem:[%s354] sm:$0xff]
        %v673 = vmul.f32 %v672, %v601
        %v674 = vadd.f32 %v671, %v673
        %v675 = vld [vmem:[%s358] sm:$0xff]
        %v676 = vmul.f32 %v675, %v621
        %v677 = vadd.f32 %v674, %v676
        %v678 = vld [vmem:[%s362] sm:$0xff]
        %v679 = vadd.f32 %v677, %v678
        %v680 = vmul.f32 %v207, %v679
        %v681 = vmax.f32 %v679, %v680
        %v682 = vld [vmem:[%s367] sm:$0xff]
        %v683 = vmul.f32 %v682, %v561
        %v684 = vld [vmem:[%s370] sm:$0xff]
        %v685 = vmul.f32 %v684, %v581
        %v686 = vadd.f32 %v683, %v685
        %v687 = vld [vmem:[%s374] sm:$0xff]
        %v688 = vmul.f32 %v687, %v601
        %v689 = vadd.f32 %v686, %v688
        %v690 = vld [vmem:[%s378] sm:$0xff]
        %v691 = vmul.f32 %v690, %v621
        %v692 = vadd.f32 %v689, %v691
        %v693 = vld [vmem:[%s382] sm:$0xff]
        %v694 = vadd.f32 %v692, %v693
        %v695 = vmul.f32 %v207, %v694
        %v696 = vmax.f32 %v694, %v695
        %v697 = vld [vmem:[%s387] sm:$0xff]
        %v698 = vmul.f32 %v697, %v561
        %v699 = vld [vmem:[%s390] sm:$0xff]
        %v700 = vmul.f32 %v699, %v581
        %v701 = vadd.f32 %v698, %v700
        %v702 = vld [vmem:[%s394] sm:$0xff]
        %v703 = vmul.f32 %v702, %v601
        %v704 = vadd.f32 %v701, %v703
        %v705 = vld [vmem:[%s398] sm:$0xff]
        %v706 = vmul.f32 %v705, %v621
        %v707 = vadd.f32 %v704, %v706
        %v708 = vld [vmem:[%s402] sm:$0xff]
        %v709 = vadd.f32 %v707, %v708
        %v710 = vmul.f32 %v207, %v709
        %v711 = vmax.f32 %v709, %v710
        %v712 = vld [vmem:[%s407] sm:$0xff]
        %v713 = vmul.f32 %v712, %v561
        %v714 = vld [vmem:[%s410] sm:$0xff]
        %v715 = vmul.f32 %v714, %v581
        %v716 = vadd.f32 %v713, %v715
        %v717 = vld [vmem:[%s414] sm:$0xff]
        %v718 = vmul.f32 %v717, %v601
        %v719 = vadd.f32 %v716, %v718
        %v720 = vld [vmem:[%s418] sm:$0xff]
        %v721 = vmul.f32 %v720, %v621
        %v722 = vadd.f32 %v719, %v721
        %v723 = vld [vmem:[%s422] sm:$0xff]
        %v724 = vadd.f32 %v722, %v723
        %v725 = vmul.f32 %v207, %v724
        %v726 = vmax.f32 %v724, %v725
        %v727 = vld [vmem:[%s427] sm:$0xff]
        %v728 = vmul.f32 %v727, %v561
        %v729 = vld [vmem:[%s430] sm:$0xff]
        %v730 = vmul.f32 %v729, %v581
        %v731 = vadd.f32 %v728, %v730
        %v732 = vld [vmem:[%s434] sm:$0xff]
        %v733 = vmul.f32 %v732, %v601
        %v734 = vadd.f32 %v731, %v733
        %v735 = vld [vmem:[%s438] sm:$0xff]
        %v736 = vmul.f32 %v735, %v621
        %v737 = vadd.f32 %v734, %v736
        %v738 = vld [vmem:[%s442] sm:$0xff]
        %v739 = vadd.f32 %v737, %v738
        %v740 = vmul.f32 %v207, %v739
        %v741 = vmax.f32 %v739, %v740
        %v742 = vld [vmem:[%s447] sm:$0xff]
        %v743 = vmul.f32 %v742, %v561
        %v744 = vld [vmem:[%s450] sm:$0xff]
        %v745 = vmul.f32 %v744, %v581
        %v746 = vadd.f32 %v743, %v745
        %v747 = vld [vmem:[%s454] sm:$0xff]
        %v748 = vmul.f32 %v747, %v601
        %v749 = vadd.f32 %v746, %v748
        %v750 = vld [vmem:[%s458] sm:$0xff]
        %v751 = vmul.f32 %v750, %v621
        %v752 = vadd.f32 %v749, %v751
        %v753 = vld [vmem:[%s462] sm:$0xff]
        %v754 = vadd.f32 %v752, %v753
        %v755 = vmul.f32 %v207, %v754
        %v756 = vmax.f32 %v754, %v755
        %v757 = vmax.f32 %v636, %v651
        %v758 = vmax.f32 %v757, %v666
        %v759 = vmax.f32 %v758, %v681
        %v760 = vmax.f32 %v759, %v696
        %v761 = vmax.f32 %v760, %v711
        %v762 = vmax.f32 %v761, %v726
        %v763 = vmax.f32 %v762, %v741
        %v764 = vmax.f32 %v763, %v756
        %v765 = vsub.f32 %v636, %v764
        %v766 = vmul.f32 %v765, 1.442695
        %v767 = vpow.pop %v766
        %v768 = vsub.f32 %v651, %v764
        %v769 = vmul.f32 %v768, 1.442695
        %v770 = vpow.pop %v769
        %v771 = vsub.f32 %v666, %v764
        %v772 = vmul.f32 %v771, 1.442695
        %v773 = vpow.pop %v772
        %v774 = vsub.f32 %v681, %v764
        %v775 = vmul.f32 %v774, 1.442695
        %v776 = vpow.pop %v775
        %v777 = vsub.f32 %v696, %v764
        %v778 = vmul.f32 %v777, 1.442695
        %v779 = vpow.pop %v778
        %v780 = vsub.f32 %v711, %v764
        %v781 = vmul.f32 %v780, 1.442695
        %v782 = vpow.pop %v781
        %v783 = vsub.f32 %v726, %v764
        %v784 = vmul.f32 %v783, 1.442695
        %v785 = vpow.pop %v784
        %v786 = vsub.f32 %v741, %v764
        %v787 = vmul.f32 %v786, 1.442695
        %v788 = vpow.pop %v787
        %v789 = vsub.f32 %v756, %v764
        %v790 = vmul.f32 %v789, 1.442695
        %v791 = vpow.pop %v790
        %v792 = vadd.f32 %v767, %v770
        %v793 = vadd.f32 %v792, %v773
        %v794 = vadd.f32 %v793, %v776
        %v795 = vadd.f32 %v794, %v779
        %v796 = vadd.f32 %v795, %v782
        %v797 = vadd.f32 %v796, %v785
        %v798 = vadd.f32 %v797, %v788
        %v799 = vadd.f32 %v798, %v791
        %v800 = vrcp.pop %v799
        %v801 = vmul.f32 %v767, %v800
        %s802 = sadd.s32 0, 72
        %s803 = scalar_lea.vmem %s193, %s802 [#allocation7]
        %804 = vst [vmem:[%s803] sm:$0xff] %v801
        %v805 = vmul.f32 %v770, %v800
        %s806 = sadd.s32 0, 80
        %s807 = scalar_lea.vmem %s193, %s806 [#allocation7]
        %808 = vst [vmem:[%s807] sm:$0xff] %v805
        %v809 = vmul.f32 %v773, %v800
        %s810 = sadd.s32 0, 88
        %s811 = scalar_lea.vmem %s193, %s810 [#allocation7]
        %812 = vst [vmem:[%s811] sm:$0xff] %v809
        %v813 = vmul.f32 %v776, %v800
        %s814 = sadd.s32 0, 96
        %s815 = scalar_lea.vmem %s193, %s814 [#allocation7]
        %816 = vst [vmem:[%s815] sm:$0xff] %v813
        %v817 = vmul.f32 %v779, %v800
        %s818 = sadd.s32 0, 104
        %s819 = scalar_lea.vmem %s193, %s818 [#allocation7]
        %820 = vst [vmem:[%s819] sm:$0xff] %v817
        %v821 = vmul.f32 %v782, %v800
        %s822 = sadd.s32 0, 112
        %s823 = scalar_lea.vmem %s193, %s822 [#allocation7]
        %824 = vst [vmem:[%s823] sm:$0xff] %v821
        %v825 = vmul.f32 %v785, %v800
        %s826 = sadd.s32 0, 120
        %s827 = scalar_lea.vmem %s193, %s826 [#allocation7]
        %828 = vst [vmem:[%s827] sm:$0xff] %v825
        %v829 = vmul.f32 %v788, %v800
        %s830 = sadd.s32 0, 128
        %s831 = scalar_lea.vmem %s193, %s830 [#allocation7]
        %832 = vst [vmem:[%s831] sm:$0xff] %v829
        %v833 = vmul.f32 %v791, %v800
        %s834 = sadd.s32 0, 136
        %s835 = scalar_lea.vmem %s193, %s834 [#allocation7]
        %836 = vst [vmem:[%s835] sm:$0xff] %v833
        %s837 = scalar_lea.vmem [#allocation5], 64
        %v838 = vld [vmem:[%s837] sm:$0xff]
        %v839 = vmul.f32 %v838, %v194
        %s840 = scalar_lea.vmem [#allocation5], 72
        %v841 = vld [vmem:[%s840] sm:$0xff]
        %v842 = vmul.f32 %v841, %v197
        %v843 = vadd.f32 %v839, %v842
        %s844 = scalar_lea.vmem [#allocation5], 80
        %v845 = vld [vmem:[%s844] sm:$0xff]
        %v846 = vmul.f32 %v845, %v200
        %v847 = vadd.f32 %v843, %v846
        %s848 = scalar_lea.vmem [#allocation5], 88
        %v849 = vld [vmem:[%s848] sm:$0xff]
        %v850 = vmul.f32 %v849, %v203
        %v851 = vadd.f32 %v847, %v850
        %s852 = scalar_lea.vmem [#allocation5], 528
        %v853 = vld [vmem:[%s852] sm:$0xff]
        %v854 = vadd.f32 %v851, %v853
        %v855 = vmul.f32 %v205, %v854
        %v856 = vmax.f32 %v854, %v855
        %s857 = scalar_lea.vmem [#allocation5], 192
        %v858 = vld [vmem:[%s857] sm:$0xff]
        %v859 = vmul.f32 %v858, %v194
        %s860 = scalar_lea.vmem [#allocation5], 200
        %v861 = vld [vmem:[%s860] sm:$0xff]
        %v862 = vmul.f32 %v861, %v197
        %v863 = vadd.f32 %v859, %v862
        %s864 = scalar_lea.vmem [#allocation5], 208
        %v865 = vld [vmem:[%s864] sm:$0xff]
        %v866 = vmul.f32 %v865, %v200
        %v867 = vadd.f32 %v863, %v866
        %s868 = scalar_lea.vmem [#allocation5], 216
        %v869 = vld [vmem:[%s868] sm:$0xff]
        %v870 = vmul.f32 %v869, %v203
        %v871 = vadd.f32 %v867, %v870
        %s872 = scalar_lea.vmem [#allocation5], 560
        %v873 = vld [vmem:[%s872] sm:$0xff]
        %v874 = vadd.f32 %v871, %v873
        %v875 = vmul.f32 %v205, %v874
        %v876 = vmax.f32 %v874, %v875
        %s877 = scalar_lea.vmem [#allocation5], 320
        %v878 = vld [vmem:[%s877] sm:$0xff]
        %v879 = vmul.f32 %v878, %v194
        %s880 = scalar_lea.vmem [#allocation5], 328
        %v881 = vld [vmem:[%s880] sm:$0xff]
        %v882 = vmul.f32 %v881, %v197
        %v883 = vadd.f32 %v879, %v882
        %s884 = scalar_lea.vmem [#allocation5], 336
        %v885 = vld [vmem:[%s884] sm:$0xff]
        %v886 = vmul.f32 %v885, %v200
        %v887 = vadd.f32 %v883, %v886
        %s888 = scalar_lea.vmem [#allocation5], 344
        %v889 = vld [vmem:[%s888] sm:$0xff]
        %v890 = vmul.f32 %v889, %v203
        %v891 = vadd.f32 %v887, %v890
        %s892 = scalar_lea.vmem [#allocation5], 592
        %v893 = vld [vmem:[%s892] sm:$0xff]
        %v894 = vadd.f32 %v891, %v893
        %v895 = vmul.f32 %v205, %v894
        %v896 = vmax.f32 %v894, %v895
        %s897 = scalar_lea.vmem [#allocation5], 448
        %v898 = vld [vmem:[%s897] sm:$0xff]
        %v899 = vmul.f32 %v898, %v194
        %s900 = scalar_lea.vmem [#allocation5], 456
        %v901 = vld [vmem:[%s900] sm:$0xff]
        %v902 = vmul.f32 %v901, %v197
        %v903 = vadd.f32 %v899, %v902
        %s904 = scalar_lea.vmem [#allocation5], 464
        %v905 = vld [vmem:[%s904] sm:$0xff]
        %v906 = vmul.f32 %v905, %v200
        %v907 = vadd.f32 %v903, %v906
        %s908 = scalar_lea.vmem [#allocation5], 472
        %v909 = vld [vmem:[%s908] sm:$0xff]
        %v910 = vmul.f32 %v909, %v203
        %v911 = vadd.f32 %v907, %v910
        %s912 = scalar_lea.vmem [#allocation5], 624
        %v913 = vld [vmem:[%s912] sm:$0xff]
        %v914 = vadd.f32 %v911, %v913
        %v915 = vmul.f32 %v205, %v914
        %v916 = vmax.f32 %v914, %v915
        %v917 = vld [vmem:[%s287] sm:$0xff]
        %v918 = vmul.f32 %v917, %v856
        %v919 = vld [vmem:[%s290] sm:$0xff]
        %v920 = vmul.f32 %v919, %v876
        %v921 = vadd.f32 %v918, %v920
        %v922 = vld [vmem:[%s294] sm:$0xff]
        %v923 = vmul.f32 %v922, %v896
        %v924 = vadd.f32 %v921, %v923
        %v925 = vld [vmem:[%s298] sm:$0xff]
        %v926 = vmul.f32 %v925, %v916
        %v927 = vadd.f32 %v924, %v926
        %v928 = vld [vmem:[%s302] sm:$0xff]
        %v929 = vadd.f32 %v927, %v928
        %v930 = vmul.f32 %v207, %v929
        %v931 = vmax.f32 %v929, %v930
        %v932 = vld [vmem:[%s307] sm:$0xff]
        %v933 = vmul.f32 %v932, %v856
        %v934 = vld [vmem:[%s310] sm:$0xff]
        %v935 = vmul.f32 %v934, %v876
        %v936 = vadd.f32 %v933, %v935
        %v937 = vld [vmem:[%s314] sm:$0xff]
        %v938 = vmul.f32 %v937, %v896
        %v939 = vadd.f32 %v936, %v938
        %v940 = vld [vmem:[%s318] sm:$0xff]
        %v941 = vmul.f32 %v940, %v916
        %v942 = vadd.f32 %v939, %v941
        %v943 = vld [vmem:[%s322] sm:$0xff]
        %v944 = vadd.f32 %v942, %v943
        %v945 = vmul.f32 %v207, %v944
        %v946 = vmax.f32 %v944, %v945
        %v947 = vld [vmem:[%s327] sm:$0xff]
        %v948 = vmul.f32 %v947, %v856
        %v949 = vld [vmem:[%s330] sm:$0xff]
        %v950 = vmul.f32 %v949, %v876
        %v951 = vadd.f32 %v948, %v950
        %v952 = vld [vmem:[%s334] sm:$0xff]
        %v953 = vmul.f32 %v952, %v896
        %v954 = vadd.f32 %v951, %v953
        %v955 = vld [vmem:[%s338] sm:$0xff]
        %v956 = vmul.f32 %v955, %v916
        %v957 = vadd.f32 %v954, %v956
        %v958 = vld [vmem:[%s342] sm:$0xff]
        %v959 = vadd.f32 %v957, %v958
        %v960 = vmul.f32 %v207, %v959
        %v961 = vmax.f32 %v959, %v960
        %v962 = vld [vmem:[%s347] sm:$0xff]
        %v963 = vmul.f32 %v962, %v856
        %v964 = vld [vmem:[%s350] sm:$0xff]
        %v965 = vmul.f32 %v964, %v876
        %v966 = vadd.f32 %v963, %v965
        %v967 = vld [vmem:[%s354] sm:$0xff]
        %v968 = vmul.f32 %v967, %v896
        %v969 = vadd.f32 %v966, %v968
        %v970 = vld [vmem:[%s358] sm:$0xff]
        %v971 = vmul.f32 %v970, %v916
        %v972 = vadd.f32 %v969, %v971
        %v973 = vld [vmem:[%s362] sm:$0xff]
        %v974 = vadd.f32 %v972, %v973
        %v975 = vmul.f32 %v207, %v974
        %v976 = vmax.f32 %v974, %v975
        %v977 = vld [vmem:[%s367] sm:$0xff]
        %v978 = vmul.f32 %v977, %v856
        %v979 = vld [vmem:[%s370] sm:$0xff]
        %v980 = vmul.f32 %v979, %v876
        %v981 = vadd.f32 %v978, %v980
        %v982 = vld [vmem:[%s374] sm:$0xff]
        %v983 = vmul.f32 %v982, %v896
        %v984 = vadd.f32 %v981, %v983
        %v985 = vld [vmem:[%s378] sm:$0xff]
        %v986 = vmul.f32 %v985, %v916
        %v987 = vadd.f32 %v984, %v986
        %v988 = vld [vmem:[%s382] sm:$0xff]
        %v989 = vadd.f32 %v987, %v988
        %v990 = vmul.f32 %v207, %v989
        %v991 = vmax.f32 %v989, %v990
        %v992 = vld [vmem:[%s387] sm:$0xff]
        %v993 = vmul.f32 %v992, %v856
        %v994 = vld [vmem:[%s390] sm:$0xff]
        %v995 = vmul.f32 %v994, %v876
        %v996 = vadd.f32 %v993, %v995
        %v997 = vld [vmem:[%s394] sm:$0xff]
        %v998 = vmul.f32 %v997, %v896
        %v999 = vadd.f32 %v996, %v998
        %v1000 = vld [vmem:[%s398] sm:$0xff]
        %v1001 = vmul.f32 %v1000, %v916
        %v1002 = vadd.f32 %v999, %v1001
        %v1003 = vld [vmem:[%s402] sm:$0xff]
        %v1004 = vadd.f32 %v1002, %v1003
        %v1005 = vmul.f32 %v207, %v1004
        %v1006 = vmax.f32 %v1004, %v1005
        %v1007 = vld [vmem:[%s407] sm:$0xff]
        %v1008 = vmul.f32 %v1007, %v856
        %v1009 = vld [vmem:[%s410] sm:$0xff]
        %v1010 = vmul.f32 %v1009, %v876
        %v1011 = vadd.f32 %v1008, %v1010
        %v1012 = vld [vmem:[%s414] sm:$0xff]
        %v1013 = vmul.f32 %v1012, %v896
        %v1014 = vadd.f32 %v1011, %v1013
        %v1015 = vld [vmem:[%s418] sm:$0xff]
        %v1016 = vmul.f32 %v1015, %v916
        %v1017 = vadd.f32 %v1014, %v1016
        %v1018 = vld [vmem:[%s422] sm:$0xff]
        %v1019 = vadd.f32 %v1017, %v1018
        %v1020 = vmul.f32 %v207, %v1019
        %v1021 = vmax.f32 %v1019, %v1020
        %v1022 = vld [vmem:[%s427] sm:$0xff]
        %v1023 = vmul.f32 %v1022, %v856
        %v1024 = vld [vmem:[%s430] sm:$0xff]
        %v1025 = vmul.f32 %v1024, %v876
        %v1026 = vadd.f32 %v1023, %v1025
        %v1027 = vld [vmem:[%s434] sm:$0xff]
        %v1028 = vmul.f32 %v1027, %v896
        %v1029 = vadd.f32 %v1026, %v1028
        %v1030 = vld [vmem:[%s438] sm:$0xff]
        %v1031 = vmul.f32 %v1030, %v916
        %v1032 = vadd.f32 %v1029, %v1031
        %v1033 = vld [vmem:[%s442] sm:$0xff]
        %v1034 = vadd.f32 %v1032, %v1033
        %v1035 = vmul.f32 %v207, %v1034
        %v1036 = vmax.f32 %v1034, %v1035
        %v1037 = vld [vmem:[%s447] sm:$0xff]
        %v1038 = vmul.f32 %v1037, %v856
        %v1039 = vld [vmem:[%s450] sm:$0xff]
        %v1040 = vmul.f32 %v1039, %v876
        %v1041 = vadd.f32 %v1038, %v1040
        %v1042 = vld [vmem:[%s454] sm:$0xff]
        %v1043 = vmul.f32 %v1042, %v896
        %v1044 = vadd.f32 %v1041, %v1043
        %v1045 = vld [vmem:[%s458] sm:$0xff]
        %v1046 = vmul.f32 %v1045, %v916
        %v1047 = vadd.f32 %v1044, %v1046
        %v1048 = vld [vmem:[%s462] sm:$0xff]
        %v1049 = vadd.f32 %v1047, %v1048
        %v1050 = vmul.f32 %v207, %v1049
        %v1051 = vmax.f32 %v1049, %v1050
        %v1052 = vmax.f32 %v931, %v946
        %v1053 = vmax.f32 %v1052, %v961
        %v1054 = vmax.f32 %v1053, %v976
        %v1055 = vmax.f32 %v1054, %v991
        %v1056 = vmax.f32 %v1055, %v1006
        %v1057 = vmax.f32 %v1056, %v1021
        %v1058 = vmax.f32 %v1057, %v1036
        %v1059 = vmax.f32 %v1058, %v1051
        %v1060 = vsub.f32 %v931, %v1059
        %v1061 = vmul.f32 %v1060, 1.442695
        %v1062 = vpow.pop %v1061
        %v1063 = vsub.f32 %v946, %v1059
        %v1064 = vmul.f32 %v1063, 1.442695
        %v1065 = vpow.pop %v1064
        %v1066 = vsub.f32 %v961, %v1059
        %v1067 = vmul.f32 %v1066, 1.442695
        %v1068 = vpow.pop %v1067
        %v1069 = vsub.f32 %v976, %v1059
        %v1070 = vmul.f32 %v1069, 1.442695
        %v1071 = vpow.pop %v1070
        %v1072 = vsub.f32 %v991, %v1059
        %v1073 = vmul.f32 %v1072, 1.442695
        %v1074 = vpow.pop %v1073
        %v1075 = vsub.f32 %v1006, %v1059
        %v1076 = vmul.f32 %v1075, 1.442695
        %v1077 = vpow.pop %v1076
        %v1078 = vsub.f32 %v1021, %v1059
        %v1079 = vmul.f32 %v1078, 1.442695
        %v1080 = vpow.pop %v1079
        %v1081 = vsub.f32 %v1036, %v1059
        %v1082 = vmul.f32 %v1081, 1.442695
        %v1083 = vpow.pop %v1082
        %v1084 = vsub.f32 %v1051, %v1059
        %v1085 = vmul.f32 %v1084, 1.442695
        %v1086 = vpow.pop %v1085
        %v1087 = vadd.f32 %v1062, %v1065
        %v1088 = vadd.f32 %v1087, %v1068
        %v1089 = vadd.f32 %v1088, %v1071
        %v1090 = vadd.f32 %v1089, %v1074
        %v1091 = vadd.f32 %v1090, %v1077
        %v1092 = vadd.f32 %v1091, %v1080
        %v1093 = vadd.f32 %v1092, %v1083
        %v1094 = vadd.f32 %v1093, %v1086
        %v1095 = vrcp.pop %v1094
        %v1096 = vmul.f32 %v1062, %v1095
        %s1097 = sadd.s32 0, 144
        %s1098 = scalar_lea.vmem %s193, %s1097 [#allocation7]
        %1099 = vst [vmem:[%s1098] sm:$0xff] %v1096
        %v1100 = vmul.f32 %v1065, %v1095
        %s1101 = sadd.s32 0, 152
        %s1102 = scalar_lea.vmem %s193, %s1101 [#allocation7]
        %1103 = vst [vmem:[%s1102] sm:$0xff] %v1100
        %v1104 = vmul.f32 %v1068, %v1095
        %s1105 = sadd.s32 0, 160
        %s1106 = scalar_lea.vmem %s193, %s1105 [#allocation7]
        %1107 = vst [vmem:[%s1106] sm:$0xff] %v1104
        %v1108 = vmul.f32 %v1071, %v1095
        %s1109 = sadd.s32 0, 168
        %s1110 = scalar_lea.vmem %s193, %s1109 [#allocation7]
        %1111 = vst [vmem:[%s1110] sm:$0xff] %v1108
        %v1112 = vmul.f32 %v1074, %v1095
        %s1113 = sadd.s32 0, 176
        %s1114 = scalar_lea.vmem %s193, %s1113 [#allocation7]
        %1115 = vst [vmem:[%s1114] sm:$0xff] %v1112
        %v1116 = vmul.f32 %v1077, %v1095
        %s1117 = sadd.s32 0, 184
        %s1118 = scalar_lea.vmem %s193, %s1117 [#allocation7]
        %1119 = vst [vmem:[%s1118] sm:$0xff] %v1116
        %v1120 = vmul.f32 %v1080, %v1095
        %s1121 = sadd.s32 0, 192
        %s1122 = scalar_lea.vmem %s193, %s1121 [#allocation7]
        %1123 = vst [vmem:[%s1122] sm:$0xff] %v1120
        %v1124 = vmul.f32 %v1083, %v1095
        %s1125 = sadd.s32 0, 200
        %s1126 = scalar_lea.vmem %s193, %s1125 [#allocation7]
        %1127 = vst [vmem:[%s1126] sm:$0xff] %v1124
        %v1128 = vmul.f32 %v1086, %v1095
        %s1129 = sadd.s32 0, 208
        %s1130 = scalar_lea.vmem %s193, %s1129 [#allocation7]
        %1131 = vst [vmem:[%s1130] sm:$0xff] %v1128
        %s1132 = scalar_lea.vmem [#allocation5], 96
        %v1133 = vld [vmem:[%s1132] sm:$0xff]
        %v1134 = vmul.f32 %v1133, %v194
        %s1135 = scalar_lea.vmem [#allocation5], 104
        %v1136 = vld [vmem:[%s1135] sm:$0xff]
        %v1137 = vmul.f32 %v1136, %v197
        %v1138 = vadd.f32 %v1134, %v1137
        %s1139 = scalar_lea.vmem [#allocation5], 112
        %v1140 = vld [vmem:[%s1139] sm:$0xff]
        %v1141 = vmul.f32 %v1140, %v200
        %v1142 = vadd.f32 %v1138, %v1141
        %s1143 = scalar_lea.vmem [#allocation5], 120
        %v1144 = vld [vmem:[%s1143] sm:$0xff]
        %v1145 = vmul.f32 %v1144, %v203
        %v1146 = vadd.f32 %v1142, %v1145
        %s1147 = scalar_lea.vmem [#allocation5], 536
        %v1148 = vld [vmem:[%s1147] sm:$0xff]
        %v1149 = vadd.f32 %v1146, %v1148
        %v1150 = vmul.f32 %v205, %v1149
        %v1151 = vmax.f32 %v1149, %v1150
        %s1152 = scalar_lea.vmem [#allocation5], 224
        %v1153 = vld [vmem:[%s1152] sm:$0xff]
        %v1154 = vmul.f32 %v1153, %v194
        %s1155 = scalar_lea.vmem [#allocation5], 232
        %v1156 = vld [vmem:[%s1155] sm:$0xff]
        %v1157 = vmul.f32 %v1156, %v197
        %v1158 = vadd.f32 %v1154, %v1157
        %s1159 = scalar_lea.vmem [#allocation5], 240
        %v1160 = vld [vmem:[%s1159] sm:$0xff]
        %v1161 = vmul.f32 %v1160, %v200
        %v1162 = vadd.f32 %v1158, %v1161
        %s1163 = scalar_lea.vmem [#allocation5], 248
        %v1164 = vld [vmem:[%s1163] sm:$0xff]
        %v1165 = vmul.f32 %v1164, %v203
        %v1166 = vadd.f32 %v1162, %v1165
        %s1167 = scalar_lea.vmem [#allocation5], 568
        %v1168 = vld [vmem:[%s1167] sm:$0xff]
        %v1169 = vadd.f32 %v1166, %v1168
        %v1170 = vmul.f32 %v205, %v1169
        %v1171 = vmax.f32 %v1169, %v1170
        %s1172 = scalar_lea.vmem [#allocation5], 352
        %v1173 = vld [vmem:[%s1172] sm:$0xff]
        %v1174 = vmul.f32 %v1173, %v194
        %s1175 = scalar_lea.vmem [#allocation5], 360
        %v1176 = vld [vmem:[%s1175] sm:$0xff]
        %v1177 = vmul.f32 %v1176, %v197
        %v1178 = vadd.f32 %v1174, %v1177
        %s1179 = scalar_lea.vmem [#allocation5], 368
        %v1180 = vld [vmem:[%s1179] sm:$0xff]
        %v1181 = vmul.f32 %v1180, %v200
        %v1182 = vadd.f32 %v1178, %v1181
        %s1183 = scalar_lea.vmem [#allocation5], 376
        %v1184 = vld [vmem:[%s1183] sm:$0xff]
        %v1185 = vmul.f32 %v1184, %v203
        %v1186 = vadd.f32 %v1182, %v1185
        %s1187 = scalar_lea.vmem [#allocation5], 600
        %v1188 = vld [vmem:[%s1187] sm:$0xff]
        %v1189 = vadd.f32 %v1186, %v1188
        %v1190 = vmul.f32 %v205, %v1189
        %v1191 = vmax.f32 %v1189, %v1190
        %s1192 = scalar_lea.vmem [#allocation5], 480
        %v1193 = vld [vmem:[%s1192] sm:$0xff]
        %v1194 = vmul.f32 %v1193, %v194
        %s1195 = scalar_lea.vmem [#allocation5], 488
        %v1196 = vld [vmem:[%s1195] sm:$0xff]
        %v1197 = vmul.f32 %v1196, %v197
        %v1198 = vadd.f32 %v1194, %v1197
        %s1199 = scalar_lea.vmem [#allocation5], 496
        %v1200 = vld [vmem:[%s1199] sm:$0xff]
        %v1201 = vmul.f32 %v1200, %v200
        %v1202 = vadd.f32 %v1198, %v1201
        %s1203 = scalar_lea.vmem [#allocation5], 504
        %v1204 = vld [vmem:[%s1203] sm:$0xff]
        %v1205 = vmul.f32 %v1204, %v203
        %v1206 = vadd.f32 %v1202, %v1205
        %s1207 = scalar_lea.vmem [#allocation5], 632
        %v1208 = vld [vmem:[%s1207] sm:$0xff]
        %v1209 = vadd.f32 %v1206, %v1208
        %v1210 = vmul.f32 %v205, %v1209
        %v1211 = vmax.f32 %v1209, %v1210
        %v1212 = vld [vmem:[%s287] sm:$0xff]
        %v1213 = vmul.f32 %v1212, %v1151
        %v1214 = vld [vmem:[%s290] sm:$0xff]
        %v1215 = vmul.f32 %v1214, %v1171
        %v1216 = vadd.f32 %v1213, %v1215
        %v1217 = vld [vmem:[%s294] sm:$0xff]
        %v1218 = vmul.f32 %v1217, %v1191
        %v1219 = vadd.f32 %v1216, %v1218
        %v1220 = vld [vmem:[%s298] sm:$0xff]
        %v1221 = vmul.f32 %v1220, %v1211
        %v1222 = vadd.f32 %v1219, %v1221
        %v1223 = vld [vmem:[%s302] sm:$0xff]
        %v1224 = vadd.f32 %v1222, %v1223
        %v1225 = vmul.f32 %v207, %v1224
        %v1226 = vmax.f32 %v1224, %v1225
        %v1227 = vld [vmem:[%s307] sm:$0xff]
        %v1228 = vmul.f32 %v1227, %v1151
        %v1229 = vld [vmem:[%s310] sm:$0xff]
        %v1230 = vmul.f32 %v1229, %v1171
        %v1231 = vadd.f32 %v1228, %v1230
        %v1232 = vld [vmem:[%s314] sm:$0xff]
        %v1233 = vmul.f32 %v1232, %v1191
        %v1234 = vadd.f32 %v1231, %v1233
        %v1235 = vld [vmem:[%s318] sm:$0xff]
        %v1236 = vmul.f32 %v1235, %v1211
        %v1237 = vadd.f32 %v1234, %v1236
        %v1238 = vld [vmem:[%s322] sm:$0xff]
        %v1239 = vadd.f32 %v1237, %v1238
        %v1240 = vmul.f32 %v207, %v1239
        %v1241 = vmax.f32 %v1239, %v1240
        %v1242 = vld [vmem:[%s327] sm:$0xff]
        %v1243 = vmul.f32 %v1242, %v1151
        %v1244 = vld [vmem:[%s330] sm:$0xff]
        %v1245 = vmul.f32 %v1244, %v1171
        %v1246 = vadd.f32 %v1243, %v1245
        %v1247 = vld [vmem:[%s334] sm:$0xff]
        %v1248 = vmul.f32 %v1247, %v1191
        %v1249 = vadd.f32 %v1246, %v1248
        %v1250 = vld [vmem:[%s338] sm:$0xff]
        %v1251 = vmul.f32 %v1250, %v1211
        %v1252 = vadd.f32 %v1249, %v1251
        %v1253 = vld [vmem:[%s342] sm:$0xff]
        %v1254 = vadd.f32 %v1252, %v1253
        %v1255 = vmul.f32 %v207, %v1254
        %v1256 = vmax.f32 %v1254, %v1255
        %v1257 = vld [vmem:[%s347] sm:$0xff]
        %v1258 = vmul.f32 %v1257, %v1151
        %v1259 = vld [vmem:[%s350] sm:$0xff]
        %v1260 = vmul.f32 %v1259, %v1171
        %v1261 = vadd.f32 %v1258, %v1260
        %v1262 = vld [vmem:[%s354] sm:$0xff]
        %v1263 = vmul.f32 %v1262, %v1191
        %v1264 = vadd.f32 %v1261, %v1263
        %v1265 = vld [vmem:[%s358] sm:$0xff]
        %v1266 = vmul.f32 %v1265, %v1211
        %v1267 = vadd.f32 %v1264, %v1266
        %v1268 = vld [vmem:[%s362] sm:$0xff]
        %v1269 = vadd.f32 %v1267, %v1268
        %v1270 = vmul.f32 %v207, %v1269
        %v1271 = vmax.f32 %v1269, %v1270
        %v1272 = vld [vmem:[%s367] sm:$0xff]
        %v1273 = vmul.f32 %v1272, %v1151
        %v1274 = vld [vmem:[%s370] sm:$0xff]
        %v1275 = vmul.f32 %v1274, %v1171
        %v1276 = vadd.f32 %v1273, %v1275
        %v1277 = vld [vmem:[%s374] sm:$0xff]
        %v1278 = vmul.f32 %v1277, %v1191
        %v1279 = vadd.f32 %v1276, %v1278
        %v1280 = vld [vmem:[%s378] sm:$0xff]
        %v1281 = vmul.f32 %v1280, %v1211
        %v1282 = vadd.f32 %v1279, %v1281
        %v1283 = vld [vmem:[%s382] sm:$0xff]
        %v1284 = vadd.f32 %v1282, %v1283
        %v1285 = vmul.f32 %v207, %v1284
        %v1286 = vmax.f32 %v1284, %v1285
        %v1287 = vld [vmem:[%s387] sm:$0xff]
        %v1288 = vmul.f32 %v1287, %v1151
        %v1289 = vld [vmem:[%s390] sm:$0xff]
        %v1290 = vmul.f32 %v1289, %v1171
        %v1291 = vadd.f32 %v1288, %v1290
        %v1292 = vld [vmem:[%s394] sm:$0xff]
        %v1293 = vmul.f32 %v1292, %v1191
        %v1294 = vadd.f32 %v1291, %v1293
        %v1295 = vld [vmem:[%s398] sm:$0xff]
        %v1296 = vmul.f32 %v1295, %v1211
        %v1297 = vadd.f32 %v1294, %v1296
        %v1298 = vld [vmem:[%s402] sm:$0xff]
        %v1299 = vadd.f32 %v1297, %v1298
        %v1300 = vmul.f32 %v207, %v1299
        %v1301 = vmax.f32 %v1299, %v1300
        %v1302 = vld [vmem:[%s407] sm:$0xff]
        %v1303 = vmul.f32 %v1302, %v1151
        %v1304 = vld [vmem:[%s410] sm:$0xff]
        %v1305 = vmul.f32 %v1304, %v1171
        %v1306 = vadd.f32 %v1303, %v1305
        %v1307 = vld [vmem:[%s414] sm:$0xff]
        %v1308 = vmul.f32 %v1307, %v1191
        %v1309 = vadd.f32 %v1306, %v1308
        %v1310 = vld [vmem:[%s418] sm:$0xff]
        %v1311 = vmul.f32 %v1310, %v1211
        %v1312 = vadd.f32 %v1309, %v1311
        %v1313 = vld [vmem:[%s422] sm:$0xff]
        %v1314 = vadd.f32 %v1312, %v1313
        %v1315 = vmul.f32 %v207, %v1314
        %v1316 = vmax.f32 %v1314, %v1315
        %v1317 = vld [vmem:[%s427] sm:$0xff]
        %v1318 = vmul.f32 %v1317, %v1151
        %v1319 = vld [vmem:[%s430] sm:$0xff]
        %v1320 = vmul.f32 %v1319, %v1171
        %v1321 = vadd.f32 %v1318, %v1320
        %v1322 = vld [vmem:[%s434] sm:$0xff]
        %v1323 = vmul.f32 %v1322, %v1191
        %v1324 = vadd.f32 %v1321, %v1323
        %v1325 = vld [vmem:[%s438] sm:$0xff]
        %v1326 = vmul.f32 %v1325, %v1211
        %v1327 = vadd.f32 %v1324, %v1326
        %v1328 = vld [vmem:[%s442] sm:$0xff]
        %v1329 = vadd.f32 %v1327, %v1328
        %v1330 = vmul.f32 %v207, %v1329
        %v1331 = vmax.f32 %v1329, %v1330
        %v1332 = vld [vmem:[%s447] sm:$0xff]
        %v1333 = vmul.f32 %v1332, %v1151
        %v1334 = vld [vmem:[%s450] sm:$0xff]
        %v1335 = vmul.f32 %v1334, %v1171
        %v1336 = vadd.f32 %v1333, %v1335
        %v1337 = vld [vmem:[%s454] sm:$0xff]
        %v1338 = vmul.f32 %v1337, %v1191
        %v1339 = vadd.f32 %v1336, %v1338
        %v1340 = vld [vmem:[%s458] sm:$0xff]
        %v1341 = vmul.f32 %v1340, %v1211
        %v1342 = vadd.f32 %v1339, %v1341
        %v1343 = vld [vmem:[%s462] sm:$0xff]
        %v1344 = vadd.f32 %v1342, %v1343
        %v1345 = vmul.f32 %v207, %v1344
        %v1346 = vmax.f32 %v1344, %v1345
        %v1347 = vmax.f32 %v1226, %v1241
        %v1348 = vmax.f32 %v1347, %v1256
        %v1349 = vmax.f32 %v1348, %v1271
        %v1350 = vmax.f32 %v1349, %v1286
        %v1351 = vmax.f32 %v1350, %v1301
        %v1352 = vmax.f32 %v1351, %v1316
        %v1353 = vmax.f32 %v1352, %v1331
        %v1354 = vmax.f32 %v1353, %v1346
        %v1355 = vsub.f32 %v1226, %v1354
        %v1356 = vmul.f32 %v1355, 1.442695
        %v1357 = vpow.pop %v1356
        %v1358 = vsub.f32 %v1241, %v1354
        %v1359 = vmul.f32 %v1358, 1.442695
        %v1360 = vpow.pop %v1359
        %v1361 = vsub.f32 %v1256, %v1354
        %v1362 = vmul.f32 %v1361, 1.442695
        %v1363 = vpow.pop %v1362
        %v1364 = vsub.f32 %v1271, %v1354
        %v1365 = vmul.f32 %v1364, 1.442695
        %v1366 = vpow.pop %v1365
        %v1367 = vsub.f32 %v1286, %v1354
        %v1368 = vmul.f32 %v1367, 1.442695
        %v1369 = vpow.pop %v1368
        %v1370 = vsub.f32 %v1301, %v1354
        %v1371 = vmul.f32 %v1370, 1.442695
        %v1372 = vpow.pop %v1371
        %v1373 = vsub.f32 %v1316, %v1354
        %v1374 = vmul.f32 %v1373, 1.442695
        %v1375 = vpow.pop %v1374
        %v1376 = vsub.f32 %v1331, %v1354
        %v1377 = vmul.f32 %v1376, 1.442695
        %v1378 = vpow.pop %v1377
        %v1379 = vsub.f32 %v1346, %v1354
        %v1380 = vmul.f32 %v1379, 1.442695
        %v1381 = vpow.pop %v1380
        %v1382 = vadd.f32 %v1357, %v1360
        %v1383 = vadd.f32 %v1382, %v1363
        %v1384 = vadd.f32 %v1383, %v1366
        %v1385 = vadd.f32 %v1384, %v1369
        %v1386 = vadd.f32 %v1385, %v1372
        %v1387 = vadd.f32 %v1386, %v1375
        %v1388 = vadd.f32 %v1387, %v1378
        %v1389 = vadd.f32 %v1388, %v1381
        %v1390 = vrcp.pop %v1389
        %v1391 = vmul.f32 %v1357, %v1390
        %s1392 = sadd.s32 0, 216
        %s1393 = scalar_lea.vmem %s193, %s1392 [#allocation7]
        %1394 = vst [vmem:[%s1393] sm:$0xff] %v1391
        %v1395 = vmul.f32 %v1360, %v1390
        %s1396 = sadd.s32 0, 224
        %s1397 = scalar_lea.vmem %s193, %s1396 [#allocation7]
        %1398 = vst [vmem:[%s1397] sm:$0xff] %v1395
        %v1399 = vmul.f32 %v1363, %v1390
        %s1400 = sadd.s32 0, 232
        %s1401 = scalar_lea.vmem %s193, %s1400 [#allocation7]
        %1402 = vst [vmem:[%s1401] sm:$0xff] %v1399
        %v1403 = vmul.f32 %v1366, %v1390
        %s1404 = sadd.s32 0, 240
        %s1405 = scalar_lea.vmem %s193, %s1404 [#allocation7]
        %1406 = vst [vmem:[%s1405] sm:$0xff] %v1403
        %v1407 = vmul.f32 %v1369, %v1390
        %s1408 = sadd.s32 0, 248
        %s1409 = scalar_lea.vmem %s193, %s1408 [#allocation7]
        %1410 = vst [vmem:[%s1409] sm:$0xff] %v1407
        %v1411 = vmul.f32 %v1372, %v1390
        %s1412 = sadd.s32 0, 256
        %s1413 = scalar_lea.vmem %s193, %s1412 [#allocation7]
        %1414 = vst [vmem:[%s1413] sm:$0xff] %v1411
        %v1415 = vmul.f32 %v1375, %v1390
        %s1416 = sadd.s32 0, 264
        %s1417 = scalar_lea.vmem %s193, %s1416 [#allocation7]
        %1418 = vst [vmem:[%s1417] sm:$0xff] %v1415
        %v1419 = vmul.f32 %v1378, %v1390
        %s1420 = sadd.s32 0, 272
        %s1421 = scalar_lea.vmem %s193, %s1420 [#allocation7]
        %1422 = vst [vmem:[%s1421] sm:$0xff] %v1419
        %v1423 = vmul.f32 %v1381, %v1390
        %s1424 = sadd.s32 0, 280
        %s1425 = scalar_lea.vmem %s193, %s1424 [#allocation7]
        %1426 = vst [vmem:[%s1425] sm:$0xff] %v1423
        %s1427 = sand.u32 %s91, 1
        %s1428 = scalar_lea.sflag [#allocation4], %s1427
        %s1429 = sand.u32 %s91, 1
        %s1430 = smul.addr %s1429, 288
        %s1431 = scalar_lea.vmem [#allocation7], %s1430
        // Predicated region
        $region37: #{tpu_custom_call.1} parent=27 // pred_check
          %p1432 = pneg %p101
        $region38: #{tpu_custom_call.1} parent=27 // pred_check_branch
          %1434 = sbr.rel (%p1432) target = $region40
        $region39: #{tpu_custom_call.1} parent=27 // pred_region
          %s1436 = ssub.s32 4608, 4608
          %1437 = vsyncadd %s1428, %s1436
          %s1438 = smul.addr %s24, 36
          %s1439 = sadd.s32 %s25, %s1438
          %s1440 = smul.addr %s1439, 128
          %s1441 = scalar_lea.hbm %s2, %s1440
          %s1442 = sshll.u32 %s1431, 4
          %s1443 = int_to_ptr.vmem [resolvable:$true] %s1442
          %1448 = dma.vmem_to_hbm [thread:$0]  %s1443, 4608, %s1441, %s1428, 128, 128, 8
        $region40: #{tpu_custom_call.1} parent=27 // pred_fallthru
          _
      $region28: #{tpu_custom_call.1} parent=5 // pred_fallthru
        _
      %p1449 = scmp.le.s32.totalorder 2, %s15
      // Predicated region
      $region41: #{tpu_custom_call.1} parent=5 // pred_check
        %p1450 = pneg %p1449
      $region42: #{tpu_custom_call.1} parent=5 // pred_check_branch
        %1452 = sbr.rel (%p1450) target = $region44
      $region43: #{tpu_custom_call.1} parent=5 // pred_region
        %s1453 = ssub.s32 %s15, 2
        // Predicated region
        $region45: #{tpu_custom_call.1} parent=43 // pred_check
          %p1454 = pneg %p107
        $region46: #{tpu_custom_call.1} parent=43 // pred_check_branch
          %1456 = sbr.rel (%p1454) target = $region48
        $region47: #{tpu_custom_call.1} parent=43 // pred_region
          %s1457 = sand.u32 %s92, 1
          %s1458 = scalar_lea.sflag [#allocation4], %s1457
          %s1459 = sand.u32 %s92, 1
          %s1460 = smul.addr %s1459, 288
          %s1461 = scalar_lea.vmem [#allocation7], %s1460
          %1462 = dma.done %s1458, 4608
        $region48: #{tpu_custom_call.1} parent=43 // pred_fallthru
          _
      $region44: #{tpu_custom_call.1} parent=5 // pred_fallthru
        _
    $region6: #{tpu_custom_call.1} parent=1 // loop_footer
      %s19 = sadd.s32 1, %s15
    $region7: #{tpu_custom_call.1} parent=1 // loop_footer_branch
      %14 = sbr.rel target = $region3
    $region8: #{tpu_custom_call.1} parent=1 // loop_exit
      _
    %1463 = vsyncpa [#allocation3], 1
    %s1464 = scalar_lea.sflag [#allocation3], 1
    %1465 = vsyncpa %s1464, 1
    %1466 = vsyncpa [#allocation6], 1
    %1467 = vsyncpa [#allocation4], 1
    %s1468 = scalar_lea.sflag [#allocation4], 1
    %1469 = vsyncpa %s1468, 1

</llo_original>
